<compile_context>
chip_gen: v5e
topology: v5e:2x2
jax: 0.10.0
libtpu: 0.0.40
codegen_flags: <defaults>
</compile_context>

<pallas_src>
import functools

import jax
import jax.numpy as jnp
from jax.experimental import pallas as pl
from jax.experimental.pallas import tpu as pltpu

VMEM = pl.BlockSpec(memory_space=pltpu.MemorySpace.VMEM)


# ---------------------------------------------------------------------------
# Fused kernel: conv+BN+ReLU+pool -> BiLSTM (2 layers, both directions) -> FC
# ---------------------------------------------------------------------------
def hybrid_kernel(xp_ref, convw_ref, scale_ref, shift_ref,
                  l0_wf_ref, l0_wr_ref, l0_whh_ref, l0_b_ref,
                  l1_wf_ref, l1_wr_ref, l1_whh_ref, l1_b_ref,
                  fw1_ref, fb1_ref, fw2_ref, fb2_ref,
                  out_ref, *, K, pool):
    B, Lp = xp_ref.shape
    L = Lp - (K - 1)                    # 'same' conv output length (odd K)
    T = L // pool                       # BiLSTM sequence length
    G = l0_whh_ref.shape[1]             # 8 * H  (4 gates x 2 directions)
    D = G // 4                          # 2 * H  (fwd|bwd combined hidden width)

    xp = xp_ref[...]                    # (B, L + K - 1) zero-padded input
    w = convw_ref[...]                  # (K, C)
    scale = scale_ref[...][None, :, :]  # (1, 1, C)  folded BN scale
    shift = shift_ref[...][None, :, :]  # (1, 1, C)  folded BN shift (+conv bias)
    C = w.shape[1]

    # --- Conv1d(1->C, K, same) + BatchNorm(eval) + ReLU (K unrolled taps) ----
    acc = jnp.zeros((B, L, C), jnp.float32)
    for k in range(K):
        acc = acc + xp[:, k:k + L][:, :, None] * w[k:k + 1, :][None, :, :]
    y = jnp.maximum(acc * scale + shift, 0.0)                  # (B, L, C)

    # --- MaxPool1d(pool, pool): emit per-timestep (B, C) rows, time-major ----
    x_steps = []
    for t in range(T):
        m = y[:, pool * t, :]
        for p in range(1, pool):
            m = jnp.maximum(m, y[:, pool * t + p, :])
        x_steps.append(m)                                      # (B, C)
    # Dropout(0.3) is identity at inference.

    # --- one fused bidirectional LSTM layer ---------------------------------
    def bilstm_layer(xf_flat, xr_flat, wf, wr, whh, bias, collect_seq):
        # Hoisted input projection for BOTH directions at once (lane-dense 8H):
        # comb[t*B + b] holds the input-side gate pre-activations for the
        # forward direction at position t and the backward direction at T-1-t.
        comb = (jnp.dot(xf_flat, wf, preferred_element_type=jnp.float32)
                + jnp.dot(xr_flat, wr, preferred_element_type=jnp.float32)
                + bias)                                        # (T*B, 8H)
        h = jnp.zeros((B, D), jnp.float32)                     # [h_fwd | h_bwd]
        c = jnp.zeros((B, D), jnp.float32)
        hs = []
        for t in range(T):                                     # fully unrolled
            gates = comb[t * B:(t + 1) * B, :] + jnp.dot(
                h, whh, preferred_element_type=jnp.float32)    # (B, 128)
            sig = jax.nn.sigmoid(gates)                        # whole-vector EUP
            tng = jnp.tanh(gates)
            i_g = sig[:, 0 * D:1 * D]                          # gate-major packing
            f_g = sig[:, 1 * D:2 * D]
            g_g = tng[:, 2 * D:3 * D]
            o_g = sig[:, 3 * D:4 * D]
            c = f_g * c + i_g * g_g
            h = o_g * jnp.tanh(c)
            if collect_seq:
                hs.append(h)
        return h, hs

    # --- layer 0 -------------------------------------------------------------
    x0f = jnp.concatenate(x_steps, axis=0)                     # (T*B, C) time-major
    x0r = jnp.concatenate(x_steps[::-1], axis=0)               # time-reversed
    _, hs0 = bilstm_layer(x0f, x0r, l0_wf_ref[...], l0_wr_ref[...],
                          l0_whh_ref[...], l0_b_ref[...], collect_seq=True)

    # --- layer 1 (inter-layer Dropout(0.3) is identity at inference) ---------
    a_flat = jnp.concatenate(hs0, axis=0)                      # (T*B, 2H)
    r_flat = jnp.concatenate(hs0[::-1], axis=0)
    h_last, _ = bilstm_layer(a_flat, r_flat, l1_wf_ref[...], l1_wr_ref[...],
                             l1_whh_ref[...], l1_b_ref[...], collect_seq=False)
    # h_last == torch.cat((h_n[-2], h_n[-1]), dim=1)

    # --- FC head: Linear(2H->H) + ReLU + Linear(H->O) ------------------------
    fc1 = jnp.maximum(
        jnp.dot(h_last, fw1_ref[...], preferred_element_type=jnp.float32)
        + fb1_ref[...], 0.0)                                   # Dropout(0.5): identity
    out_ref[...] = (jnp.dot(fc1, fw2_ref[...], preferred_element_type=jnp.float32)
                    + fb2_ref[...])


# ---------------------------------------------------------------------------
# Parameter generation (torch layout) and packing into the fused-kernel layout
# ---------------------------------------------------------------------------
def init_params(key, *, output_bins, cnn_out_channels=8, kernel_size=11,
                lstm_hidden_size=16, lstm_num_layers=2):
    assert lstm_num_layers == 2, "fused kernel is specialized to 2 BiLSTM layers"
    keys = iter(jax.random.split(key, 64))

    def rnd(shape, scale=0.1):
        return scale * jax.random.normal(next(keys), shape, jnp.float32)

    C, K, H = cnn_out_channels, kernel_size, lstm_hidden_size
    raw = {}

    # Conv1d(1, C, K) + BatchNorm1d(C) running stats (eval mode).
    conv_w = rnd((C, 1, K))
    conv_b = rnd((C,))
    gamma = 1.0 + rnd((C,))
    beta = rnd((C,))
    mean = jnp.zeros((C,), jnp.float32)
    var = jnp.ones((C,), jnp.float32)
    raw["conv"] = (conv_w, conv_b, gamma, beta, mean, var, 1e-5)

    # Bidirectional LSTM: per layer (forward, backward) torch-format weights.
    raw["lstm"] = []
    for layer in range(lstm_num_layers):
        I = C if layer == 0 else 2 * H
        dirs = []
        for _ in range(2):
            dirs.append((rnd((4 * H, I)), rnd((4 * H, H)),
                         rnd((4 * H,)), rnd((4 * H,))))
        raw["lstm"].append(tuple(dirs))

    # FC head.
    raw["fc"] = (rnd((H, 2 * H)), rnd((H,)), rnd((output_bins, H)), rnd((output_bins,)))
    return raw


def _place_gate_cols(w_t, direction, H):
    """Scatter the 4 torch gate blocks (i,f,g,o) of `w_t` (rows, 4H) into the
    gate-major / direction-minor column layout [i_f i_b f_f f_b g_f g_b o_f o_b]
    of an (rows, 8H) matrix (direction: 0=forward, 1=backward)."""
    rows = w_t.shape[0]
    out = jnp.zeros((rows, 8 * H), w_t.dtype)
    for g in range(4):
        col = (2 * g + direction) * H
        out = out.at[:, col:col + H].set(w_t[:, g * H:(g + 1) * H])
    return out


def pack_params(raw, H):
    conv_w, conv_b, gamma, beta, mean, var, eps = raw["conv"]
    scale = gamma / jnp.sqrt(var + eps)
    shift = (conv_b - mean) * scale + beta
    p = {"conv_w": jnp.transpose(conv_w[:, 0, :], (1, 0)),   # (K, C)
         "bn_scale": scale[None, :],                         # (1, C)
         "bn_shift": shift[None, :]}                         # (1, C)

    def dir_cols(w_ih, w_hh, b_ih, b_hh, d):
        return (_place_gate_cols(w_ih.T, d, H),              # (I, 8H)
                _place_gate_cols(w_hh.T, d, H),              # (H, 8H)
                _place_gate_cols((b_ih + b_hh)[None, :], d, H))  # (1, 8H)

    # Layer 0: forward gates consume x[t], backward gates consume x[T-1-t].
    f0, b0 = raw["lstm"][0]
    wih0_f, whh0_f, bias0_f = dir_cols(*f0, 0)
    wih0_b, whh0_b, bias0_b = dir_cols(*b0, 1)
    p["l0"] = (wih0_f,                                       # applied to x[t]
               wih0_b,                                       # applied to x[T-1-t]
               jnp.concatenate([whh0_f, whh0_b], axis=0),    # (2H, 8H) block-diag
               bias0_f + bias0_b)                            # (1, 8H)

    # Layer 1: input at position p is concat(h0_f[p], h0_b[p]).  With A[t] being
    # the step-ordered layer-0 combined state and R[t] = A[T-1-t], the per-step
    # input projection is  A[t] @ M1 + R[t] @ M2.
    f1, b1 = raw["lstm"][1]
    wih1_f, whh1_f, bias1_f = dir_cols(*f1, 0)               # (2H, 8H)
    wih1_b, whh1_b, bias1_b = dir_cols(*b1, 1)
    m1 = jnp.concatenate([wih1_f[:H], wih1_b[H:]], axis=0)   # rows: h_f | h_b feats
    m2 = jnp.concatenate([wih1_b[:H], wih1_f[H:]], axis=0)
    p["l1"] = (m1, m2,
               jnp.concatenate([whh1_f, whh1_b], axis=0),
               bias1_f + bias1_b)

    w1, fb1, w2, fb2 = raw["fc"]
    p["fc"] = (w1.T, fb1[None, :], w2.T, fb2[None, :])
    return p


# ---------------------------------------------------------------------------
# Forward wrapper (single pallas_call)
# ---------------------------------------------------------------------------
def hybrid_cnn_bilstm_forward(x, params, *, kernel_size=11, pool=4):
    B, L = x.shape
    K = kernel_size
    assert K % 2 == 1, "padding math assumes an odd kernel_size"
    assert L % pool == 0, "MaxPool assumes input_length divisible by 4"
    pad = (K - 1) // 2
    O = params["fc"][2].shape[1]

    xp = jnp.pad(x.astype(jnp.float32), ((0, 0), (pad, pad)))
    operands = (xp, params["conv_w"], params["bn_scale"], params["bn_shift"],
                *params["l0"], *params["l1"], *params["fc"])

    return pl.pallas_call(
        functools.partial(hybrid_kernel, K=K, pool=pool),
        out_shape=jax.ShapeDtypeStruct((B, O), jnp.float32),
        in_specs=[VMEM] * len(operands),
        out_specs=VMEM,
        compiler_params=pltpu.CompilerParams(vmem_limit_bytes=32 * 1024 * 1024),
    )(*operands)


# ---------------------------------------------------------------------------
# Pure-JAX reference (PyTorch eval semantics) for a numerical sanity check
# ---------------------------------------------------------------------------
def reference_forward(x, raw, *, K, pool):
    conv_w, conv_b, gamma, beta, mean, var, eps = raw["conv"]
    B, L = x.shape
    C = conv_w.shape[0]
    pad = (K - 1) // 2
    xp = jnp.pad(x.astype(jnp.float32), ((0, 0), (pad, pad)))
    y = jnp.zeros((B, C, L), jnp.float32)
    for k in range(K):
        y = y + xp[:, None, k:k + L] * conv_w[:, 0, k][None, :, None]
    y = y + conv_b[None, :, None]
    y = ((y - mean[None, :, None]) / jnp.sqrt(var[None, :, None] + eps)
         * gamma[None, :, None] + beta[None, :, None])
    y = jnp.maximum(y, 0.0)
    T = L // pool
    y = y[:, :, :T * pool].reshape(B, C, T, pool).max(axis=-1)   # (B, C, T)
    seq = jnp.transpose(y, (0, 2, 1))                            # (B, T, C)

    HI = jax.lax.Precision.HIGHEST

    def run_dir(inp, w_ih, w_hh, b_ih, b_hh, reverse):
        Tn, Hn = inp.shape[1], w_hh.shape[1]
        h = jnp.zeros((B, Hn), jnp.float32)
        c = jnp.zeros((B, Hn), jnp.float32)
        outs = [None] * Tn
        order = range(Tn - 1, -1, -1) if reverse else range(Tn)
        for t in order:
            g = (jnp.dot(inp[:, t, :], w_ih.T, precision=HI)
                 + jnp.dot(h, w_hh.T, precision=HI) + b_ih + b_hh)
            i = jax.nn.sigmoid(g[:, :Hn])
            f = jax.nn.sigmoid(g[:, Hn:2 * Hn])
            gg = jnp.tanh(g[:, 2 * Hn:3 * Hn])
            o = jax.nn.sigmoid(g[:, 3 * Hn:])
            c = f * c + i * gg
            h = o * jnp.tanh(c)
            outs[t] = h
        return jnp.stack(outs, axis=1), h

    layer_in = seq
    h_f = h_b = None
    for fwd_w, bwd_w in raw["lstm"]:
        out_f, h_f = run_dir(layer_in, *fwd_w, reverse=False)
        out_b, h_b = run_dir(layer_in, *bwd_w, reverse=True)
        layer_in = jnp.concatenate([out_f, out_b], axis=-1)

    last = jnp.concatenate([h_f, h_b], axis=1)
    w1, fb1, w2, fb2 = raw["fc"]
    hfc = jnp.maximum(jnp.dot(last, w1.T, precision=HI) + fb1, 0.0)
    return jnp.dot(hfc, w2.T, precision=HI) + fb2


if __name__ == "__main__":
    # Small shapes consistent with the module: x (batch, input_length),
    # sequence after MaxPool(4) = input_length // 4; H=16 makes 8H = 128 lanes.
    B, L, O = 2, 64, 10
    C, K, H, NL = 8, 11, 16, 2

    key = jax.random.PRNGKey(0)
    kx, kp = jax.random.split(key)
    x = jax.random.normal(kx, (B, L), jnp.float32)

    raw = init_params(kp, output_bins=O, cnn_out_channels=C, kernel_size=K,
                      lstm_hidden_size=H, lstm_num_layers=NL)
    params = pack_params(raw, H)

    fwd = jax.jit(functools.partial(hybrid_cnn_bilstm_forward,
                                    kernel_size=K, pool=4))
    y = jax.block_until_ready(fwd(x, params))
    assert y.shape == (B, O)
    assert bool(jnp.all(jnp.isfinite(y)))

    # Sanity check against the pure-JAX reference of the PyTorch eval forward.
    y_ref = reference_forward(x, raw, K=K, pool=4)
    max_err = float(jnp.max(jnp.abs(y - y_ref)))
    assert max_err < 1e-2, f"mismatch vs reference: {max_err}"

    print("KERNEL_OK")
</pallas_src>

<mosaic_0001>
module attributes {stable_mosaic.version = 11 : i64} {
  func.func @hybrid_kernel(%arg0: memref<2x74xf32, #tpu.memory_space<vmem>>, %arg1: memref<11x8xf32, #tpu.memory_space<vmem>>, %arg2: memref<1x8xf32, #tpu.memory_space<vmem>>, %arg3: memref<1x8xf32, #tpu.memory_space<vmem>>, %arg4: memref<8x128xf32, #tpu.memory_space<vmem>>, %arg5: memref<8x128xf32, #tpu.memory_space<vmem>>, %arg6: memref<32x128xf32, #tpu.memory_space<vmem>>, %arg7: memref<1x128xf32, #tpu.memory_space<vmem>>, %arg8: memref<32x128xf32, #tpu.memory_space<vmem>>, %arg9: memref<32x128xf32, #tpu.memory_space<vmem>>, %arg10: memref<32x128xf32, #tpu.memory_space<vmem>>, %arg11: memref<1x128xf32, #tpu.memory_space<vmem>>, %arg12: memref<32x16xf32, #tpu.memory_space<vmem>>, %arg13: memref<1x16xf32, #tpu.memory_space<vmem>>, %arg14: memref<16x10xf32, #tpu.memory_space<vmem>>, %arg15: memref<1x10xf32, #tpu.memory_space<vmem>>, %arg16: memref<2x10xf32, #tpu.memory_space<vmem>>) attributes {dimension_semantics = [], scalar_prefetch = 0 : i64, scratch_operands = 0 : i64, tpu.core_type = #tpu.core_type<tc>} {
    %c0 = arith.constant 0 : index
    %c0_0 = arith.constant 0 : index
    %0 = vector.load %arg0[%c0, %c0_0] : memref<2x74xf32, #tpu.memory_space<vmem>>, vector<2x74xf32>
    %c0_1 = arith.constant 0 : index
    %c0_2 = arith.constant 0 : index
    %1 = vector.load %arg1[%c0_1, %c0_2] : memref<11x8xf32, #tpu.memory_space<vmem>>, vector<11x8xf32>
    %c0_3 = arith.constant 0 : index
    %c0_4 = arith.constant 0 : index
    %2 = vector.load %arg2[%c0_3, %c0_4] : memref<1x8xf32, #tpu.memory_space<vmem>>, vector<1x8xf32>
    %3 = vector.shape_cast %2 : vector<1x8xf32> to vector<1x1x8xf32>
    %c0_5 = arith.constant 0 : index
    %c0_6 = arith.constant 0 : index
    %4 = vector.load %arg3[%c0_5, %c0_6] : memref<1x8xf32, #tpu.memory_space<vmem>>, vector<1x8xf32>
    %5 = vector.shape_cast %4 : vector<1x8xf32> to vector<1x1x8xf32>
    %cst = arith.constant 0.000000e+00 : f32
    %6 = vector.broadcast %cst : f32 to vector<2x64x8xf32>
    %7 = vector.extract_strided_slice %0 {offsets = [0, 0], sizes = [2, 64], strides = [1, 1]} : vector<2x74xf32> to vector<2x64xf32>
    %8 = vector.shape_cast %7 : vector<2x64xf32> to vector<2x64x1xf32>
    %9 = vector.extract_strided_slice %1 {offsets = [0, 0], sizes = [1, 8], strides = [1, 1]} : vector<11x8xf32> to vector<1x8xf32>
    %10 = vector.shape_cast %9 : vector<1x8xf32> to vector<1x1x8xf32>
    %11 = vector.broadcast %8 : vector<2x64x1xf32> to vector<2x64x8xf32>
    %12 = vector.broadcast %10 : vector<1x1x8xf32> to vector<2x64x8xf32>
    %13 = arith.mulf %11, %12 : vector<2x64x8xf32>
    %14 = arith.addf %6, %13 : vector<2x64x8xf32>
    %15 = vector.extract_strided_slice %0 {offsets = [0, 1], sizes = [2, 64], strides = [1, 1]} : vector<2x74xf32> to vector<2x64xf32>
    %16 = vector.shape_cast %15 : vector<2x64xf32> to vector<2x64x1xf32>
    %17 = vector.extract_strided_slice %1 {offsets = [1, 0], sizes = [1, 8], strides = [1, 1]} : vector<11x8xf32> to vector<1x8xf32>
    %18 = vector.shape_cast %17 : vector<1x8xf32> to vector<1x1x8xf32>
    %19 = vector.broadcast %16 : vector<2x64x1xf32> to vector<2x64x8xf32>
    %20 = vector.broadcast %18 : vector<1x1x8xf32> to vector<2x64x8xf32>
    %21 = arith.mulf %19, %20 : vector<2x64x8xf32>
    %22 = arith.addf %14, %21 : vector<2x64x8xf32>
    %23 = vector.extract_strided_slice %0 {offsets = [0, 2], sizes = [2, 64], strides = [1, 1]} : vector<2x74xf32> to vector<2x64xf32>
    %24 = vector.shape_cast %23 : vector<2x64xf32> to vector<2x64x1xf32>
    %25 = vector.extract_strided_slice %1 {offsets = [2, 0], sizes = [1, 8], strides = [1, 1]} : vector<11x8xf32> to vector<1x8xf32>
    %26 = vector.shape_cast %25 : vector<1x8xf32> to vector<1x1x8xf32>
    %27 = vector.broadcast %24 : vector<2x64x1xf32> to vector<2x64x8xf32>
    %28 = vector.broadcast %26 : vector<1x1x8xf32> to vector<2x64x8xf32>
    %29 = arith.mulf %27, %28 : vector<2x64x8xf32>
    %30 = arith.addf %22, %29 : vector<2x64x8xf32>
    %31 = vector.extract_strided_slice %0 {offsets = [0, 3], sizes = [2, 64], strides = [1, 1]} : vector<2x74xf32> to vector<2x64xf32>
    %32 = vector.shape_cast %31 : vector<2x64xf32> to vector<2x64x1xf32>
    %33 = vector.extract_strided_slice %1 {offsets = [3, 0], sizes = [1, 8], strides = [1, 1]} : vector<11x8xf32> to vector<1x8xf32>
    %34 = vector.shape_cast %33 : vector<1x8xf32> to vector<1x1x8xf32>
    %35 = vector.broadcast %32 : vector<2x64x1xf32> to vector<2x64x8xf32>
    %36 = vector.broadcast %34 : vector<1x1x8xf32> to vector<2x64x8xf32>
    %37 = arith.mulf %35, %36 : vector<2x64x8xf32>
    %38 = arith.addf %30, %37 : vector<2x64x8xf32>
    %39 = vector.extract_strided_slice %0 {offsets = [0, 4], sizes = [2, 64], strides = [1, 1]} : vector<2x74xf32> to vector<2x64xf32>
    %40 = vector.shape_cast %39 : vector<2x64xf32> to vector<2x64x1xf32>
    %41 = vector.extract_strided_slice %1 {offsets = [4, 0], sizes = [1, 8], strides = [1, 1]} : vector<11x8xf32> to vector<1x8xf32>
    %42 = vector.shape_cast %41 : vector<1x8xf32> to vector<1x1x8xf32>
    %43 = vector.broadcast %40 : vector<2x64x1xf32> to vector<2x64x8xf32>
    %44 = vector.broadcast %42 : vector<1x1x8xf32> to vector<2x64x8xf32>
    %45 = arith.mulf %43, %44 : vector<2x64x8xf32>
    %46 = arith.addf %38, %45 : vector<2x64x8xf32>
    %47 = vector.extract_strided_slice %0 {offsets = [0, 5], sizes = [2, 64], strides = [1, 1]} : vector<2x74xf32> to vector<2x64xf32>
    %48 = vector.shape_cast %47 : vector<2x64xf32> to vector<2x64x1xf32>
    %49 = vector.extract_strided_slice %1 {offsets = [5, 0], sizes = [1, 8], strides = [1, 1]} : vector<11x8xf32> to vector<1x8xf32>
    %50 = vector.shape_cast %49 : vector<1x8xf32> to vector<1x1x8xf32>
    %51 = vector.broadcast %48 : vector<2x64x1xf32> to vector<2x64x8xf32>
    %52 = vector.broadcast %50 : vector<1x1x8xf32> to vector<2x64x8xf32>
    %53 = arith.mulf %51, %52 : vector<2x64x8xf32>
    %54 = arith.addf %46, %53 : vector<2x64x8xf32>
    %55 = vector.extract_strided_slice %0 {offsets = [0, 6], sizes = [2, 64], strides = [1, 1]} : vector<2x74xf32> to vector<2x64xf32>
    %56 = vector.shape_cast %55 : vector<2x64xf32> to vector<2x64x1xf32>
    %57 = vector.extract_strided_slice %1 {offsets = [6, 0], sizes = [1, 8], strides = [1, 1]} : vector<11x8xf32> to vector<1x8xf32>
    %58 = vector.shape_cast %57 : vector<1x8xf32> to vector<1x1x8xf32>
    %59 = vector.broadcast %56 : vector<2x64x1xf32> to vector<2x64x8xf32>
    %60 = vector.broadcast %58 : vector<1x1x8xf32> to vector<2x64x8xf32>
    %61 = arith.mulf %59, %60 : vector<2x64x8xf32>
    %62 = arith.addf %54, %61 : vector<2x64x8xf32>
    %63 = vector.extract_strided_slice %0 {offsets = [0, 7], sizes = [2, 64], strides = [1, 1]} : vector<2x74xf32> to vector<2x64xf32>
    %64 = vector.shape_cast %63 : vector<2x64xf32> to vector<2x64x1xf32>
    %65 = vector.extract_strided_slice %1 {offsets = [7, 0], sizes = [1, 8], strides = [1, 1]} : vector<11x8xf32> to vector<1x8xf32>
    %66 = vector.shape_cast %65 : vector<1x8xf32> to vector<1x1x8xf32>
    %67 = vector.broadcast %64 : vector<2x64x1xf32> to vector<2x64x8xf32>
    %68 = vector.broadcast %66 : vector<1x1x8xf32> to vector<2x64x8xf32>
    %69 = arith.mulf %67, %68 : vector<2x64x8xf32>
    %70 = arith.addf %62, %69 : vector<2x64x8xf32>
    %71 = vector.extract_strided_slice %0 {offsets = [0, 8], sizes = [2, 64], strides = [1, 1]} : vector<2x74xf32> to vector<2x64xf32>
    %72 = vector.shape_cast %71 : vector<2x64xf32> to vector<2x64x1xf32>
    %73 = vector.extract_strided_slice %1 {offsets = [8, 0], sizes = [1, 8], strides = [1, 1]} : vector<11x8xf32> to vector<1x8xf32>
    %74 = vector.shape_cast %73 : vector<1x8xf32> to vector<1x1x8xf32>
    %75 = vector.broadcast %72 : vector<2x64x1xf32> to vector<2x64x8xf32>
    %76 = vector.broadcast %74 : vector<1x1x8xf32> to vector<2x64x8xf32>
    %77 = arith.mulf %75, %76 : vector<2x64x8xf32>
    %78 = arith.addf %70, %77 : vector<2x64x8xf32>
    %79 = vector.extract_strided_slice %0 {offsets = [0, 9], sizes = [2, 64], strides = [1, 1]} : vector<2x74xf32> to vector<2x64xf32>
    %80 = vector.shape_cast %79 : vector<2x64xf32> to vector<2x64x1xf32>
    %81 = vector.extract_strided_slice %1 {offsets = [9, 0], sizes = [1, 8], strides = [1, 1]} : vector<11x8xf32> to vector<1x8xf32>
    %82 = vector.shape_cast %81 : vector<1x8xf32> to vector<1x1x8xf32>
    %83 = vector.broadcast %80 : vector<2x64x1xf32> to vector<2x64x8xf32>
    %84 = vector.broadcast %82 : vector<1x1x8xf32> to vector<2x64x8xf32>
    %85 = arith.mulf %83, %84 : vector<2x64x8xf32>
    %86 = arith.addf %78, %85 : vector<2x64x8xf32>
    %87 = vector.extract_strided_slice %0 {offsets = [0, 10], sizes = [2, 64], strides = [1, 1]} : vector<2x74xf32> to vector<2x64xf32>
    %88 = vector.shape_cast %87 : vector<2x64xf32> to vector<2x64x1xf32>
    %89 = vector.extract_strided_slice %1 {offsets = [10, 0], sizes = [1, 8], strides = [1, 1]} : vector<11x8xf32> to vector<1x8xf32>
    %90 = vector.shape_cast %89 : vector<1x8xf32> to vector<1x1x8xf32>
    %91 = vector.broadcast %88 : vector<2x64x1xf32> to vector<2x64x8xf32>
    %92 = vector.broadcast %90 : vector<1x1x8xf32> to vector<2x64x8xf32>
    %93 = arith.mulf %91, %92 : vector<2x64x8xf32>
    %94 = arith.addf %86, %93 : vector<2x64x8xf32>
    %95 = vector.broadcast %3 : vector<1x1x8xf32> to vector<2x64x8xf32>
    %96 = arith.mulf %94, %95 : vector<2x64x8xf32>
    %97 = vector.broadcast %5 : vector<1x1x8xf32> to vector<2x64x8xf32>
    %98 = arith.addf %96, %97 : vector<2x64x8xf32>
    %cst_7 = arith.constant 0.000000e+00 : f32
    %99 = vector.broadcast %cst_7 : f32 to vector<2x64x8xf32>
    %100 = arith.maximumf %98, %99 : vector<2x64x8xf32>
    %101 = vector.extract_strided_slice %100 {offsets = [0, 0, 0], sizes = [2, 1, 8], strides = [1, 1, 1]} : vector<2x64x8xf32> to vector<2x1x8xf32>
    %102 = vector.shape_cast %101 : vector<2x1x8xf32> to vector<2x8xf32>
    %103 = vector.extract_strided_slice %100 {offsets = [0, 1, 0], sizes = [2, 1, 8], strides = [1, 1, 1]} : vector<2x64x8xf32> to vector<2x1x8xf32>
    %104 = vector.shape_cast %103 : vector<2x1x8xf32> to vector<2x8xf32>
    %105 = arith.maximumf %102, %104 : vector<2x8xf32>
    %106 = vector.extract_strided_slice %100 {offsets = [0, 2, 0], sizes = [2, 1, 8], strides = [1, 1, 1]} : vector<2x64x8xf32> to vector<2x1x8xf32>
    %107 = vector.shape_cast %106 : vector<2x1x8xf32> to vector<2x8xf32>
    %108 = arith.maximumf %105, %107 : vector<2x8xf32>
    %109 = vector.extract_strided_slice %100 {offsets = [0, 3, 0], sizes = [2, 1, 8], strides = [1, 1, 1]} : vector<2x64x8xf32> to vector<2x1x8xf32>
    %110 = vector.shape_cast %109 : vector<2x1x8xf32> to vector<2x8xf32>
    %111 = arith.maximumf %108, %110 : vector<2x8xf32>
    %112 = vector.extract_strided_slice %100 {offsets = [0, 4, 0], sizes = [2, 1, 8], strides = [1, 1, 1]} : vector<2x64x8xf32> to vector<2x1x8xf32>
    %113 = vector.shape_cast %112 : vector<2x1x8xf32> to vector<2x8xf32>
    %114 = vector.extract_strided_slice %100 {offsets = [0, 5, 0], sizes = [2, 1, 8], strides = [1, 1, 1]} : vector<2x64x8xf32> to vector<2x1x8xf32>
    %115 = vector.shape_cast %114 : vector<2x1x8xf32> to vector<2x8xf32>
    %116 = arith.maximumf %113, %115 : vector<2x8xf32>
    %117 = vector.extract_strided_slice %100 {offsets = [0, 6, 0], sizes = [2, 1, 8], strides = [1, 1, 1]} : vector<2x64x8xf32> to vector<2x1x8xf32>
    %118 = vector.shape_cast %117 : vector<2x1x8xf32> to vector<2x8xf32>
    %119 = arith.maximumf %116, %118 : vector<2x8xf32>
    %120 = vector.extract_strided_slice %100 {offsets = [0, 7, 0], sizes = [2, 1, 8], strides = [1, 1, 1]} : vector<2x64x8xf32> to vector<2x1x8xf32>
    %121 = vector.shape_cast %120 : vector<2x1x8xf32> to vector<2x8xf32>
    %122 = arith.maximumf %119, %121 : vector<2x8xf32>
    %123 = vector.extract_strided_slice %100 {offsets = [0, 8, 0], sizes = [2, 1, 8], strides = [1, 1, 1]} : vector<2x64x8xf32> to vector<2x1x8xf32>
    %124 = vector.shape_cast %123 : vector<2x1x8xf32> to vector<2x8xf32>
    %125 = vector.extract_strided_slice %100 {offsets = [0, 9, 0], sizes = [2, 1, 8], strides = [1, 1, 1]} : vector<2x64x8xf32> to vector<2x1x8xf32>
    %126 = vector.shape_cast %125 : vector<2x1x8xf32> to vector<2x8xf32>
    %127 = arith.maximumf %124, %126 : vector<2x8xf32>
    %128 = vector.extract_strided_slice %100 {offsets = [0, 10, 0], sizes = [2, 1, 8], strides = [1, 1, 1]} : vector<2x64x8xf32> to vector<2x1x8xf32>
    %129 = vector.shape_cast %128 : vector<2x1x8xf32> to vector<2x8xf32>
    %130 = arith.maximumf %127, %129 : vector<2x8xf32>
    %131 = vector.extract_strided_slice %100 {offsets = [0, 11, 0], sizes = [2, 1, 8], strides = [1, 1, 1]} : vector<2x64x8xf32> to vector<2x1x8xf32>
    %132 = vector.shape_cast %131 : vector<2x1x8xf32> to vector<2x8xf32>
    %133 = arith.maximumf %130, %132 : vector<2x8xf32>
    %134 = vector.extract_strided_slice %100 {offsets = [0, 12, 0], sizes = [2, 1, 8], strides = [1, 1, 1]} : vector<2x64x8xf32> to vector<2x1x8xf32>
    %135 = vector.shape_cast %134 : vector<2x1x8xf32> to vector<2x8xf32>
    %136 = vector.extract_strided_slice %100 {offsets = [0, 13, 0], sizes = [2, 1, 8], strides = [1, 1, 1]} : vector<2x64x8xf32> to vector<2x1x8xf32>
    %137 = vector.shape_cast %136 : vector<2x1x8xf32> to vector<2x8xf32>
    %138 = arith.maximumf %135, %137 : vector<2x8xf32>
    %139 = vector.extract_strided_slice %100 {offsets = [0, 14, 0], sizes = [2, 1, 8], strides = [1, 1, 1]} : vector<2x64x8xf32> to vector<2x1x8xf32>
    %140 = vector.shape_cast %139 : vector<2x1x8xf32> to vector<2x8xf32>
    %141 = arith.maximumf %138, %140 : vector<2x8xf32>
    %142 = vector.extract_strided_slice %100 {offsets = [0, 15, 0], sizes = [2, 1, 8], strides = [1, 1, 1]} : vector<2x64x8xf32> to vector<2x1x8xf32>
    %143 = vector.shape_cast %142 : vector<2x1x8xf32> to vector<2x8xf32>
    %144 = arith.maximumf %141, %143 : vector<2x8xf32>
    %145 = vector.extract_strided_slice %100 {offsets = [0, 16, 0], sizes = [2, 1, 8], strides = [1, 1, 1]} : vector<2x64x8xf32> to vector<2x1x8xf32>
    %146 = vector.shape_cast %145 : vector<2x1x8xf32> to vector<2x8xf32>
    %147 = vector.extract_strided_slice %100 {offsets = [0, 17, 0], sizes = [2, 1, 8], strides = [1, 1, 1]} : vector<2x64x8xf32> to vector<2x1x8xf32>
    %148 = vector.shape_cast %147 : vector<2x1x8xf32> to vector<2x8xf32>
    %149 = arith.maximumf %146, %148 : vector<2x8xf32>
    %150 = vector.extract_strided_slice %100 {offsets = [0, 18, 0], sizes = [2, 1, 8], strides = [1, 1, 1]} : vector<2x64x8xf32> to vector<2x1x8xf32>
    %151 = vector.shape_cast %150 : vector<2x1x8xf32> to vector<2x8xf32>
    %152 = arith.maximumf %149, %151 : vector<2x8xf32>
    %153 = vector.extract_strided_slice %100 {offsets = [0, 19, 0], sizes = [2, 1, 8], strides = [1, 1, 1]} : vector<2x64x8xf32> to vector<2x1x8xf32>
    %154 = vector.shape_cast %153 : vector<2x1x8xf32> to vector<2x8xf32>
    %155 = arith.maximumf %152, %154 : vector<2x8xf32>
    %156 = vector.extract_strided_slice %100 {offsets = [0, 20, 0], sizes = [2, 1, 8], strides = [1, 1, 1]} : vector<2x64x8xf32> to vector<2x1x8xf32>
    %157 = vector.shape_cast %156 : vector<2x1x8xf32> to vector<2x8xf32>
    %158 = vector.extract_strided_slice %100 {offsets = [0, 21, 0], sizes = [2, 1, 8], strides = [1, 1, 1]} : vector<2x64x8xf32> to vector<2x1x8xf32>
    %159 = vector.shape_cast %158 : vector<2x1x8xf32> to vector<2x8xf32>
    %160 = arith.maximumf %157, %159 : vector<2x8xf32>
    %161 = vector.extract_strided_slice %100 {offsets = [0, 22, 0], sizes = [2, 1, 8], strides = [1, 1, 1]} : vector<2x64x8xf32> to vector<2x1x8xf32>
    %162 = vector.shape_cast %161 : vector<2x1x8xf32> to vector<2x8xf32>
    %163 = arith.maximumf %160, %162 : vector<2x8xf32>
    %164 = vector.extract_strided_slice %100 {offsets = [0, 23, 0], sizes = [2, 1, 8], strides = [1, 1, 1]} : vector<2x64x8xf32> to vector<2x1x8xf32>
    %165 = vector.shape_cast %164 : vector<2x1x8xf32> to vector<2x8xf32>
    %166 = arith.maximumf %163, %165 : vector<2x8xf32>
    %167 = vector.extract_strided_slice %100 {offsets = [0, 24, 0], sizes = [2, 1, 8], strides = [1, 1, 1]} : vector<2x64x8xf32> to vector<2x1x8xf32>
    %168 = vector.shape_cast %167 : vector<2x1x8xf32> to vector<2x8xf32>
    %169 = vector.extract_strided_slice %100 {offsets = [0, 25, 0], sizes = [2, 1, 8], strides = [1, 1, 1]} : vector<2x64x8xf32> to vector<2x1x8xf32>
    %170 = vector.shape_cast %169 : vector<2x1x8xf32> to vector<2x8xf32>
    %171 = arith.maximumf %168, %170 : vector<2x8xf32>
    %172 = vector.extract_strided_slice %100 {offsets = [0, 26, 0], sizes = [2, 1, 8], strides = [1, 1, 1]} : vector<2x64x8xf32> to vector<2x1x8xf32>
    %173 = vector.shape_cast %172 : vector<2x1x8xf32> to vector<2x8xf32>
    %174 = arith.maximumf %171, %173 : vector<2x8xf32>
    %175 = vector.extract_strided_slice %100 {offsets = [0, 27, 0], sizes = [2, 1, 8], strides = [1, 1, 1]} : vector<2x64x8xf32> to vector<2x1x8xf32>
    %176 = vector.shape_cast %175 : vector<2x1x8xf32> to vector<2x8xf32>
    %177 = arith.maximumf %174, %176 : vector<2x8xf32>
    %178 = vector.extract_strided_slice %100 {offsets = [0, 28, 0], sizes = [2, 1, 8], strides = [1, 1, 1]} : vector<2x64x8xf32> to vector<2x1x8xf32>
    %179 = vector.shape_cast %178 : vector<2x1x8xf32> to vector<2x8xf32>
    %180 = vector.extract_strided_slice %100 {offsets = [0, 29, 0], sizes = [2, 1, 8], strides = [1, 1, 1]} : vector<2x64x8xf32> to vector<2x1x8xf32>
    %181 = vector.shape_cast %180 : vector<2x1x8xf32> to vector<2x8xf32>
    %182 = arith.maximumf %179, %181 : vector<2x8xf32>
    %183 = vector.extract_strided_slice %100 {offsets = [0, 30, 0], sizes = [2, 1, 8], strides = [1, 1, 1]} : vector<2x64x8xf32> to vector<2x1x8xf32>
    %184 = vector.shape_cast %183 : vector<2x1x8xf32> to vector<2x8xf32>
    %185 = arith.maximumf %182, %184 : vector<2x8xf32>
    %186 = vector.extract_strided_slice %100 {offsets = [0, 31, 0], sizes = [2, 1, 8], strides = [1, 1, 1]} : vector<2x64x8xf32> to vector<2x1x8xf32>
    %187 = vector.shape_cast %186 : vector<2x1x8xf32> to vector<2x8xf32>
    %188 = arith.maximumf %185, %187 : vector<2x8xf32>
    %189 = vector.extract_strided_slice %100 {offsets = [0, 32, 0], sizes = [2, 1, 8], strides = [1, 1, 1]} : vector<2x64x8xf32> to vector<2x1x8xf32>
    %190 = vector.shape_cast %189 : vector<2x1x8xf32> to vector<2x8xf32>
    %191 = vector.extract_strided_slice %100 {offsets = [0, 33, 0], sizes = [2, 1, 8], strides = [1, 1, 1]} : vector<2x64x8xf32> to vector<2x1x8xf32>
    %192 = vector.shape_cast %191 : vector<2x1x8xf32> to vector<2x8xf32>
    %193 = arith.maximumf %190, %192 : vector<2x8xf32>
    %194 = vector.extract_strided_slice %100 {offsets = [0, 34, 0], sizes = [2, 1, 8], strides = [1, 1, 1]} : vector<2x64x8xf32> to vector<2x1x8xf32>
    %195 = vector.shape_cast %194 : vector<2x1x8xf32> to vector<2x8xf32>
    %196 = arith.maximumf %193, %195 : vector<2x8xf32>
    %197 = vector.extract_strided_slice %100 {offsets = [0, 35, 0], sizes = [2, 1, 8], strides = [1, 1, 1]} : vector<2x64x8xf32> to vector<2x1x8xf32>
    %198 = vector.shape_cast %197 : vector<2x1x8xf32> to vector<2x8xf32>
    %199 = arith.maximumf %196, %198 : vector<2x8xf32>
    %200 = vector.extract_strided_slice %100 {offsets = [0, 36, 0], sizes = [2, 1, 8], strides = [1, 1, 1]} : vector<2x64x8xf32> to vector<2x1x8xf32>
    %201 = vector.shape_cast %200 : vector<2x1x8xf32> to vector<2x8xf32>
    %202 = vector.extract_strided_slice %100 {offsets = [0, 37, 0], sizes = [2, 1, 8], strides = [1, 1, 1]} : vector<2x64x8xf32> to vector<2x1x8xf32>
    %203 = vector.shape_cast %202 : vector<2x1x8xf32> to vector<2x8xf32>
    %204 = arith.maximumf %201, %203 : vector<2x8xf32>
    %205 = vector.extract_strided_slice %100 {offsets = [0, 38, 0], sizes = [2, 1, 8], strides = [1, 1, 1]} : vector<2x64x8xf32> to vector<2x1x8xf32>
    %206 = vector.shape_cast %205 : vector<2x1x8xf32> to vector<2x8xf32>
    %207 = arith.maximumf %204, %206 : vector<2x8xf32>
    %208 = vector.extract_strided_slice %100 {offsets = [0, 39, 0], sizes = [2, 1, 8], strides = [1, 1, 1]} : vector<2x64x8xf32> to vector<2x1x8xf32>
    %209 = vector.shape_cast %208 : vector<2x1x8xf32> to vector<2x8xf32>
    %210 = arith.maximumf %207, %209 : vector<2x8xf32>
    %211 = vector.extract_strided_slice %100 {offsets = [0, 40, 0], sizes = [2, 1, 8], strides = [1, 1, 1]} : vector<2x64x8xf32> to vector<2x1x8xf32>
    %212 = vector.shape_cast %211 : vector<2x1x8xf32> to vector<2x8xf32>
    %213 = vector.extract_strided_slice %100 {offsets = [0, 41, 0], sizes = [2, 1, 8], strides = [1, 1, 1]} : vector<2x64x8xf32> to vector<2x1x8xf32>
    %214 = vector.shape_cast %213 : vector<2x1x8xf32> to vector<2x8xf32>
    %215 = arith.maximumf %212, %214 : vector<2x8xf32>
    %216 = vector.extract_strided_slice %100 {offsets = [0, 42, 0], sizes = [2, 1, 8], strides = [1, 1, 1]} : vector<2x64x8xf32> to vector<2x1x8xf32>
    %217 = vector.shape_cast %216 : vector<2x1x8xf32> to vector<2x8xf32>
    %218 = arith.maximumf %215, %217 : vector<2x8xf32>
    %219 = vector.extract_strided_slice %100 {offsets = [0, 43, 0], sizes = [2, 1, 8], strides = [1, 1, 1]} : vector<2x64x8xf32> to vector<2x1x8xf32>
    %220 = vector.shape_cast %219 : vector<2x1x8xf32> to vector<2x8xf32>
    %221 = arith.maximumf %218, %220 : vector<2x8xf32>
    %222 = vector.extract_strided_slice %100 {offsets = [0, 44, 0], sizes = [2, 1, 8], strides = [1, 1, 1]} : vector<2x64x8xf32> to vector<2x1x8xf32>
    %223 = vector.shape_cast %222 : vector<2x1x8xf32> to vector<2x8xf32>
    %224 = vector.extract_strided_slice %100 {offsets = [0, 45, 0], sizes = [2, 1, 8], strides = [1, 1, 1]} : vector<2x64x8xf32> to vector<2x1x8xf32>
    %225 = vector.shape_cast %224 : vector<2x1x8xf32> to vector<2x8xf32>
    %226 = arith.maximumf %223, %225 : vector<2x8xf32>
    %227 = vector.extract_strided_slice %100 {offsets = [0, 46, 0], sizes = [2, 1, 8], strides = [1, 1, 1]} : vector<2x64x8xf32> to vector<2x1x8xf32>
    %228 = vector.shape_cast %227 : vector<2x1x8xf32> to vector<2x8xf32>
    %229 = arith.maximumf %226, %228 : vector<2x8xf32>
    %230 = vector.extract_strided_slice %100 {offsets = [0, 47, 0], sizes = [2, 1, 8], strides = [1, 1, 1]} : vector<2x64x8xf32> to vector<2x1x8xf32>
    %231 = vector.shape_cast %230 : vector<2x1x8xf32> to vector<2x8xf32>
    %232 = arith.maximumf %229, %231 : vector<2x8xf32>
    %233 = vector.extract_strided_slice %100 {offsets = [0, 48, 0], sizes = [2, 1, 8], strides = [1, 1, 1]} : vector<2x64x8xf32> to vector<2x1x8xf32>
    %234 = vector.shape_cast %233 : vector<2x1x8xf32> to vector<2x8xf32>
    %235 = vector.extract_strided_slice %100 {offsets = [0, 49, 0], sizes = [2, 1, 8], strides = [1, 1, 1]} : vector<2x64x8xf32> to vector<2x1x8xf32>
    %236 = vector.shape_cast %235 : vector<2x1x8xf32> to vector<2x8xf32>
    %237 = arith.maximumf %234, %236 : vector<2x8xf32>
    %238 = vector.extract_strided_slice %100 {offsets = [0, 50, 0], sizes = [2, 1, 8], strides = [1, 1, 1]} : vector<2x64x8xf32> to vector<2x1x8xf32>
    %239 = vector.shape_cast %238 : vector<2x1x8xf32> to vector<2x8xf32>
    %240 = arith.maximumf %237, %239 : vector<2x8xf32>
    %241 = vector.extract_strided_slice %100 {offsets = [0, 51, 0], sizes = [2, 1, 8], strides = [1, 1, 1]} : vector<2x64x8xf32> to vector<2x1x8xf32>
    %242 = vector.shape_cast %241 : vector<2x1x8xf32> to vector<2x8xf32>
    %243 = arith.maximumf %240, %242 : vector<2x8xf32>
    %244 = vector.extract_strided_slice %100 {offsets = [0, 52, 0], sizes = [2, 1, 8], strides = [1, 1, 1]} : vector<2x64x8xf32> to vector<2x1x8xf32>
    %245 = vector.shape_cast %244 : vector<2x1x8xf32> to vector<2x8xf32>
    %246 = vector.extract_strided_slice %100 {offsets = [0, 53, 0], sizes = [2, 1, 8], strides = [1, 1, 1]} : vector<2x64x8xf32> to vector<2x1x8xf32>
    %247 = vector.shape_cast %246 : vector<2x1x8xf32> to vector<2x8xf32>
    %248 = arith.maximumf %245, %247 : vector<2x8xf32>
    %249 = vector.extract_strided_slice %100 {offsets = [0, 54, 0], sizes = [2, 1, 8], strides = [1, 1, 1]} : vector<2x64x8xf32> to vector<2x1x8xf32>
    %250 = vector.shape_cast %249 : vector<2x1x8xf32> to vector<2x8xf32>
    %251 = arith.maximumf %248, %250 : vector<2x8xf32>
    %252 = vector.extract_strided_slice %100 {offsets = [0, 55, 0], sizes = [2, 1, 8], strides = [1, 1, 1]} : vector<2x64x8xf32> to vector<2x1x8xf32>
    %253 = vector.shape_cast %252 : vector<2x1x8xf32> to vector<2x8xf32>
    %254 = arith.maximumf %251, %253 : vector<2x8xf32>
    %255 = vector.extract_strided_slice %100 {offsets = [0, 56, 0], sizes = [2, 1, 8], strides = [1, 1, 1]} : vector<2x64x8xf32> to vector<2x1x8xf32>
    %256 = vector.shape_cast %255 : vector<2x1x8xf32> to vector<2x8xf32>
    %257 = vector.extract_strided_slice %100 {offsets = [0, 57, 0], sizes = [2, 1, 8], strides = [1, 1, 1]} : vector<2x64x8xf32> to vector<2x1x8xf32>
    %258 = vector.shape_cast %257 : vector<2x1x8xf32> to vector<2x8xf32>
    %259 = arith.maximumf %256, %258 : vector<2x8xf32>
    %260 = vector.extract_strided_slice %100 {offsets = [0, 58, 0], sizes = [2, 1, 8], strides = [1, 1, 1]} : vector<2x64x8xf32> to vector<2x1x8xf32>
    %261 = vector.shape_cast %260 : vector<2x1x8xf32> to vector<2x8xf32>
    %262 = arith.maximumf %259, %261 : vector<2x8xf32>
    %263 = vector.extract_strided_slice %100 {offsets = [0, 59, 0], sizes = [2, 1, 8], strides = [1, 1, 1]} : vector<2x64x8xf32> to vector<2x1x8xf32>
    %264 = vector.shape_cast %263 : vector<2x1x8xf32> to vector<2x8xf32>
    %265 = arith.maximumf %262, %264 : vector<2x8xf32>
    %266 = vector.extract_strided_slice %100 {offsets = [0, 60, 0], sizes = [2, 1, 8], strides = [1, 1, 1]} : vector<2x64x8xf32> to vector<2x1x8xf32>
    %267 = vector.shape_cast %266 : vector<2x1x8xf32> to vector<2x8xf32>
    %268 = vector.extract_strided_slice %100 {offsets = [0, 61, 0], sizes = [2, 1, 8], strides = [1, 1, 1]} : vector<2x64x8xf32> to vector<2x1x8xf32>
    %269 = vector.shape_cast %268 : vector<2x1x8xf32> to vector<2x8xf32>
    %270 = arith.maximumf %267, %269 : vector<2x8xf32>
    %271 = vector.extract_strided_slice %100 {offsets = [0, 62, 0], sizes = [2, 1, 8], strides = [1, 1, 1]} : vector<2x64x8xf32> to vector<2x1x8xf32>
    %272 = vector.shape_cast %271 : vector<2x1x8xf32> to vector<2x8xf32>
    %273 = arith.maximumf %270, %272 : vector<2x8xf32>
    %274 = vector.extract_strided_slice %100 {offsets = [0, 63, 0], sizes = [2, 1, 8], strides = [1, 1, 1]} : vector<2x64x8xf32> to vector<2x1x8xf32>
    %275 = vector.shape_cast %274 : vector<2x1x8xf32> to vector<2x8xf32>
    %276 = arith.maximumf %273, %275 : vector<2x8xf32>
    %277 = tpu.concatenate %111, %122, %133, %144, %155, %166, %177, %188, %199, %210, %221, %232, %243, %254, %265, %276 in 0 : vector<2x8xf32>, vector<2x8xf32>, vector<2x8xf32>, vector<2x8xf32>, vector<2x8xf32>, vector<2x8xf32>, vector<2x8xf32>, vector<2x8xf32>, vector<2x8xf32>, vector<2x8xf32>, vector<2x8xf32>, vector<2x8xf32>, vector<2x8xf32>, vector<2x8xf32>, vector<2x8xf32>, vector<2x8xf32> -> vector<32x8xf32>
    %278 = tpu.concatenate %276, %265, %254, %243, %232, %221, %210, %199, %188, %177, %166, %155, %144, %133, %122, %111 in 0 : vector<2x8xf32>, vector<2x8xf32>, vector<2x8xf32>, vector<2x8xf32>, vector<2x8xf32>, vector<2x8xf32>, vector<2x8xf32>, vector<2x8xf32>, vector<2x8xf32>, vector<2x8xf32>, vector<2x8xf32>, vector<2x8xf32>, vector<2x8xf32>, vector<2x8xf32>, vector<2x8xf32>, vector<2x8xf32> -> vector<32x8xf32>
    %c0_8 = arith.constant 0 : index
    %c0_9 = arith.constant 0 : index
    %279 = vector.load %arg4[%c0_8, %c0_9] : memref<8x128xf32, #tpu.memory_space<vmem>>, vector<8x128xf32>
    %c0_10 = arith.constant 0 : index
    %c0_11 = arith.constant 0 : index
    %280 = vector.load %arg5[%c0_10, %c0_11] : memref<8x128xf32, #tpu.memory_space<vmem>>, vector<8x128xf32>
    %c0_12 = arith.constant 0 : index
    %c0_13 = arith.constant 0 : index
    %281 = vector.load %arg6[%c0_12, %c0_13] : memref<32x128xf32, #tpu.memory_space<vmem>>, vector<32x128xf32>
    %c0_14 = arith.constant 0 : index
    %c0_15 = arith.constant 0 : index
    %282 = vector.load %arg7[%c0_14, %c0_15] : memref<1x128xf32, #tpu.memory_space<vmem>>, vector<1x128xf32>
    %cst_16 = arith.constant dense<0.000000e+00> : vector<32x128xf32>
    %283 = tpu.matmul %277, %279, %cst_16 {dimension_numbers = #tpu.dot_dimension_numbers<[1], [0], [0], [1], [0, 0, 1, 1], [], []>} : vector<32x8xf32>, vector<8x128xf32>, vector<32x128xf32> -> vector<32x128xf32>
    %cst_17 = arith.constant dense<0.000000e+00> : vector<32x128xf32>
    %284 = tpu.matmul %278, %280, %cst_17 {dimension_numbers = #tpu.dot_dimension_numbers<[1], [0], [0], [1], [0, 0, 1, 1], [], []>} : vector<32x8xf32>, vector<8x128xf32>, vector<32x128xf32> -> vector<32x128xf32>
    %285 = arith.addf %283, %284 : vector<32x128xf32>
    %286 = vector.broadcast %282 : vector<1x128xf32> to vector<32x128xf32>
    %287 = arith.addf %285, %286 : vector<32x128xf32>
    %cst_18 = arith.constant 0.000000e+00 : f32
    %288 = vector.broadcast %cst_18 : f32 to vector<2x32xf32>
    %cst_19 = arith.constant 0.000000e+00 : f32
    %289 = vector.broadcast %cst_19 : f32 to vector<2x32xf32>
    %290 = vector.extract_strided_slice %287 {offsets = [0, 0], sizes = [2, 128], strides = [1, 1]} : vector<32x128xf32> to vector<2x128xf32>
    %cst_20 = arith.constant dense<0.000000e+00> : vector<2x128xf32>
    %291 = tpu.matmul %288, %281, %cst_20 {dimension_numbers = #tpu.dot_dimension_numbers<[1], [0], [0], [1], [0, 0, 1, 1], [], []>} : vector<2x32xf32>, vector<32x128xf32>, vector<2x128xf32> -> vector<2x128xf32>
    %292 = arith.addf %290, %291 : vector<2x128xf32>
    %293 = arith.negf %292 : vector<2x128xf32>
    %294 = math.exp %293 : vector<2x128xf32>
    %cst_21 = arith.constant 1.000000e+00 : f32
    %295 = vector.broadcast %cst_21 : f32 to vector<2x128xf32>
    %296 = arith.addf %295, %294 : vector<2x128xf32>
    %297 = arith.divf %295, %296 : vector<2x128xf32>
    %298 = math.tanh %292 : vector<2x128xf32>
    %299 = vector.extract_strided_slice %297 {offsets = [0, 0], sizes = [2, 32], strides = [1, 1]} : vector<2x128xf32> to vector<2x32xf32>
    %300 = vector.extract_strided_slice %297 {offsets = [0, 32], sizes = [2, 32], strides = [1, 1]} : vector<2x128xf32> to vector<2x32xf32>
    %301 = vector.extract_strided_slice %298 {offsets = [0, 64], sizes = [2, 32], strides = [1, 1]} : vector<2x128xf32> to vector<2x32xf32>
    %302 = vector.extract_strided_slice %297 {offsets = [0, 96], sizes = [2, 32], strides = [1, 1]} : vector<2x128xf32> to vector<2x32xf32>
    %303 = arith.mulf %300, %289 : vector<2x32xf32>
    %304 = arith.mulf %299, %301 : vector<2x32xf32>
    %305 = arith.addf %303, %304 : vector<2x32xf32>
    %306 = math.tanh %305 : vector<2x32xf32>
    %307 = arith.mulf %302, %306 : vector<2x32xf32>
    %308 = vector.extract_strided_slice %287 {offsets = [2, 0], sizes = [2, 128], strides = [1, 1]} : vector<32x128xf32> to vector<2x128xf32>
    %cst_22 = arith.constant dense<0.000000e+00> : vector<2x128xf32>
    %309 = tpu.matmul %307, %281, %cst_22 {dimension_numbers = #tpu.dot_dimension_numbers<[1], [0], [0], [1], [0, 0, 1, 1], [], []>} : vector<2x32xf32>, vector<32x128xf32>, vector<2x128xf32> -> vector<2x128xf32>
    %310 = arith.addf %308, %309 : vector<2x128xf32>
    %311 = arith.negf %310 : vector<2x128xf32>
    %312 = math.exp %311 : vector<2x128xf32>
    %cst_23 = arith.constant 1.000000e+00 : f32
    %313 = vector.broadcast %cst_23 : f32 to vector<2x128xf32>
    %314 = arith.addf %313, %312 : vector<2x128xf32>
    %315 = arith.divf %313, %314 : vector<2x128xf32>
    %316 = math.tanh %310 : vector<2x128xf32>
    %317 = vector.extract_strided_slice %315 {offsets = [0, 0], sizes = [2, 32], strides = [1, 1]} : vector<2x128xf32> to vector<2x32xf32>
    %318 = vector.extract_strided_slice %315 {offsets = [0, 32], sizes = [2, 32], strides = [1, 1]} : vector<2x128xf32> to vector<2x32xf32>
    %319 = vector.extract_strided_slice %316 {offsets = [0, 64], sizes = [2, 32], strides = [1, 1]} : vector<2x128xf32> to vector<2x32xf32>
    %320 = vector.extract_strided_slice %315 {offsets = [0, 96], sizes = [2, 32], strides = [1, 1]} : vector<2x128xf32> to vector<2x32xf32>
    %321 = arith.mulf %318, %305 : vector<2x32xf32>
    %322 = arith.mulf %317, %319 : vector<2x32xf32>
    %323 = arith.addf %321, %322 : vector<2x32xf32>
    %324 = math.tanh %323 : vector<2x32xf32>
    %325 = arith.mulf %320, %324 : vector<2x32xf32>
    %326 = vector.extract_strided_slice %287 {offsets = [4, 0], sizes = [2, 128], strides = [1, 1]} : vector<32x128xf32> to vector<2x128xf32>
    %cst_24 = arith.constant dense<0.000000e+00> : vector<2x128xf32>
    %327 = tpu.matmul %325, %281, %cst_24 {dimension_numbers = #tpu.dot_dimension_numbers<[1], [0], [0], [1], [0, 0, 1, 1], [], []>} : vector<2x32xf32>, vector<32x128xf32>, vector<2x128xf32> -> vector<2x128xf32>
    %328 = arith.addf %326, %327 : vector<2x128xf32>
    %329 = arith.negf %328 : vector<2x128xf32>
    %330 = math.exp %329 : vector<2x128xf32>
    %cst_25 = arith.constant 1.000000e+00 : f32
    %331 = vector.broadcast %cst_25 : f32 to vector<2x128xf32>
    %332 = arith.addf %331, %330 : vector<2x128xf32>
    %333 = arith.divf %331, %332 : vector<2x128xf32>
    %334 = math.tanh %328 : vector<2x128xf32>
    %335 = vector.extract_strided_slice %333 {offsets = [0, 0], sizes = [2, 32], strides = [1, 1]} : vector<2x128xf32> to vector<2x32xf32>
    %336 = vector.extract_strided_slice %333 {offsets = [0, 32], sizes = [2, 32], strides = [1, 1]} : vector<2x128xf32> to vector<2x32xf32>
    %337 = vector.extract_strided_slice %334 {offsets = [0, 64], sizes = [2, 32], strides = [1, 1]} : vector<2x128xf32> to vector<2x32xf32>
    %338 = vector.extract_strided_slice %333 {offsets = [0, 96], sizes = [2, 32], strides = [1, 1]} : vector<2x128xf32> to vector<2x32xf32>
    %339 = arith.mulf %336, %323 : vector<2x32xf32>
    %340 = arith.mulf %335, %337 : vector<2x32xf32>
    %341 = arith.addf %339, %340 : vector<2x32xf32>
    %342 = math.tanh %341 : vector<2x32xf32>
    %343 = arith.mulf %338, %342 : vector<2x32xf32>
    %344 = vector.extract_strided_slice %287 {offsets = [6, 0], sizes = [2, 128], strides = [1, 1]} : vector<32x128xf32> to vector<2x128xf32>
    %cst_26 = arith.constant dense<0.000000e+00> : vector<2x128xf32>
    %345 = tpu.matmul %343, %281, %cst_26 {dimension_numbers = #tpu.dot_dimension_numbers<[1], [0], [0], [1], [0, 0, 1, 1], [], []>} : vector<2x32xf32>, vector<32x128xf32>, vector<2x128xf32> -> vector<2x128xf32>
    %346 = arith.addf %344, %345 : vector<2x128xf32>
    %347 = arith.negf %346 : vector<2x128xf32>
    %348 = math.exp %347 : vector<2x128xf32>
    %cst_27 = arith.constant 1.000000e+00 : f32
    %349 = vector.broadcast %cst_27 : f32 to vector<2x128xf32>
    %350 = arith.addf %349, %348 : vector<2x128xf32>
    %351 = arith.divf %349, %350 : vector<2x128xf32>
    %352 = math.tanh %346 : vector<2x128xf32>
    %353 = vector.extract_strided_slice %351 {offsets = [0, 0], sizes = [2, 32], strides = [1, 1]} : vector<2x128xf32> to vector<2x32xf32>
    %354 = vector.extract_strided_slice %351 {offsets = [0, 32], sizes = [2, 32], strides = [1, 1]} : vector<2x128xf32> to vector<2x32xf32>
    %355 = vector.extract_strided_slice %352 {offsets = [0, 64], sizes = [2, 32], strides = [1, 1]} : vector<2x128xf32> to vector<2x32xf32>
    %356 = vector.extract_strided_slice %351 {offsets = [0, 96], sizes = [2, 32], strides = [1, 1]} : vector<2x128xf32> to vector<2x32xf32>
    %357 = arith.mulf %354, %341 : vector<2x32xf32>
    %358 = arith.mulf %353, %355 : vector<2x32xf32>
    %359 = arith.addf %357, %358 : vector<2x32xf32>
    %360 = math.tanh %359 : vector<2x32xf32>
    %361 = arith.mulf %356, %360 : vector<2x32xf32>
    %362 = vector.extract_strided_slice %287 {offsets = [8, 0], sizes = [2, 128], strides = [1, 1]} : vector<32x128xf32> to vector<2x128xf32>
    %cst_28 = arith.constant dense<0.000000e+00> : vector<2x128xf32>
    %363 = tpu.matmul %361, %281, %cst_28 {dimension_numbers = #tpu.dot_dimension_numbers<[1], [0], [0], [1], [0, 0, 1, 1], [], []>} : vector<2x32xf32>, vector<32x128xf32>, vector<2x128xf32> -> vector<2x128xf32>
    %364 = arith.addf %362, %363 : vector<2x128xf32>
    %365 = arith.negf %364 : vector<2x128xf32>
    %366 = math.exp %365 : vector<2x128xf32>
    %cst_29 = arith.constant 1.000000e+00 : f32
    %367 = vector.broadcast %cst_29 : f32 to vector<2x128xf32>
    %368 = arith.addf %367, %366 : vector<2x128xf32>
    %369 = arith.divf %367, %368 : vector<2x128xf32>
    %370 = math.tanh %364 : vector<2x128xf32>
    %371 = vector.extract_strided_slice %369 {offsets = [0, 0], sizes = [2, 32], strides = [1, 1]} : vector<2x128xf32> to vector<2x32xf32>
    %372 = vector.extract_strided_slice %369 {offsets = [0, 32], sizes = [2, 32], strides = [1, 1]} : vector<2x128xf32> to vector<2x32xf32>
    %373 = vector.extract_strided_slice %370 {offsets = [0, 64], sizes = [2, 32], strides = [1, 1]} : vector<2x128xf32> to vector<2x32xf32>
    %374 = vector.extract_strided_slice %369 {offsets = [0, 96], sizes = [2, 32], strides = [1, 1]} : vector<2x128xf32> to vector<2x32xf32>
    %375 = arith.mulf %372, %359 : vector<2x32xf32>
    %376 = arith.mulf %371, %373 : vector<2x32xf32>
    %377 = arith.addf %375, %376 : vector<2x32xf32>
    %378 = math.tanh %377 : vector<2x32xf32>
    %379 = arith.mulf %374, %378 : vector<2x32xf32>
    %380 = vector.extract_strided_slice %287 {offsets = [10, 0], sizes = [2, 128], strides = [1, 1]} : vector<32x128xf32> to vector<2x128xf32>
    %cst_30 = arith.constant dense<0.000000e+00> : vector<2x128xf32>
    %381 = tpu.matmul %379, %281, %cst_30 {dimension_numbers = #tpu.dot_dimension_numbers<[1], [0], [0], [1], [0, 0, 1, 1], [], []>} : vector<2x32xf32>, vector<32x128xf32>, vector<2x128xf32> -> vector<2x128xf32>
    %382 = arith.addf %380, %381 : vector<2x128xf32>
    %383 = arith.negf %382 : vector<2x128xf32>
    %384 = math.exp %383 : vector<2x128xf32>
    %cst_31 = arith.constant 1.000000e+00 : f32
    %385 = vector.broadcast %cst_31 : f32 to vector<2x128xf32>
    %386 = arith.addf %385, %384 : vector<2x128xf32>
    %387 = arith.divf %385, %386 : vector<2x128xf32>
    %388 = math.tanh %382 : vector<2x128xf32>
    %389 = vector.extract_strided_slice %387 {offsets = [0, 0], sizes = [2, 32], strides = [1, 1]} : vector<2x128xf32> to vector<2x32xf32>
    %390 = vector.extract_strided_slice %387 {offsets = [0, 32], sizes = [2, 32], strides = [1, 1]} : vector<2x128xf32> to vector<2x32xf32>
    %391 = vector.extract_strided_slice %388 {offsets = [0, 64], sizes = [2, 32], strides = [1, 1]} : vector<2x128xf32> to vector<2x32xf32>
    %392 = vector.extract_strided_slice %387 {offsets = [0, 96], sizes = [2, 32], strides = [1, 1]} : vector<2x128xf32> to vector<2x32xf32>
    %393 = arith.mulf %390, %377 : vector<2x32xf32>
    %394 = arith.mulf %389, %391 : vector<2x32xf32>
    %395 = arith.addf %393, %394 : vector<2x32xf32>
    %396 = math.tanh %395 : vector<2x32xf32>
    %397 = arith.mulf %392, %396 : vector<2x32xf32>
    %398 = vector.extract_strided_slice %287 {offsets = [12, 0], sizes = [2, 128], strides = [1, 1]} : vector<32x128xf32> to vector<2x128xf32>
    %cst_32 = arith.constant dense<0.000000e+00> : vector<2x128xf32>
    %399 = tpu.matmul %397, %281, %cst_32 {dimension_numbers = #tpu.dot_dimension_numbers<[1], [0], [0], [1], [0, 0, 1, 1], [], []>} : vector<2x32xf32>, vector<32x128xf32>, vector<2x128xf32> -> vector<2x128xf32>
    %400 = arith.addf %398, %399 : vector<2x128xf32>
    %401 = arith.negf %400 : vector<2x128xf32>
    %402 = math.exp %401 : vector<2x128xf32>
    %cst_33 = arith.constant 1.000000e+00 : f32
    %403 = vector.broadcast %cst_33 : f32 to vector<2x128xf32>
    %404 = arith.addf %403, %402 : vector<2x128xf32>
    %405 = arith.divf %403, %404 : vector<2x128xf32>
    %406 = math.tanh %400 : vector<2x128xf32>
    %407 = vector.extract_strided_slice %405 {offsets = [0, 0], sizes = [2, 32], strides = [1, 1]} : vector<2x128xf32> to vector<2x32xf32>
    %408 = vector.extract_strided_slice %405 {offsets = [0, 32], sizes = [2, 32], strides = [1, 1]} : vector<2x128xf32> to vector<2x32xf32>
    %409 = vector.extract_strided_slice %406 {offsets = [0, 64], sizes = [2, 32], strides = [1, 1]} : vector<2x128xf32> to vector<2x32xf32>
    %410 = vector.extract_strided_slice %405 {offsets = [0, 96], sizes = [2, 32], strides = [1, 1]} : vector<2x128xf32> to vector<2x32xf32>
    %411 = arith.mulf %408, %395 : vector<2x32xf32>
    %412 = arith.mulf %407, %409 : vector<2x32xf32>
    %413 = arith.addf %411, %412 : vector<2x32xf32>
    %414 = math.tanh %413 : vector<2x32xf32>
    %415 = arith.mulf %410, %414 : vector<2x32xf32>
    %416 = vector.extract_strided_slice %287 {offsets = [14, 0], sizes = [2, 128], strides = [1, 1]} : vector<32x128xf32> to vector<2x128xf32>
    %cst_34 = arith.constant dense<0.000000e+00> : vector<2x128xf32>
    %417 = tpu.matmul %415, %281, %cst_34 {dimension_numbers = #tpu.dot_dimension_numbers<[1], [0], [0], [1], [0, 0, 1, 1], [], []>} : vector<2x32xf32>, vector<32x128xf32>, vector<2x128xf32> -> vector<2x128xf32>
    %418 = arith.addf %416, %417 : vector<2x128xf32>
    %419 = arith.negf %418 : vector<2x128xf32>
    %420 = math.exp %419 : vector<2x128xf32>
    %cst_35 = arith.constant 1.000000e+00 : f32
    %421 = vector.broadcast %cst_35 : f32 to vector<2x128xf32>
    %422 = arith.addf %421, %420 : vector<2x128xf32>
    %423 = arith.divf %421, %422 : vector<2x128xf32>
    %424 = math.tanh %418 : vector<2x128xf32>
    %425 = vector.extract_strided_slice %423 {offsets = [0, 0], sizes = [2, 32], strides = [1, 1]} : vector<2x128xf32> to vector<2x32xf32>
    %426 = vector.extract_strided_slice %423 {offsets = [0, 32], sizes = [2, 32], strides = [1, 1]} : vector<2x128xf32> to vector<2x32xf32>
    %427 = vector.extract_strided_slice %424 {offsets = [0, 64], sizes = [2, 32], strides = [1, 1]} : vector<2x128xf32> to vector<2x32xf32>
    %428 = vector.extract_strided_slice %423 {offsets = [0, 96], sizes = [2, 32], strides = [1, 1]} : vector<2x128xf32> to vector<2x32xf32>
    %429 = arith.mulf %426, %413 : vector<2x32xf32>
    %430 = arith.mulf %425, %427 : vector<2x32xf32>
    %431 = arith.addf %429, %430 : vector<2x32xf32>
    %432 = math.tanh %431 : vector<2x32xf32>
    %433 = arith.mulf %428, %432 : vector<2x32xf32>
    %434 = vector.extract_strided_slice %287 {offsets = [16, 0], sizes = [2, 128], strides = [1, 1]} : vector<32x128xf32> to vector<2x128xf32>
    %cst_36 = arith.constant dense<0.000000e+00> : vector<2x128xf32>
    %435 = tpu.matmul %433, %281, %cst_36 {dimension_numbers = #tpu.dot_dimension_numbers<[1], [0], [0], [1], [0, 0, 1, 1], [], []>} : vector<2x32xf32>, vector<32x128xf32>, vector<2x128xf32> -> vector<2x128xf32>
    %436 = arith.addf %434, %435 : vector<2x128xf32>
    %437 = arith.negf %436 : vector<2x128xf32>
    %438 = math.exp %437 : vector<2x128xf32>
    %cst_37 = arith.constant 1.000000e+00 : f32
    %439 = vector.broadcast %cst_37 : f32 to vector<2x128xf32>
    %440 = arith.addf %439, %438 : vector<2x128xf32>
    %441 = arith.divf %439, %440 : vector<2x128xf32>
    %442 = math.tanh %436 : vector<2x128xf32>
    %443 = vector.extract_strided_slice %441 {offsets = [0, 0], sizes = [2, 32], strides = [1, 1]} : vector<2x128xf32> to vector<2x32xf32>
    %444 = vector.extract_strided_slice %441 {offsets = [0, 32], sizes = [2, 32], strides = [1, 1]} : vector<2x128xf32> to vector<2x32xf32>
    %445 = vector.extract_strided_slice %442 {offsets = [0, 64], sizes = [2, 32], strides = [1, 1]} : vector<2x128xf32> to vector<2x32xf32>
    %446 = vector.extract_strided_slice %441 {offsets = [0, 96], sizes = [2, 32], strides = [1, 1]} : vector<2x128xf32> to vector<2x32xf32>
    %447 = arith.mulf %444, %431 : vector<2x32xf32>
    %448 = arith.mulf %443, %445 : vector<2x32xf32>
    %449 = arith.addf %447, %448 : vector<2x32xf32>
    %450 = math.tanh %449 : vector<2x32xf32>
    %451 = arith.mulf %446, %450 : vector<2x32xf32>
    %452 = vector.extract_strided_slice %287 {offsets = [18, 0], sizes = [2, 128], strides = [1, 1]} : vector<32x128xf32> to vector<2x128xf32>
    %cst_38 = arith.constant dense<0.000000e+00> : vector<2x128xf32>
    %453 = tpu.matmul %451, %281, %cst_38 {dimension_numbers = #tpu.dot_dimension_numbers<[1], [0], [0], [1], [0, 0, 1, 1], [], []>} : vector<2x32xf32>, vector<32x128xf32>, vector<2x128xf32> -> vector<2x128xf32>
    %454 = arith.addf %452, %453 : vector<2x128xf32>
    %455 = arith.negf %454 : vector<2x128xf32>
    %456 = math.exp %455 : vector<2x128xf32>
    %cst_39 = arith.constant 1.000000e+00 : f32
    %457 = vector.broadcast %cst_39 : f32 to vector<2x128xf32>
    %458 = arith.addf %457, %456 : vector<2x128xf32>
    %459 = arith.divf %457, %458 : vector<2x128xf32>
    %460 = math.tanh %454 : vector<2x128xf32>
    %461 = vector.extract_strided_slice %459 {offsets = [0, 0], sizes = [2, 32], strides = [1, 1]} : vector<2x128xf32> to vector<2x32xf32>
    %462 = vector.extract_strided_slice %459 {offsets = [0, 32], sizes = [2, 32], strides = [1, 1]} : vector<2x128xf32> to vector<2x32xf32>
    %463 = vector.extract_strided_slice %460 {offsets = [0, 64], sizes = [2, 32], strides = [1, 1]} : vector<2x128xf32> to vector<2x32xf32>
    %464 = vector.extract_strided_slice %459 {offsets = [0, 96], sizes = [2, 32], strides = [1, 1]} : vector<2x128xf32> to vector<2x32xf32>
    %465 = arith.mulf %462, %449 : vector<2x32xf32>
    %466 = arith.mulf %461, %463 : vector<2x32xf32>
    %467 = arith.addf %465, %466 : vector<2x32xf32>
    %468 = math.tanh %467 : vector<2x32xf32>
    %469 = arith.mulf %464, %468 : vector<2x32xf32>
    %470 = vector.extract_strided_slice %287 {offsets = [20, 0], sizes = [2, 128], strides = [1, 1]} : vector<32x128xf32> to vector<2x128xf32>
    %cst_40 = arith.constant dense<0.000000e+00> : vector<2x128xf32>
    %471 = tpu.matmul %469, %281, %cst_40 {dimension_numbers = #tpu.dot_dimension_numbers<[1], [0], [0], [1], [0, 0, 1, 1], [], []>} : vector<2x32xf32>, vector<32x128xf32>, vector<2x128xf32> -> vector<2x128xf32>
    %472 = arith.addf %470, %471 : vector<2x128xf32>
    %473 = arith.negf %472 : vector<2x128xf32>
    %474 = math.exp %473 : vector<2x128xf32>
    %cst_41 = arith.constant 1.000000e+00 : f32
    %475 = vector.broadcast %cst_41 : f32 to vector<2x128xf32>
    %476 = arith.addf %475, %474 : vector<2x128xf32>
    %477 = arith.divf %475, %476 : vector<2x128xf32>
    %478 = math.tanh %472 : vector<2x128xf32>
    %479 = vector.extract_strided_slice %477 {offsets = [0, 0], sizes = [2, 32], strides = [1, 1]} : vector<2x128xf32> to vector<2x32xf32>
    %480 = vector.extract_strided_slice %477 {offsets = [0, 32], sizes = [2, 32], strides = [1, 1]} : vector<2x128xf32> to vector<2x32xf32>
    %481 = vector.extract_strided_slice %478 {offsets = [0, 64], sizes = [2, 32], strides = [1, 1]} : vector<2x128xf32> to vector<2x32xf32>
    %482 = vector.extract_strided_slice %477 {offsets = [0, 96], sizes = [2, 32], strides = [1, 1]} : vector<2x128xf32> to vector<2x32xf32>
    %483 = arith.mulf %480, %467 : vector<2x32xf32>
    %484 = arith.mulf %479, %481 : vector<2x32xf32>
    %485 = arith.addf %483, %484 : vector<2x32xf32>
    %486 = math.tanh %485 : vector<2x32xf32>
    %487 = arith.mulf %482, %486 : vector<2x32xf32>
    %488 = vector.extract_strided_slice %287 {offsets = [22, 0], sizes = [2, 128], strides = [1, 1]} : vector<32x128xf32> to vector<2x128xf32>
    %cst_42 = arith.constant dense<0.000000e+00> : vector<2x128xf32>
    %489 = tpu.matmul %487, %281, %cst_42 {dimension_numbers = #tpu.dot_dimension_numbers<[1], [0], [0], [1], [0, 0, 1, 1], [], []>} : vector<2x32xf32>, vector<32x128xf32>, vector<2x128xf32> -> vector<2x128xf32>
    %490 = arith.addf %488, %489 : vector<2x128xf32>
    %491 = arith.negf %490 : vector<2x128xf32>
    %492 = math.exp %491 : vector<2x128xf32>
    %cst_43 = arith.constant 1.000000e+00 : f32
    %493 = vector.broadcast %cst_43 : f32 to vector<2x128xf32>
    %494 = arith.addf %493, %492 : vector<2x128xf32>
    %495 = arith.divf %493, %494 : vector<2x128xf32>
    %496 = math.tanh %490 : vector<2x128xf32>
    %497 = vector.extract_strided_slice %495 {offsets = [0, 0], sizes = [2, 32], strides = [1, 1]} : vector<2x128xf32> to vector<2x32xf32>
    %498 = vector.extract_strided_slice %495 {offsets = [0, 32], sizes = [2, 32], strides = [1, 1]} : vector<2x128xf32> to vector<2x32xf32>
    %499 = vector.extract_strided_slice %496 {offsets = [0, 64], sizes = [2, 32], strides = [1, 1]} : vector<2x128xf32> to vector<2x32xf32>
    %500 = vector.extract_strided_slice %495 {offsets = [0, 96], sizes = [2, 32], strides = [1, 1]} : vector<2x128xf32> to vector<2x32xf32>
    %501 = arith.mulf %498, %485 : vector<2x32xf32>
    %502 = arith.mulf %497, %499 : vector<2x32xf32>
    %503 = arith.addf %501, %502 : vector<2x32xf32>
    %504 = math.tanh %503 : vector<2x32xf32>
    %505 = arith.mulf %500, %504 : vector<2x32xf32>
    %506 = vector.extract_strided_slice %287 {offsets = [24, 0], sizes = [2, 128], strides = [1, 1]} : vector<32x128xf32> to vector<2x128xf32>
    %cst_44 = arith.constant dense<0.000000e+00> : vector<2x128xf32>
    %507 = tpu.matmul %505, %281, %cst_44 {dimension_numbers = #tpu.dot_dimension_numbers<[1], [0], [0], [1], [0, 0, 1, 1], [], []>} : vector<2x32xf32>, vector<32x128xf32>, vector<2x128xf32> -> vector<2x128xf32>
    %508 = arith.addf %506, %507 : vector<2x128xf32>
    %509 = arith.negf %508 : vector<2x128xf32>
    %510 = math.exp %509 : vector<2x128xf32>
    %cst_45 = arith.constant 1.000000e+00 : f32
    %511 = vector.broadcast %cst_45 : f32 to vector<2x128xf32>
    %512 = arith.addf %511, %510 : vector<2x128xf32>
    %513 = arith.divf %511, %512 : vector<2x128xf32>
    %514 = math.tanh %508 : vector<2x128xf32>
    %515 = vector.extract_strided_slice %513 {offsets = [0, 0], sizes = [2, 32], strides = [1, 1]} : vector<2x128xf32> to vector<2x32xf32>
    %516 = vector.extract_strided_slice %513 {offsets = [0, 32], sizes = [2, 32], strides = [1, 1]} : vector<2x128xf32> to vector<2x32xf32>
    %517 = vector.extract_strided_slice %514 {offsets = [0, 64], sizes = [2, 32], strides = [1, 1]} : vector<2x128xf32> to vector<2x32xf32>
    %518 = vector.extract_strided_slice %513 {offsets = [0, 96], sizes = [2, 32], strides = [1, 1]} : vector<2x128xf32> to vector<2x32xf32>
    %519 = arith.mulf %516, %503 : vector<2x32xf32>
    %520 = arith.mulf %515, %517 : vector<2x32xf32>
    %521 = arith.addf %519, %520 : vector<2x32xf32>
    %522 = math.tanh %521 : vector<2x32xf32>
    %523 = arith.mulf %518, %522 : vector<2x32xf32>
    %524 = vector.extract_strided_slice %287 {offsets = [26, 0], sizes = [2, 128], strides = [1, 1]} : vector<32x128xf32> to vector<2x128xf32>
    %cst_46 = arith.constant dense<0.000000e+00> : vector<2x128xf32>
    %525 = tpu.matmul %523, %281, %cst_46 {dimension_numbers = #tpu.dot_dimension_numbers<[1], [0], [0], [1], [0, 0, 1, 1], [], []>} : vector<2x32xf32>, vector<32x128xf32>, vector<2x128xf32> -> vector<2x128xf32>
    %526 = arith.addf %524, %525 : vector<2x128xf32>
    %527 = arith.negf %526 : vector<2x128xf32>
    %528 = math.exp %527 : vector<2x128xf32>
    %cst_47 = arith.constant 1.000000e+00 : f32
    %529 = vector.broadcast %cst_47 : f32 to vector<2x128xf32>
    %530 = arith.addf %529, %528 : vector<2x128xf32>
    %531 = arith.divf %529, %530 : vector<2x128xf32>
    %532 = math.tanh %526 : vector<2x128xf32>
    %533 = vector.extract_strided_slice %531 {offsets = [0, 0], sizes = [2, 32], strides = [1, 1]} : vector<2x128xf32> to vector<2x32xf32>
    %534 = vector.extract_strided_slice %531 {offsets = [0, 32], sizes = [2, 32], strides = [1, 1]} : vector<2x128xf32> to vector<2x32xf32>
    %535 = vector.extract_strided_slice %532 {offsets = [0, 64], sizes = [2, 32], strides = [1, 1]} : vector<2x128xf32> to vector<2x32xf32>
    %536 = vector.extract_strided_slice %531 {offsets = [0, 96], sizes = [2, 32], strides = [1, 1]} : vector<2x128xf32> to vector<2x32xf32>
    %537 = arith.mulf %534, %521 : vector<2x32xf32>
    %538 = arith.mulf %533, %535 : vector<2x32xf32>
    %539 = arith.addf %537, %538 : vector<2x32xf32>
    %540 = math.tanh %539 : vector<2x32xf32>
    %541 = arith.mulf %536, %540 : vector<2x32xf32>
    %542 = vector.extract_strided_slice %287 {offsets = [28, 0], sizes = [2, 128], strides = [1, 1]} : vector<32x128xf32> to vector<2x128xf32>
    %cst_48 = arith.constant dense<0.000000e+00> : vector<2x128xf32>
    %543 = tpu.matmul %541, %281, %cst_48 {dimension_numbers = #tpu.dot_dimension_numbers<[1], [0], [0], [1], [0, 0, 1, 1], [], []>} : vector<2x32xf32>, vector<32x128xf32>, vector<2x128xf32> -> vector<2x128xf32>
    %544 = arith.addf %542, %543 : vector<2x128xf32>
    %545 = arith.negf %544 : vector<2x128xf32>
    %546 = math.exp %545 : vector<2x128xf32>
    %cst_49 = arith.constant 1.000000e+00 : f32
    %547 = vector.broadcast %cst_49 : f32 to vector<2x128xf32>
    %548 = arith.addf %547, %546 : vector<2x128xf32>
    %549 = arith.divf %547, %548 : vector<2x128xf32>
    %550 = math.tanh %544 : vector<2x128xf32>
    %551 = vector.extract_strided_slice %549 {offsets = [0, 0], sizes = [2, 32], strides = [1, 1]} : vector<2x128xf32> to vector<2x32xf32>
    %552 = vector.extract_strided_slice %549 {offsets = [0, 32], sizes = [2, 32], strides = [1, 1]} : vector<2x128xf32> to vector<2x32xf32>
    %553 = vector.extract_strided_slice %550 {offsets = [0, 64], sizes = [2, 32], strides = [1, 1]} : vector<2x128xf32> to vector<2x32xf32>
    %554 = vector.extract_strided_slice %549 {offsets = [0, 96], sizes = [2, 32], strides = [1, 1]} : vector<2x128xf32> to vector<2x32xf32>
    %555 = arith.mulf %552, %539 : vector<2x32xf32>
    %556 = arith.mulf %551, %553 : vector<2x32xf32>
    %557 = arith.addf %555, %556 : vector<2x32xf32>
    %558 = math.tanh %557 : vector<2x32xf32>
    %559 = arith.mulf %554, %558 : vector<2x32xf32>
    %560 = vector.extract_strided_slice %287 {offsets = [30, 0], sizes = [2, 128], strides = [1, 1]} : vector<32x128xf32> to vector<2x128xf32>
    %cst_50 = arith.constant dense<0.000000e+00> : vector<2x128xf32>
    %561 = tpu.matmul %559, %281, %cst_50 {dimension_numbers = #tpu.dot_dimension_numbers<[1], [0], [0], [1], [0, 0, 1, 1], [], []>} : vector<2x32xf32>, vector<32x128xf32>, vector<2x128xf32> -> vector<2x128xf32>
    %562 = arith.addf %560, %561 : vector<2x128xf32>
    %563 = arith.negf %562 : vector<2x128xf32>
    %564 = math.exp %563 : vector<2x128xf32>
    %cst_51 = arith.constant 1.000000e+00 : f32
    %565 = vector.broadcast %cst_51 : f32 to vector<2x128xf32>
    %566 = arith.addf %565, %564 : vector<2x128xf32>
    %567 = arith.divf %565, %566 : vector<2x128xf32>
    %568 = math.tanh %562 : vector<2x128xf32>
    %569 = vector.extract_strided_slice %567 {offsets = [0, 0], sizes = [2, 32], strides = [1, 1]} : vector<2x128xf32> to vector<2x32xf32>
    %570 = vector.extract_strided_slice %567 {offsets = [0, 32], sizes = [2, 32], strides = [1, 1]} : vector<2x128xf32> to vector<2x32xf32>
    %571 = vector.extract_strided_slice %568 {offsets = [0, 64], sizes = [2, 32], strides = [1, 1]} : vector<2x128xf32> to vector<2x32xf32>
    %572 = vector.extract_strided_slice %567 {offsets = [0, 96], sizes = [2, 32], strides = [1, 1]} : vector<2x128xf32> to vector<2x32xf32>
    %573 = arith.mulf %570, %557 : vector<2x32xf32>
    %574 = arith.mulf %569, %571 : vector<2x32xf32>
    %575 = arith.addf %573, %574 : vector<2x32xf32>
    %576 = math.tanh %575 : vector<2x32xf32>
    %577 = arith.mulf %572, %576 : vector<2x32xf32>
    %578 = tpu.concatenate %307, %325, %343, %361, %379, %397, %415, %433, %451, %469, %487, %505, %523, %541, %559, %577 in 0 : vector<2x32xf32>, vector<2x32xf32>, vector<2x32xf32>, vector<2x32xf32>, vector<2x32xf32>, vector<2x32xf32>, vector<2x32xf32>, vector<2x32xf32>, vector<2x32xf32>, vector<2x32xf32>, vector<2x32xf32>, vector<2x32xf32>, vector<2x32xf32>, vector<2x32xf32>, vector<2x32xf32>, vector<2x32xf32> -> vector<32x32xf32>
    %579 = tpu.concatenate %577, %559, %541, %523, %505, %487, %469, %451, %433, %415, %397, %379, %361, %343, %325, %307 in 0 : vector<2x32xf32>, vector<2x32xf32>, vector<2x32xf32>, vector<2x32xf32>, vector<2x32xf32>, vector<2x32xf32>, vector<2x32xf32>, vector<2x32xf32>, vector<2x32xf32>, vector<2x32xf32>, vector<2x32xf32>, vector<2x32xf32>, vector<2x32xf32>, vector<2x32xf32>, vector<2x32xf32>, vector<2x32xf32> -> vector<32x32xf32>
    %c0_52 = arith.constant 0 : index
    %c0_53 = arith.constant 0 : index
    %580 = vector.load %arg8[%c0_52, %c0_53] : memref<32x128xf32, #tpu.memory_space<vmem>>, vector<32x128xf32>
    %c0_54 = arith.constant 0 : index
    %c0_55 = arith.constant 0 : index
    %581 = vector.load %arg9[%c0_54, %c0_55] : memref<32x128xf32, #tpu.memory_space<vmem>>, vector<32x128xf32>
    %c0_56 = arith.constant 0 : index
    %c0_57 = arith.constant 0 : index
    %582 = vector.load %arg10[%c0_56, %c0_57] : memref<32x128xf32, #tpu.memory_space<vmem>>, vector<32x128xf32>
    %c0_58 = arith.constant 0 : index
    %c0_59 = arith.constant 0 : index
    %583 = vector.load %arg11[%c0_58, %c0_59] : memref<1x128xf32, #tpu.memory_space<vmem>>, vector<1x128xf32>
    %cst_60 = arith.constant dense<0.000000e+00> : vector<32x128xf32>
    %584 = tpu.matmul %578, %580, %cst_60 {dimension_numbers = #tpu.dot_dimension_numbers<[1], [0], [0], [1], [0, 0, 1, 1], [], []>} : vector<32x32xf32>, vector<32x128xf32>, vector<32x128xf32> -> vector<32x128xf32>
    %cst_61 = arith.constant dense<0.000000e+00> : vector<32x128xf32>
    %585 = tpu.matmul %579, %581, %cst_61 {dimension_numbers = #tpu.dot_dimension_numbers<[1], [0], [0], [1], [0, 0, 1, 1], [], []>} : vector<32x32xf32>, vector<32x128xf32>, vector<32x128xf32> -> vector<32x128xf32>
    %586 = arith.addf %584, %585 : vector<32x128xf32>
    %587 = vector.broadcast %583 : vector<1x128xf32> to vector<32x128xf32>
    %588 = arith.addf %586, %587 : vector<32x128xf32>
    %cst_62 = arith.constant 0.000000e+00 : f32
    %589 = vector.broadcast %cst_62 : f32 to vector<2x32xf32>
    %cst_63 = arith.constant 0.000000e+00 : f32
    %590 = vector.broadcast %cst_63 : f32 to vector<2x32xf32>
    %591 = vector.extract_strided_slice %588 {offsets = [0, 0], sizes = [2, 128], strides = [1, 1]} : vector<32x128xf32> to vector<2x128xf32>
    %cst_64 = arith.constant dense<0.000000e+00> : vector<2x128xf32>
    %592 = tpu.matmul %589, %582, %cst_64 {dimension_numbers = #tpu.dot_dimension_numbers<[1], [0], [0], [1], [0, 0, 1, 1], [], []>} : vector<2x32xf32>, vector<32x128xf32>, vector<2x128xf32> -> vector<2x128xf32>
    %593 = arith.addf %591, %592 : vector<2x128xf32>
    %594 = arith.negf %593 : vector<2x128xf32>
    %595 = math.exp %594 : vector<2x128xf32>
    %cst_65 = arith.constant 1.000000e+00 : f32
    %596 = vector.broadcast %cst_65 : f32 to vector<2x128xf32>
    %597 = arith.addf %596, %595 : vector<2x128xf32>
    %598 = arith.divf %596, %597 : vector<2x128xf32>
    %599 = math.tanh %593 : vector<2x128xf32>
    %600 = vector.extract_strided_slice %598 {offsets = [0, 0], sizes = [2, 32], strides = [1, 1]} : vector<2x128xf32> to vector<2x32xf32>
    %601 = vector.extract_strided_slice %598 {offsets = [0, 32], sizes = [2, 32], strides = [1, 1]} : vector<2x128xf32> to vector<2x32xf32>
    %602 = vector.extract_strided_slice %599 {offsets = [0, 64], sizes = [2, 32], strides = [1, 1]} : vector<2x128xf32> to vector<2x32xf32>
    %603 = vector.extract_strided_slice %598 {offsets = [0, 96], sizes = [2, 32], strides = [1, 1]} : vector<2x128xf32> to vector<2x32xf32>
    %604 = arith.mulf %601, %590 : vector<2x32xf32>
    %605 = arith.mulf %600, %602 : vector<2x32xf32>
    %606 = arith.addf %604, %605 : vector<2x32xf32>
    %607 = math.tanh %606 : vector<2x32xf32>
    %608 = arith.mulf %603, %607 : vector<2x32xf32>
    %609 = vector.extract_strided_slice %588 {offsets = [2, 0], sizes = [2, 128], strides = [1, 1]} : vector<32x128xf32> to vector<2x128xf32>
    %cst_66 = arith.constant dense<0.000000e+00> : vector<2x128xf32>
    %610 = tpu.matmul %608, %582, %cst_66 {dimension_numbers = #tpu.dot_dimension_numbers<[1], [0], [0], [1], [0, 0, 1, 1], [], []>} : vector<2x32xf32>, vector<32x128xf32>, vector<2x128xf32> -> vector<2x128xf32>
    %611 = arith.addf %609, %610 : vector<2x128xf32>
    %612 = arith.negf %611 : vector<2x128xf32>
    %613 = math.exp %612 : vector<2x128xf32>
    %cst_67 = arith.constant 1.000000e+00 : f32
    %614 = vector.broadcast %cst_67 : f32 to vector<2x128xf32>
    %615 = arith.addf %614, %613 : vector<2x128xf32>
    %616 = arith.divf %614, %615 : vector<2x128xf32>
    %617 = math.tanh %611 : vector<2x128xf32>
    %618 = vector.extract_strided_slice %616 {offsets = [0, 0], sizes = [2, 32], strides = [1, 1]} : vector<2x128xf32> to vector<2x32xf32>
    %619 = vector.extract_strided_slice %616 {offsets = [0, 32], sizes = [2, 32], strides = [1, 1]} : vector<2x128xf32> to vector<2x32xf32>
    %620 = vector.extract_strided_slice %617 {offsets = [0, 64], sizes = [2, 32], strides = [1, 1]} : vector<2x128xf32> to vector<2x32xf32>
    %621 = vector.extract_strided_slice %616 {offsets = [0, 96], sizes = [2, 32], strides = [1, 1]} : vector<2x128xf32> to vector<2x32xf32>
    %622 = arith.mulf %619, %606 : vector<2x32xf32>
    %623 = arith.mulf %618, %620 : vector<2x32xf32>
    %624 = arith.addf %622, %623 : vector<2x32xf32>
    %625 = math.tanh %624 : vector<2x32xf32>
    %626 = arith.mulf %621, %625 : vector<2x32xf32>
    %627 = vector.extract_strided_slice %588 {offsets = [4, 0], sizes = [2, 128], strides = [1, 1]} : vector<32x128xf32> to vector<2x128xf32>
    %cst_68 = arith.constant dense<0.000000e+00> : vector<2x128xf32>
    %628 = tpu.matmul %626, %582, %cst_68 {dimension_numbers = #tpu.dot_dimension_numbers<[1], [0], [0], [1], [0, 0, 1, 1], [], []>} : vector<2x32xf32>, vector<32x128xf32>, vector<2x128xf32> -> vector<2x128xf32>
    %629 = arith.addf %627, %628 : vector<2x128xf32>
    %630 = arith.negf %629 : vector<2x128xf32>
    %631 = math.exp %630 : vector<2x128xf32>
    %cst_69 = arith.constant 1.000000e+00 : f32
    %632 = vector.broadcast %cst_69 : f32 to vector<2x128xf32>
    %633 = arith.addf %632, %631 : vector<2x128xf32>
    %634 = arith.divf %632, %633 : vector<2x128xf32>
    %635 = math.tanh %629 : vector<2x128xf32>
    %636 = vector.extract_strided_slice %634 {offsets = [0, 0], sizes = [2, 32], strides = [1, 1]} : vector<2x128xf32> to vector<2x32xf32>
    %637 = vector.extract_strided_slice %634 {offsets = [0, 32], sizes = [2, 32], strides = [1, 1]} : vector<2x128xf32> to vector<2x32xf32>
    %638 = vector.extract_strided_slice %635 {offsets = [0, 64], sizes = [2, 32], strides = [1, 1]} : vector<2x128xf32> to vector<2x32xf32>
    %639 = vector.extract_strided_slice %634 {offsets = [0, 96], sizes = [2, 32], strides = [1, 1]} : vector<2x128xf32> to vector<2x32xf32>
    %640 = arith.mulf %637, %624 : vector<2x32xf32>
    %641 = arith.mulf %636, %638 : vector<2x32xf32>
    %642 = arith.addf %640, %641 : vector<2x32xf32>
    %643 = math.tanh %642 : vector<2x32xf32>
    %644 = arith.mulf %639, %643 : vector<2x32xf32>
    %645 = vector.extract_strided_slice %588 {offsets = [6, 0], sizes = [2, 128], strides = [1, 1]} : vector<32x128xf32> to vector<2x128xf32>
    %cst_70 = arith.constant dense<0.000000e+00> : vector<2x128xf32>
    %646 = tpu.matmul %644, %582, %cst_70 {dimension_numbers = #tpu.dot_dimension_numbers<[1], [0], [0], [1], [0, 0, 1, 1], [], []>} : vector<2x32xf32>, vector<32x128xf32>, vector<2x128xf32> -> vector<2x128xf32>
    %647 = arith.addf %645, %646 : vector<2x128xf32>
    %648 = arith.negf %647 : vector<2x128xf32>
    %649 = math.exp %648 : vector<2x128xf32>
    %cst_71 = arith.constant 1.000000e+00 : f32
    %650 = vector.broadcast %cst_71 : f32 to vector<2x128xf32>
    %651 = arith.addf %650, %649 : vector<2x128xf32>
    %652 = arith.divf %650, %651 : vector<2x128xf32>
    %653 = math.tanh %647 : vector<2x128xf32>
    %654 = vector.extract_strided_slice %652 {offsets = [0, 0], sizes = [2, 32], strides = [1, 1]} : vector<2x128xf32> to vector<2x32xf32>
    %655 = vector.extract_strided_slice %652 {offsets = [0, 32], sizes = [2, 32], strides = [1, 1]} : vector<2x128xf32> to vector<2x32xf32>
    %656 = vector.extract_strided_slice %653 {offsets = [0, 64], sizes = [2, 32], strides = [1, 1]} : vector<2x128xf32> to vector<2x32xf32>
    %657 = vector.extract_strided_slice %652 {offsets = [0, 96], sizes = [2, 32], strides = [1, 1]} : vector<2x128xf32> to vector<2x32xf32>
    %658 = arith.mulf %655, %642 : vector<2x32xf32>
    %659 = arith.mulf %654, %656 : vector<2x32xf32>
    %660 = arith.addf %658, %659 : vector<2x32xf32>
    %661 = math.tanh %660 : vector<2x32xf32>
    %662 = arith.mulf %657, %661 : vector<2x32xf32>
    %663 = vector.extract_strided_slice %588 {offsets = [8, 0], sizes = [2, 128], strides = [1, 1]} : vector<32x128xf32> to vector<2x128xf32>
    %cst_72 = arith.constant dense<0.000000e+00> : vector<2x128xf32>
    %664 = tpu.matmul %662, %582, %cst_72 {dimension_numbers = #tpu.dot_dimension_numbers<[1], [0], [0], [1], [0, 0, 1, 1], [], []>} : vector<2x32xf32>, vector<32x128xf32>, vector<2x128xf32> -> vector<2x128xf32>
    %665 = arith.addf %663, %664 : vector<2x128xf32>
    %666 = arith.negf %665 : vector<2x128xf32>
    %667 = math.exp %666 : vector<2x128xf32>
    %cst_73 = arith.constant 1.000000e+00 : f32
    %668 = vector.broadcast %cst_73 : f32 to vector<2x128xf32>
    %669 = arith.addf %668, %667 : vector<2x128xf32>
    %670 = arith.divf %668, %669 : vector<2x128xf32>
    %671 = math.tanh %665 : vector<2x128xf32>
    %672 = vector.extract_strided_slice %670 {offsets = [0, 0], sizes = [2, 32], strides = [1, 1]} : vector<2x128xf32> to vector<2x32xf32>
    %673 = vector.extract_strided_slice %670 {offsets = [0, 32], sizes = [2, 32], strides = [1, 1]} : vector<2x128xf32> to vector<2x32xf32>
    %674 = vector.extract_strided_slice %671 {offsets = [0, 64], sizes = [2, 32], strides = [1, 1]} : vector<2x128xf32> to vector<2x32xf32>
    %675 = vector.extract_strided_slice %670 {offsets = [0, 96], sizes = [2, 32], strides = [1, 1]} : vector<2x128xf32> to vector<2x32xf32>
    %676 = arith.mulf %673, %660 : vector<2x32xf32>
    %677 = arith.mulf %672, %674 : vector<2x32xf32>
    %678 = arith.addf %676, %677 : vector<2x32xf32>
    %679 = math.tanh %678 : vector<2x32xf32>
    %680 = arith.mulf %675, %679 : vector<2x32xf32>
    %681 = vector.extract_strided_slice %588 {offsets = [10, 0], sizes = [2, 128], strides = [1, 1]} : vector<32x128xf32> to vector<2x128xf32>
    %cst_74 = arith.constant dense<0.000000e+00> : vector<2x128xf32>
    %682 = tpu.matmul %680, %582, %cst_74 {dimension_numbers = #tpu.dot_dimension_numbers<[1], [0], [0], [1], [0, 0, 1, 1], [], []>} : vector<2x32xf32>, vector<32x128xf32>, vector<2x128xf32> -> vector<2x128xf32>
    %683 = arith.addf %681, %682 : vector<2x128xf32>
    %684 = arith.negf %683 : vector<2x128xf32>
    %685 = math.exp %684 : vector<2x128xf32>
    %cst_75 = arith.constant 1.000000e+00 : f32
    %686 = vector.broadcast %cst_75 : f32 to vector<2x128xf32>
    %687 = arith.addf %686, %685 : vector<2x128xf32>
    %688 = arith.divf %686, %687 : vector<2x128xf32>
    %689 = math.tanh %683 : vector<2x128xf32>
    %690 = vector.extract_strided_slice %688 {offsets = [0, 0], sizes = [2, 32], strides = [1, 1]} : vector<2x128xf32> to vector<2x32xf32>
    %691 = vector.extract_strided_slice %688 {offsets = [0, 32], sizes = [2, 32], strides = [1, 1]} : vector<2x128xf32> to vector<2x32xf32>
    %692 = vector.extract_strided_slice %689 {offsets = [0, 64], sizes = [2, 32], strides = [1, 1]} : vector<2x128xf32> to vector<2x32xf32>
    %693 = vector.extract_strided_slice %688 {offsets = [0, 96], sizes = [2, 32], strides = [1, 1]} : vector<2x128xf32> to vector<2x32xf32>
    %694 = arith.mulf %691, %678 : vector<2x32xf32>
    %695 = arith.mulf %690, %692 : vector<2x32xf32>
    %696 = arith.addf %694, %695 : vector<2x32xf32>
    %697 = math.tanh %696 : vector<2x32xf32>
    %698 = arith.mulf %693, %697 : vector<2x32xf32>
    %699 = vector.extract_strided_slice %588 {offsets = [12, 0], sizes = [2, 128], strides = [1, 1]} : vector<32x128xf32> to vector<2x128xf32>
    %cst_76 = arith.constant dense<0.000000e+00> : vector<2x128xf32>
    %700 = tpu.matmul %698, %582, %cst_76 {dimension_numbers = #tpu.dot_dimension_numbers<[1], [0], [0], [1], [0, 0, 1, 1], [], []>} : vector<2x32xf32>, vector<32x128xf32>, vector<2x128xf32> -> vector<2x128xf32>
    %701 = arith.addf %699, %700 : vector<2x128xf32>
    %702 = arith.negf %701 : vector<2x128xf32>
    %703 = math.exp %702 : vector<2x128xf32>
    %cst_77 = arith.constant 1.000000e+00 : f32
    %704 = vector.broadcast %cst_77 : f32 to vector<2x128xf32>
    %705 = arith.addf %704, %703 : vector<2x128xf32>
    %706 = arith.divf %704, %705 : vector<2x128xf32>
    %707 = math.tanh %701 : vector<2x128xf32>
    %708 = vector.extract_strided_slice %706 {offsets = [0, 0], sizes = [2, 32], strides = [1, 1]} : vector<2x128xf32> to vector<2x32xf32>
    %709 = vector.extract_strided_slice %706 {offsets = [0, 32], sizes = [2, 32], strides = [1, 1]} : vector<2x128xf32> to vector<2x32xf32>
    %710 = vector.extract_strided_slice %707 {offsets = [0, 64], sizes = [2, 32], strides = [1, 1]} : vector<2x128xf32> to vector<2x32xf32>
    %711 = vector.extract_strided_slice %706 {offsets = [0, 96], sizes = [2, 32], strides = [1, 1]} : vector<2x128xf32> to vector<2x32xf32>
    %712 = arith.mulf %709, %696 : vector<2x32xf32>
    %713 = arith.mulf %708, %710 : vector<2x32xf32>
    %714 = arith.addf %712, %713 : vector<2x32xf32>
    %715 = math.tanh %714 : vector<2x32xf32>
    %716 = arith.mulf %711, %715 : vector<2x32xf32>
    %717 = vector.extract_strided_slice %588 {offsets = [14, 0], sizes = [2, 128], strides = [1, 1]} : vector<32x128xf32> to vector<2x128xf32>
    %cst_78 = arith.constant dense<0.000000e+00> : vector<2x128xf32>
    %718 = tpu.matmul %716, %582, %cst_78 {dimension_numbers = #tpu.dot_dimension_numbers<[1], [0], [0], [1], [0, 0, 1, 1], [], []>} : vector<2x32xf32>, vector<32x128xf32>, vector<2x128xf32> -> vector<2x128xf32>
    %719 = arith.addf %717, %718 : vector<2x128xf32>
    %720 = arith.negf %719 : vector<2x128xf32>
    %721 = math.exp %720 : vector<2x128xf32>
    %cst_79 = arith.constant 1.000000e+00 : f32
    %722 = vector.broadcast %cst_79 : f32 to vector<2x128xf32>
    %723 = arith.addf %722, %721 : vector<2x128xf32>
    %724 = arith.divf %722, %723 : vector<2x128xf32>
    %725 = math.tanh %719 : vector<2x128xf32>
    %726 = vector.extract_strided_slice %724 {offsets = [0, 0], sizes = [2, 32], strides = [1, 1]} : vector<2x128xf32> to vector<2x32xf32>
    %727 = vector.extract_strided_slice %724 {offsets = [0, 32], sizes = [2, 32], strides = [1, 1]} : vector<2x128xf32> to vector<2x32xf32>
    %728 = vector.extract_strided_slice %725 {offsets = [0, 64], sizes = [2, 32], strides = [1, 1]} : vector<2x128xf32> to vector<2x32xf32>
    %729 = vector.extract_strided_slice %724 {offsets = [0, 96], sizes = [2, 32], strides = [1, 1]} : vector<2x128xf32> to vector<2x32xf32>
    %730 = arith.mulf %727, %714 : vector<2x32xf32>
    %731 = arith.mulf %726, %728 : vector<2x32xf32>
    %732 = arith.addf %730, %731 : vector<2x32xf32>
    %733 = math.tanh %732 : vector<2x32xf32>
    %734 = arith.mulf %729, %733 : vector<2x32xf32>
    %735 = vector.extract_strided_slice %588 {offsets = [16, 0], sizes = [2, 128], strides = [1, 1]} : vector<32x128xf32> to vector<2x128xf32>
    %cst_80 = arith.constant dense<0.000000e+00> : vector<2x128xf32>
    %736 = tpu.matmul %734, %582, %cst_80 {dimension_numbers = #tpu.dot_dimension_numbers<[1], [0], [0], [1], [0, 0, 1, 1], [], []>} : vector<2x32xf32>, vector<32x128xf32>, vector<2x128xf32> -> vector<2x128xf32>
    %737 = arith.addf %735, %736 : vector<2x128xf32>
    %738 = arith.negf %737 : vector<2x128xf32>
    %739 = math.exp %738 : vector<2x128xf32>
    %cst_81 = arith.constant 1.000000e+00 : f32
    %740 = vector.broadcast %cst_81 : f32 to vector<2x128xf32>
    %741 = arith.addf %740, %739 : vector<2x128xf32>
    %742 = arith.divf %740, %741 : vector<2x128xf32>
    %743 = math.tanh %737 : vector<2x128xf32>
    %744 = vector.extract_strided_slice %742 {offsets = [0, 0], sizes = [2, 32], strides = [1, 1]} : vector<2x128xf32> to vector<2x32xf32>
    %745 = vector.extract_strided_slice %742 {offsets = [0, 32], sizes = [2, 32], strides = [1, 1]} : vector<2x128xf32> to vector<2x32xf32>
    %746 = vector.extract_strided_slice %743 {offsets = [0, 64], sizes = [2, 32], strides = [1, 1]} : vector<2x128xf32> to vector<2x32xf32>
    %747 = vector.extract_strided_slice %742 {offsets = [0, 96], sizes = [2, 32], strides = [1, 1]} : vector<2x128xf32> to vector<2x32xf32>
    %748 = arith.mulf %745, %732 : vector<2x32xf32>
    %749 = arith.mulf %744, %746 : vector<2x32xf32>
    %750 = arith.addf %748, %749 : vector<2x32xf32>
    %751 = math.tanh %750 : vector<2x32xf32>
    %752 = arith.mulf %747, %751 : vector<2x32xf32>
    %753 = vector.extract_strided_slice %588 {offsets = [18, 0], sizes = [2, 128], strides = [1, 1]} : vector<32x128xf32> to vector<2x128xf32>
    %cst_82 = arith.constant dense<0.000000e+00> : vector<2x128xf32>
    %754 = tpu.matmul %752, %582, %cst_82 {dimension_numbers = #tpu.dot_dimension_numbers<[1], [0], [0], [1], [0, 0, 1, 1], [], []>} : vector<2x32xf32>, vector<32x128xf32>, vector<2x128xf32> -> vector<2x128xf32>
    %755 = arith.addf %753, %754 : vector<2x128xf32>
    %756 = arith.negf %755 : vector<2x128xf32>
    %757 = math.exp %756 : vector<2x128xf32>
    %cst_83 = arith.constant 1.000000e+00 : f32
    %758 = vector.broadcast %cst_83 : f32 to vector<2x128xf32>
    %759 = arith.addf %758, %757 : vector<2x128xf32>
    %760 = arith.divf %758, %759 : vector<2x128xf32>
    %761 = math.tanh %755 : vector<2x128xf32>
    %762 = vector.extract_strided_slice %760 {offsets = [0, 0], sizes = [2, 32], strides = [1, 1]} : vector<2x128xf32> to vector<2x32xf32>
    %763 = vector.extract_strided_slice %760 {offsets = [0, 32], sizes = [2, 32], strides = [1, 1]} : vector<2x128xf32> to vector<2x32xf32>
    %764 = vector.extract_strided_slice %761 {offsets = [0, 64], sizes = [2, 32], strides = [1, 1]} : vector<2x128xf32> to vector<2x32xf32>
    %765 = vector.extract_strided_slice %760 {offsets = [0, 96], sizes = [2, 32], strides = [1, 1]} : vector<2x128xf32> to vector<2x32xf32>
    %766 = arith.mulf %763, %750 : vector<2x32xf32>
    %767 = arith.mulf %762, %764 : vector<2x32xf32>
    %768 = arith.addf %766, %767 : vector<2x32xf32>
    %769 = math.tanh %768 : vector<2x32xf32>
    %770 = arith.mulf %765, %769 : vector<2x32xf32>
    %771 = vector.extract_strided_slice %588 {offsets = [20, 0], sizes = [2, 128], strides = [1, 1]} : vector<32x128xf32> to vector<2x128xf32>
    %cst_84 = arith.constant dense<0.000000e+00> : vector<2x128xf32>
    %772 = tpu.matmul %770, %582, %cst_84 {dimension_numbers = #tpu.dot_dimension_numbers<[1], [0], [0], [1], [0, 0, 1, 1], [], []>} : vector<2x32xf32>, vector<32x128xf32>, vector<2x128xf32> -> vector<2x128xf32>
    %773 = arith.addf %771, %772 : vector<2x128xf32>
    %774 = arith.negf %773 : vector<2x128xf32>
    %775 = math.exp %774 : vector<2x128xf32>
    %cst_85 = arith.constant 1.000000e+00 : f32
    %776 = vector.broadcast %cst_85 : f32 to vector<2x128xf32>
    %777 = arith.addf %776, %775 : vector<2x128xf32>
    %778 = arith.divf %776, %777 : vector<2x128xf32>
    %779 = math.tanh %773 : vector<2x128xf32>
    %780 = vector.extract_strided_slice %778 {offsets = [0, 0], sizes = [2, 32], strides = [1, 1]} : vector<2x128xf32> to vector<2x32xf32>
    %781 = vector.extract_strided_slice %778 {offsets = [0, 32], sizes = [2, 32], strides = [1, 1]} : vector<2x128xf32> to vector<2x32xf32>
    %782 = vector.extract_strided_slice %779 {offsets = [0, 64], sizes = [2, 32], strides = [1, 1]} : vector<2x128xf32> to vector<2x32xf32>
    %783 = vector.extract_strided_slice %778 {offsets = [0, 96], sizes = [2, 32], strides = [1, 1]} : vector<2x128xf32> to vector<2x32xf32>
    %784 = arith.mulf %781, %768 : vector<2x32xf32>
    %785 = arith.mulf %780, %782 : vector<2x32xf32>
    %786 = arith.addf %784, %785 : vector<2x32xf32>
    %787 = math.tanh %786 : vector<2x32xf32>
    %788 = arith.mulf %783, %787 : vector<2x32xf32>
    %789 = vector.extract_strided_slice %588 {offsets = [22, 0], sizes = [2, 128], strides = [1, 1]} : vector<32x128xf32> to vector<2x128xf32>
    %cst_86 = arith.constant dense<0.000000e+00> : vector<2x128xf32>
    %790 = tpu.matmul %788, %582, %cst_86 {dimension_numbers = #tpu.dot_dimension_numbers<[1], [0], [0], [1], [0, 0, 1, 1], [], []>} : vector<2x32xf32>, vector<32x128xf32>, vector<2x128xf32> -> vector<2x128xf32>
    %791 = arith.addf %789, %790 : vector<2x128xf32>
    %792 = arith.negf %791 : vector<2x128xf32>
    %793 = math.exp %792 : vector<2x128xf32>
    %cst_87 = arith.constant 1.000000e+00 : f32
    %794 = vector.broadcast %cst_87 : f32 to vector<2x128xf32>
    %795 = arith.addf %794, %793 : vector<2x128xf32>
    %796 = arith.divf %794, %795 : vector<2x128xf32>
    %797 = math.tanh %791 : vector<2x128xf32>
    %798 = vector.extract_strided_slice %796 {offsets = [0, 0], sizes = [2, 32], strides = [1, 1]} : vector<2x128xf32> to vector<2x32xf32>
    %799 = vector.extract_strided_slice %796 {offsets = [0, 32], sizes = [2, 32], strides = [1, 1]} : vector<2x128xf32> to vector<2x32xf32>
    %800 = vector.extract_strided_slice %797 {offsets = [0, 64], sizes = [2, 32], strides = [1, 1]} : vector<2x128xf32> to vector<2x32xf32>
    %801 = vector.extract_strided_slice %796 {offsets = [0, 96], sizes = [2, 32], strides = [1, 1]} : vector<2x128xf32> to vector<2x32xf32>
    %802 = arith.mulf %799, %786 : vector<2x32xf32>
    %803 = arith.mulf %798, %800 : vector<2x32xf32>
    %804 = arith.addf %802, %803 : vector<2x32xf32>
    %805 = math.tanh %804 : vector<2x32xf32>
    %806 = arith.mulf %801, %805 : vector<2x32xf32>
    %807 = vector.extract_strided_slice %588 {offsets = [24, 0], sizes = [2, 128], strides = [1, 1]} : vector<32x128xf32> to vector<2x128xf32>
    %cst_88 = arith.constant dense<0.000000e+00> : vector<2x128xf32>
    %808 = tpu.matmul %806, %582, %cst_88 {dimension_numbers = #tpu.dot_dimension_numbers<[1], [0], [0], [1], [0, 0, 1, 1], [], []>} : vector<2x32xf32>, vector<32x128xf32>, vector<2x128xf32> -> vector<2x128xf32>
    %809 = arith.addf %807, %808 : vector<2x128xf32>
    %810 = arith.negf %809 : vector<2x128xf32>
    %811 = math.exp %810 : vector<2x128xf32>
    %cst_89 = arith.constant 1.000000e+00 : f32
    %812 = vector.broadcast %cst_89 : f32 to vector<2x128xf32>
    %813 = arith.addf %812, %811 : vector<2x128xf32>
    %814 = arith.divf %812, %813 : vector<2x128xf32>
    %815 = math.tanh %809 : vector<2x128xf32>
    %816 = vector.extract_strided_slice %814 {offsets = [0, 0], sizes = [2, 32], strides = [1, 1]} : vector<2x128xf32> to vector<2x32xf32>
    %817 = vector.extract_strided_slice %814 {offsets = [0, 32], sizes = [2, 32], strides = [1, 1]} : vector<2x128xf32> to vector<2x32xf32>
    %818 = vector.extract_strided_slice %815 {offsets = [0, 64], sizes = [2, 32], strides = [1, 1]} : vector<2x128xf32> to vector<2x32xf32>
    %819 = vector.extract_strided_slice %814 {offsets = [0, 96], sizes = [2, 32], strides = [1, 1]} : vector<2x128xf32> to vector<2x32xf32>
    %820 = arith.mulf %817, %804 : vector<2x32xf32>
    %821 = arith.mulf %816, %818 : vector<2x32xf32>
    %822 = arith.addf %820, %821 : vector<2x32xf32>
    %823 = math.tanh %822 : vector<2x32xf32>
    %824 = arith.mulf %819, %823 : vector<2x32xf32>
    %825 = vector.extract_strided_slice %588 {offsets = [26, 0], sizes = [2, 128], strides = [1, 1]} : vector<32x128xf32> to vector<2x128xf32>
    %cst_90 = arith.constant dense<0.000000e+00> : vector<2x128xf32>
    %826 = tpu.matmul %824, %582, %cst_90 {dimension_numbers = #tpu.dot_dimension_numbers<[1], [0], [0], [1], [0, 0, 1, 1], [], []>} : vector<2x32xf32>, vector<32x128xf32>, vector<2x128xf32> -> vector<2x128xf32>
    %827 = arith.addf %825, %826 : vector<2x128xf32>
    %828 = arith.negf %827 : vector<2x128xf32>
    %829 = math.exp %828 : vector<2x128xf32>
    %cst_91 = arith.constant 1.000000e+00 : f32
    %830 = vector.broadcast %cst_91 : f32 to vector<2x128xf32>
    %831 = arith.addf %830, %829 : vector<2x128xf32>
    %832 = arith.divf %830, %831 : vector<2x128xf32>
    %833 = math.tanh %827 : vector<2x128xf32>
    %834 = vector.extract_strided_slice %832 {offsets = [0, 0], sizes = [2, 32], strides = [1, 1]} : vector<2x128xf32> to vector<2x32xf32>
    %835 = vector.extract_strided_slice %832 {offsets = [0, 32], sizes = [2, 32], strides = [1, 1]} : vector<2x128xf32> to vector<2x32xf32>
    %836 = vector.extract_strided_slice %833 {offsets = [0, 64], sizes = [2, 32], strides = [1, 1]} : vector<2x128xf32> to vector<2x32xf32>
    %837 = vector.extract_strided_slice %832 {offsets = [0, 96], sizes = [2, 32], strides = [1, 1]} : vector<2x128xf32> to vector<2x32xf32>
    %838 = arith.mulf %835, %822 : vector<2x32xf32>
    %839 = arith.mulf %834, %836 : vector<2x32xf32>
    %840 = arith.addf %838, %839 : vector<2x32xf32>
    %841 = math.tanh %840 : vector<2x32xf32>
    %842 = arith.mulf %837, %841 : vector<2x32xf32>
    %843 = vector.extract_strided_slice %588 {offsets = [28, 0], sizes = [2, 128], strides = [1, 1]} : vector<32x128xf32> to vector<2x128xf32>
    %cst_92 = arith.constant dense<0.000000e+00> : vector<2x128xf32>
    %844 = tpu.matmul %842, %582, %cst_92 {dimension_numbers = #tpu.dot_dimension_numbers<[1], [0], [0], [1], [0, 0, 1, 1], [], []>} : vector<2x32xf32>, vector<32x128xf32>, vector<2x128xf32> -> vector<2x128xf32>
    %845 = arith.addf %843, %844 : vector<2x128xf32>
    %846 = arith.negf %845 : vector<2x128xf32>
    %847 = math.exp %846 : vector<2x128xf32>
    %cst_93 = arith.constant 1.000000e+00 : f32
    %848 = vector.broadcast %cst_93 : f32 to vector<2x128xf32>
    %849 = arith.addf %848, %847 : vector<2x128xf32>
    %850 = arith.divf %848, %849 : vector<2x128xf32>
    %851 = math.tanh %845 : vector<2x128xf32>
    %852 = vector.extract_strided_slice %850 {offsets = [0, 0], sizes = [2, 32], strides = [1, 1]} : vector<2x128xf32> to vector<2x32xf32>
    %853 = vector.extract_strided_slice %850 {offsets = [0, 32], sizes = [2, 32], strides = [1, 1]} : vector<2x128xf32> to vector<2x32xf32>
    %854 = vector.extract_strided_slice %851 {offsets = [0, 64], sizes = [2, 32], strides = [1, 1]} : vector<2x128xf32> to vector<2x32xf32>
    %855 = vector.extract_strided_slice %850 {offsets = [0, 96], sizes = [2, 32], strides = [1, 1]} : vector<2x128xf32> to vector<2x32xf32>
    %856 = arith.mulf %853, %840 : vector<2x32xf32>
    %857 = arith.mulf %852, %854 : vector<2x32xf32>
    %858 = arith.addf %856, %857 : vector<2x32xf32>
    %859 = math.tanh %858 : vector<2x32xf32>
    %860 = arith.mulf %855, %859 : vector<2x32xf32>
    %861 = vector.extract_strided_slice %588 {offsets = [30, 0], sizes = [2, 128], strides = [1, 1]} : vector<32x128xf32> to vector<2x128xf32>
    %cst_94 = arith.constant dense<0.000000e+00> : vector<2x128xf32>
    %862 = tpu.matmul %860, %582, %cst_94 {dimension_numbers = #tpu.dot_dimension_numbers<[1], [0], [0], [1], [0, 0, 1, 1], [], []>} : vector<2x32xf32>, vector<32x128xf32>, vector<2x128xf32> -> vector<2x128xf32>
    %863 = arith.addf %861, %862 : vector<2x128xf32>
    %864 = arith.negf %863 : vector<2x128xf32>
    %865 = math.exp %864 : vector<2x128xf32>
    %cst_95 = arith.constant 1.000000e+00 : f32
    %866 = vector.broadcast %cst_95 : f32 to vector<2x128xf32>
    %867 = arith.addf %866, %865 : vector<2x128xf32>
    %868 = arith.divf %866, %867 : vector<2x128xf32>
    %869 = math.tanh %863 : vector<2x128xf32>
    %870 = vector.extract_strided_slice %868 {offsets = [0, 0], sizes = [2, 32], strides = [1, 1]} : vector<2x128xf32> to vector<2x32xf32>
    %871 = vector.extract_strided_slice %868 {offsets = [0, 32], sizes = [2, 32], strides = [1, 1]} : vector<2x128xf32> to vector<2x32xf32>
    %872 = vector.extract_strided_slice %869 {offsets = [0, 64], sizes = [2, 32], strides = [1, 1]} : vector<2x128xf32> to vector<2x32xf32>
    %873 = vector.extract_strided_slice %868 {offsets = [0, 96], sizes = [2, 32], strides = [1, 1]} : vector<2x128xf32> to vector<2x32xf32>
    %874 = arith.mulf %871, %858 : vector<2x32xf32>
    %875 = arith.mulf %870, %872 : vector<2x32xf32>
    %876 = arith.addf %874, %875 : vector<2x32xf32>
    %877 = math.tanh %876 : vector<2x32xf32>
    %878 = arith.mulf %873, %877 : vector<2x32xf32>
    %c0_96 = arith.constant 0 : index
    %c0_97 = arith.constant 0 : index
    %879 = vector.load %arg12[%c0_96, %c0_97] : memref<32x16xf32, #tpu.memory_space<vmem>>, vector<32x16xf32>
    %cst_98 = arith.constant dense<0.000000e+00> : vector<2x16xf32>
    %880 = tpu.matmul %878, %879, %cst_98 {dimension_numbers = #tpu.dot_dimension_numbers<[1], [0], [0], [1], [0, 0, 1, 1], [], []>} : vector<2x32xf32>, vector<32x16xf32>, vector<2x16xf32> -> vector<2x16xf32>
    %c0_99 = arith.constant 0 : index
    %c0_100 = arith.constant 0 : index
    %881 = vector.load %arg13[%c0_99, %c0_100] : memref<1x16xf32, #tpu.memory_space<vmem>>, vector<1x16xf32>
    %882 = vector.broadcast %881 : vector<1x16xf32> to vector<2x16xf32>
    %883 = arith.addf %880, %882 : vector<2x16xf32>
    %cst_101 = arith.constant 0.000000e+00 : f32
    %884 = vector.broadcast %cst_101 : f32 to vector<2x16xf32>
    %885 = arith.maximumf %883, %884 : vector<2x16xf32>
    %c0_102 = arith.constant 0 : index
    %c0_103 = arith.constant 0 : index
    %886 = vector.load %arg14[%c0_102, %c0_103] : memref<16x10xf32, #tpu.memory_space<vmem>>, vector<16x10xf32>
    %cst_104 = arith.constant dense<0.000000e+00> : vector<2x10xf32>
    %887 = tpu.matmul %885, %886, %cst_104 {dimension_numbers = #tpu.dot_dimension_numbers<[1], [0], [0], [1], [0, 0, 1, 1], [], []>} : vector<2x16xf32>, vector<16x10xf32>, vector<2x10xf32> -> vector<2x10xf32>
    %c0_105 = arith.constant 0 : index
    %c0_106 = arith.constant 0 : index
    %888 = vector.load %arg15[%c0_105, %c0_106] : memref<1x10xf32, #tpu.memory_space<vmem>>, vector<1x10xf32>
    %889 = vector.broadcast %888 : vector<1x10xf32> to vector<2x10xf32>
    %890 = arith.addf %887, %889 : vector<2x10xf32>
    %c0_107 = arith.constant 0 : index
    %c0_108 = arith.constant 0 : index
    %891 = vector.load %arg16[%c0_107, %c0_108] : memref<2x10xf32, #tpu.memory_space<vmem>>, vector<2x10xf32>
    tpu.vector_store %arg16[%c0_107, %c0_108], %890 {strides = array<i32>} : memref<2x10xf32, #tpu.memory_space<vmem>>, vector<2x10xf32>,
    return
  }
}

</mosaic_0001>

<llo_original>
// kernel: hybrid_cnn_bilstm_forward.1
$region0: #{hybrid_cnn_bilstm_forward.1}
  #allocation0 [shape = 'u32[]', space=smem, size = 0x4, offset = 0x4, fixed_abs, tag = 'smem constant byte address 0x4 - core index']
  #allocation1 [shape = 'u32[72,128]{1,0:T(1,128)}', space=vmem, size = 0x9000, scoped, tag = 'internal scratch']
  %s0 = inlined_call_operand.vmem [shape: f32[2,74], index: 0, kind: input, shape index: {}]
  %s1 = inlined_call_operand.vmem [shape: f32[11,8], index: 1, kind: input, shape index: {}]
  %s2 = inlined_call_operand.hbm [shape: f32[1,8], index: 2, kind: input, shape index: {}]
  %s3 = inlined_call_operand.hbm [shape: f32[1,8], index: 3, kind: input, shape index: {}]
  %s4 = inlined_call_operand.vmem [shape: f32[8,128], index: 4, kind: input, shape index: {}]
  %s5 = inlined_call_operand.vmem [shape: f32[8,128], index: 5, kind: input, shape index: {}]
  %s6 = inlined_call_operand.vmem [shape: f32[32,128], index: 6, kind: input, shape index: {}]
  %s7 = inlined_call_operand.vmem [shape: f32[1,128], index: 7, kind: input, shape index: {}]
  %s8 = inlined_call_operand.hbm [shape: f32[32,128], index: 8, kind: input, shape index: {}]
  %s9 = inlined_call_operand.hbm [shape: f32[32,128], index: 9, kind: input, shape index: {}]
  %s10 = inlined_call_operand.hbm [shape: f32[32,128], index: 10, kind: input, shape index: {}]
  %s11 = inlined_call_operand.vmem [shape: f32[1,128], index: 11, kind: input, shape index: {}]
  %s12 = inlined_call_operand.vmem [shape: f32[32,16], index: 12, kind: input, shape index: {}]
  %s13 = inlined_call_operand.hbm [shape: f32[1,16], index: 13, kind: input, shape index: {}]
  %s14 = inlined_call_operand.vmem [shape: f32[16,10], index: 14, kind: input, shape index: {}]
  %s15 = inlined_call_operand.vmem [shape: f32[1,10], index: 15, kind: input, shape index: {}]
  %s16 = inlined_call_operand.hbm [shape: f32[2,10], index: 16, kind: output, shape index: {}]
  %s17 = sld [smem:[#allocation0]]
  $region98: #{hybrid_cnn_bilstm_forward.1} parent=0
    _
  %s19 = ssub.s32 1, %s17
  %s20 = scalar_select 0, %s19, %s17
  $region1: #{hybrid_cnn_bilstm_forward.1} parent=0
    #allocation2 [shape = 'u8[512]{0}', space=vmem, size = 0x400, scoped, tag = 'input window, operand 2, single buffered']
    #allocation3 [shape = 's32[1]{0}', space=sflag, size = 0x4, scoped, tag = 'scoped memory for hybrid_cnn_bilstm_forward.1']
    #allocation4 [shape = 's32[1]{0}', space=sflag, size = 0x4, scoped, tag = 'scoped memory for hybrid_cnn_bilstm_forward.1']
    #allocation5 [shape = 'u8[512]{0}', space=vmem, size = 0x400, scoped, tag = 'input window, operand 3, single buffered']
    #allocation6 [shape = 's32[1]{0}', space=sflag, size = 0x4, scoped, tag = 'scoped memory for hybrid_cnn_bilstm_forward.1']
    #allocation7 [shape = 'u8[16384]{0}', space=vmem, size = 0x4000, scoped, tag = 'input window, operand 8, single buffered']
    #allocation8 [shape = 'u8[16384]{0}', space=vmem, size = 0x4000, scoped, tag = 'input window, operand 9, single buffered']
    #allocation9 [shape = 's32[1]{0}', space=sflag, size = 0x4, scoped, tag = 'scoped memory for hybrid_cnn_bilstm_forward.1']
    #allocation10 [shape = 'u8[16384]{0}', space=vmem, size = 0x4000, scoped, tag = 'input window, operand 10, single buffered']
    #allocation11 [shape = 'u8[512]{0}', space=vmem, size = 0x400, scoped, tag = 'input window, operand 13, single buffered']
    #allocation12 [shape = 's32[1]{0}', space=sflag, size = 0x4, scoped, tag = 'scoped memory for hybrid_cnn_bilstm_forward.1']
    #allocation13 [shape = 'u8[1024]{0}', space=vmem, size = 0x400, scoped, tag = 'output window, operand 0, single buffered']
    %21 = vsyncpa [#allocation3], 0
    %22 = vsyncpa [#allocation6], 0
    %23 = vsyncpa [#allocation9], 0
    %24 = vsyncpa [#allocation12], 0
    %25 = vsyncpa [#allocation4], 0
    // Predicated region
    $region2: #{hybrid_cnn_bilstm_forward.1} parent=1 // pred_check
      _
    $region3: #{hybrid_cnn_bilstm_forward.1} parent=1 // pred_check_branch
      %27 = sbr.rel (0) target = $region5
    $region4: #{hybrid_cnn_bilstm_forward.1} parent=1 // pred_region
      _
    $region5: #{hybrid_cnn_bilstm_forward.1} parent=1 // pred_fallthru
      _
    // Predicated region
    $region6: #{hybrid_cnn_bilstm_forward.1} parent=1 // pred_check
      _
    $region7: #{hybrid_cnn_bilstm_forward.1} parent=1 // pred_check_branch
      %29 = sbr.rel (0) target = $region9
    $region8: #{hybrid_cnn_bilstm_forward.1} parent=1 // pred_region
      _
    $region9: #{hybrid_cnn_bilstm_forward.1} parent=1 // pred_fallthru
      _
    // Predicated region
    $region10: #{hybrid_cnn_bilstm_forward.1} parent=1 // pred_check
      _
    $region11: #{hybrid_cnn_bilstm_forward.1} parent=1 // pred_check_branch
      %31 = sbr.rel (0) target = $region13
    $region12: #{hybrid_cnn_bilstm_forward.1} parent=1 // pred_region
      %33 = vsyncadd [#allocation3], 0
      %s35 = sshll.u32 %s2, 4
      %s36 = int_to_ptr.hbm [resolvable:$true] %s35
      %s37 = sshll.u32 [#allocation2], 4
      %s38 = int_to_ptr.vmem [resolvable:$true] %s37
      %40 = dma.hbm_to_vmem [thread:$0]  %s36, 16, %s38, [#allocation3]
    $region13: #{hybrid_cnn_bilstm_forward.1} parent=1 // pred_fallthru
      _
    // Predicated region
    $region14: #{hybrid_cnn_bilstm_forward.1} parent=1 // pred_check
      _
    $region15: #{hybrid_cnn_bilstm_forward.1} parent=1 // pred_check_branch
      %42 = sbr.rel (0) target = $region17
    $region16: #{hybrid_cnn_bilstm_forward.1} parent=1 // pred_region
      %44 = vsyncadd [#allocation6], 0
      %s46 = sshll.u32 %s3, 4
      %s47 = int_to_ptr.hbm [resolvable:$true] %s46
      %s48 = sshll.u32 [#allocation5], 4
      %s49 = int_to_ptr.vmem [resolvable:$true] %s48
      %51 = dma.hbm_to_vmem [thread:$0]  %s47, 16, %s49, [#allocation6]
    $region17: #{hybrid_cnn_bilstm_forward.1} parent=1 // pred_fallthru
      _
    // Predicated region
    $region18: #{hybrid_cnn_bilstm_forward.1} parent=1 // pred_check
      _
    $region19: #{hybrid_cnn_bilstm_forward.1} parent=1 // pred_check_branch
      %53 = sbr.rel (0) target = $region21
    $region20: #{hybrid_cnn_bilstm_forward.1} parent=1 // pred_region
      _
    $region21: #{hybrid_cnn_bilstm_forward.1} parent=1 // pred_fallthru
      _
    // Predicated region
    $region22: #{hybrid_cnn_bilstm_forward.1} parent=1 // pred_check
      _
    $region23: #{hybrid_cnn_bilstm_forward.1} parent=1 // pred_check_branch
      %55 = sbr.rel (0) target = $region25
    $region24: #{hybrid_cnn_bilstm_forward.1} parent=1 // pred_region
      _
    $region25: #{hybrid_cnn_bilstm_forward.1} parent=1 // pred_fallthru
      _
    // Predicated region
    $region26: #{hybrid_cnn_bilstm_forward.1} parent=1 // pred_check
      _
    $region27: #{hybrid_cnn_bilstm_forward.1} parent=1 // pred_check_branch
      %57 = sbr.rel (0) target = $region29
    $region28: #{hybrid_cnn_bilstm_forward.1} parent=1 // pred_region
      _
    $region29: #{hybrid_cnn_bilstm_forward.1} parent=1 // pred_fallthru
      _
    // Predicated region
    $region30: #{hybrid_cnn_bilstm_forward.1} parent=1 // pred_check
      _
    $region31: #{hybrid_cnn_bilstm_forward.1} parent=1 // pred_check_branch
      %59 = sbr.rel (0) target = $region33
    $region32: #{hybrid_cnn_bilstm_forward.1} parent=1 // pred_region
      _
    $region33: #{hybrid_cnn_bilstm_forward.1} parent=1 // pred_fallthru
      _
    // Predicated region
    $region34: #{hybrid_cnn_bilstm_forward.1} parent=1 // pred_check
      _
    $region35: #{hybrid_cnn_bilstm_forward.1} parent=1 // pred_check_branch
      %61 = sbr.rel (0) target = $region37
    $region36: #{hybrid_cnn_bilstm_forward.1} parent=1 // pred_region
      %63 = vsyncadd [#allocation6], 0
      %s64 = sshll.u32 %s8, 4
      %s65 = int_to_ptr.hbm [resolvable:$true] %s64
      %s66 = sshll.u32 [#allocation7], 4
      %s67 = int_to_ptr.vmem [resolvable:$true] %s66
      %72 = dma.hbm_to_vmem [thread:$0]  %s65, 512, %s67, [#allocation6], 128, 128, 8
    $region37: #{hybrid_cnn_bilstm_forward.1} parent=1 // pred_fallthru
      _
    // Predicated region
    $region38: #{hybrid_cnn_bilstm_forward.1} parent=1 // pred_check
      _
    $region39: #{hybrid_cnn_bilstm_forward.1} parent=1 // pred_check_branch
      %74 = sbr.rel (0) target = $region41
    $region40: #{hybrid_cnn_bilstm_forward.1} parent=1 // pred_region
      %76 = vsyncadd [#allocation9], 0
      %s77 = sshll.u32 %s9, 4
      %s78 = int_to_ptr.hbm [resolvable:$true] %s77
      %s79 = sshll.u32 [#allocation8], 4
      %s80 = int_to_ptr.vmem [resolvable:$true] %s79
      %85 = dma.hbm_to_vmem [thread:$0]  %s78, 512, %s80, [#allocation9], 128, 128, 8
    $region41: #{hybrid_cnn_bilstm_forward.1} parent=1 // pred_fallthru
      _
    // Predicated region
    $region42: #{hybrid_cnn_bilstm_forward.1} parent=1 // pred_check
      _
    $region43: #{hybrid_cnn_bilstm_forward.1} parent=1 // pred_check_branch
      %87 = sbr.rel (0) target = $region45
    $region44: #{hybrid_cnn_bilstm_forward.1} parent=1 // pred_region
      %89 = vsyncadd [#allocation9], 0
      %s90 = sshll.u32 %s10, 4
      %s91 = int_to_ptr.hbm [resolvable:$true] %s90
      %s92 = sshll.u32 [#allocation10], 4
      %s93 = int_to_ptr.vmem [resolvable:$true] %s92
      %98 = dma.hbm_to_vmem [thread:$0]  %s91, 512, %s93, [#allocation9], 128, 128, 8
    $region45: #{hybrid_cnn_bilstm_forward.1} parent=1 // pred_fallthru
      _
    // Predicated region
    $region46: #{hybrid_cnn_bilstm_forward.1} parent=1 // pred_check
      _
    $region47: #{hybrid_cnn_bilstm_forward.1} parent=1 // pred_check_branch
      %100 = sbr.rel (0) target = $region49
    $region48: #{hybrid_cnn_bilstm_forward.1} parent=1 // pred_region
      _
    $region49: #{hybrid_cnn_bilstm_forward.1} parent=1 // pred_fallthru
      _
    // Predicated region
    $region50: #{hybrid_cnn_bilstm_forward.1} parent=1 // pred_check
      _
    $region51: #{hybrid_cnn_bilstm_forward.1} parent=1 // pred_check_branch
      %102 = sbr.rel (0) target = $region53
    $region52: #{hybrid_cnn_bilstm_forward.1} parent=1 // pred_region
      _
    $region53: #{hybrid_cnn_bilstm_forward.1} parent=1 // pred_fallthru
      _
    // Predicated region
    $region54: #{hybrid_cnn_bilstm_forward.1} parent=1 // pred_check
      _
    $region55: #{hybrid_cnn_bilstm_forward.1} parent=1 // pred_check_branch
      %104 = sbr.rel (0) target = $region57
    $region56: #{hybrid_cnn_bilstm_forward.1} parent=1 // pred_region
      %106 = vsyncadd [#allocation12], 0
      %s108 = sshll.u32 %s13, 4
      %s109 = int_to_ptr.hbm [resolvable:$true] %s108
      %s110 = sshll.u32 [#allocation11], 4
      %s111 = int_to_ptr.vmem [resolvable:$true] %s110
      %113 = dma.hbm_to_vmem [thread:$0]  %s109, 16, %s111, [#allocation12]
    $region57: #{hybrid_cnn_bilstm_forward.1} parent=1 // pred_fallthru
      _
    // Predicated region
    $region58: #{hybrid_cnn_bilstm_forward.1} parent=1 // pred_check
      _
    $region59: #{hybrid_cnn_bilstm_forward.1} parent=1 // pred_check_branch
      %115 = sbr.rel (0) target = $region61
    $region60: #{hybrid_cnn_bilstm_forward.1} parent=1 // pred_region
      _
    $region61: #{hybrid_cnn_bilstm_forward.1} parent=1 // pred_fallthru
      _
    // Predicated region
    $region62: #{hybrid_cnn_bilstm_forward.1} parent=1 // pred_check
      _
    $region63: #{hybrid_cnn_bilstm_forward.1} parent=1 // pred_check_branch
      %117 = sbr.rel (0) target = $region65
    $region64: #{hybrid_cnn_bilstm_forward.1} parent=1 // pred_region
      _
    $region65: #{hybrid_cnn_bilstm_forward.1} parent=1 // pred_fallthru
      _
    // Predicated region
    $region66: #{hybrid_cnn_bilstm_forward.1} parent=1 // pred_check
      _
    $region67: #{hybrid_cnn_bilstm_forward.1} parent=1 // pred_check_branch
      %119 = sbr.rel (0) target = $region69
    $region68: #{hybrid_cnn_bilstm_forward.1} parent=1 // pred_region
      %121 = dma.done [#allocation3], 16
    $region69: #{hybrid_cnn_bilstm_forward.1} parent=1 // pred_fallthru
      _
    // Predicated region
    $region70: #{hybrid_cnn_bilstm_forward.1} parent=1 // pred_check
      _
    $region71: #{hybrid_cnn_bilstm_forward.1} parent=1 // pred_check_branch
      %123 = sbr.rel (0) target = $region73
    $region72: #{hybrid_cnn_bilstm_forward.1} parent=1 // pred_region
      %125 = dma.done [#allocation6], 16
    $region73: #{hybrid_cnn_bilstm_forward.1} parent=1 // pred_fallthru
      _
    // Predicated region
    $region74: #{hybrid_cnn_bilstm_forward.1} parent=1 // pred_check
      _
    $region75: #{hybrid_cnn_bilstm_forward.1} parent=1 // pred_check_branch
      %127 = sbr.rel (0) target = $region77
    $region76: #{hybrid_cnn_bilstm_forward.1} parent=1 // pred_region
      %129 = dma.done [#allocation6], 512
    $region77: #{hybrid_cnn_bilstm_forward.1} parent=1 // pred_fallthru
      _
    // Predicated region
    $region78: #{hybrid_cnn_bilstm_forward.1} parent=1 // pred_check
      _
    $region79: #{hybrid_cnn_bilstm_forward.1} parent=1 // pred_check_branch
      %131 = sbr.rel (0) target = $region81
    $region80: #{hybrid_cnn_bilstm_forward.1} parent=1 // pred_region
      %133 = dma.done [#allocation9], 512
    $region81: #{hybrid_cnn_bilstm_forward.1} parent=1 // pred_fallthru
      _
    // Predicated region
    $region82: #{hybrid_cnn_bilstm_forward.1} parent=1 // pred_check
      _
    $region83: #{hybrid_cnn_bilstm_forward.1} parent=1 // pred_check_branch
      %135 = sbr.rel (0) target = $region85
    $region84: #{hybrid_cnn_bilstm_forward.1} parent=1 // pred_region
      %137 = dma.done [#allocation9], 512
    $region85: #{hybrid_cnn_bilstm_forward.1} parent=1 // pred_fallthru
      _
    // Predicated region
    $region86: #{hybrid_cnn_bilstm_forward.1} parent=1 // pred_check
      _
    $region87: #{hybrid_cnn_bilstm_forward.1} parent=1 // pred_check_branch
      %139 = sbr.rel (0) target = $region89
    $region88: #{hybrid_cnn_bilstm_forward.1} parent=1 // pred_region
      %141 = dma.done [#allocation12], 16
    $region89: #{hybrid_cnn_bilstm_forward.1} parent=1 // pred_fallthru
      _
    %v142 = vld [vmem:[%s0] sm:$0x3]
    %v143 = vld [vmem:[%s1] sm:$0xff]
    %v144 = vld [vmem:[%s1 + $0x8] sm:$0x7]
    %v145 = vld [vmem:[#allocation2] sm:$0x1]
    %v146 = vld [vmem:[#allocation5] sm:$0x1]
    %v147 = vperm.slane %v142, 0
    %v148 = vlaneseq
    %v149 = vshrl.u32 %v148, 7
    %151 = vset.pattern.permute.xlu0 %v149
    %152 = vperm.xlu0 %151, %v147
    %v153 = vpop.permute.xlu0 %152
    %v154 = vlaneseq
    %v155 = vshrl.u32 %v154, 7
    %v156 = vadd.s32 %v155, 8
    %157 = vset.pattern.permute.xlu0 %v156
    %158 = vperm.xlu0 %157, %v147
    %v159 = vpop.permute.xlu0 %158
    %v160 = vlaneseq
    %v161 = vshrl.u32 %v160, 7
    %v162 = vadd.s32 %v161, 16
    %163 = vset.pattern.permute.xlu0 %v162
    %164 = vperm.xlu0 %163, %v147
    %v165 = vpop.permute.xlu0 %164
    %v166 = vlaneseq
    %v167 = vshrl.u32 %v166, 7
    %v168 = vadd.s32 %v167, 24
    %169 = vset.pattern.permute.xlu0 %v168
    %170 = vperm.xlu0 %169, %v147
    %v171 = vpop.permute.xlu0 %170
    %v172 = vlaneseq
    %v173 = vshrl.u32 %v172, 7
    %v174 = vadd.s32 %v173, 32
    %175 = vset.pattern.permute.xlu0 %v174
    %176 = vperm.xlu0 %175, %v147
    %v177 = vpop.permute.xlu0 %176
    %v178 = vlaneseq
    %v179 = vshrl.u32 %v178, 7
    %v180 = vadd.s32 %v179, 40
    %181 = vset.pattern.permute.xlu0 %v180
    %182 = vperm.xlu0 %181, %v147
    %v183 = vpop.permute.xlu0 %182
    %v184 = vlaneseq
    %v185 = vshrl.u32 %v184, 7
    %v186 = vadd.s32 %v185, 48
    %187 = vset.pattern.permute.xlu0 %v186
    %188 = vperm.xlu0 %187, %v147
    %v189 = vpop.permute.xlu0 %188
    %v190 = vlaneseq
    %v191 = vshrl.u32 %v190, 7
    %v192 = vadd.s32 %v191, 56
    %193 = vset.pattern.permute.xlu0 %v192
    %194 = vperm.xlu0 %193, %v147
    %v195 = vpop.permute.xlu0 %194
    %v196 = vperm.slane %v142, 1
    %v197 = vlaneseq
    %v198 = vshrl.u32 %v197, 7
    %200 = vset.pattern.permute.xlu0 %v198
    %201 = vperm.xlu0 %200, %v196
    %v202 = vpop.permute.xlu0 %201
    %v203 = vlaneseq
    %v204 = vshrl.u32 %v203, 7
    %v205 = vadd.s32 %v204, 8
    %206 = vset.pattern.permute.xlu0 %v205
    %207 = vperm.xlu0 %206, %v196
    %v208 = vpop.permute.xlu0 %207
    %v209 = vlaneseq
    %v210 = vshrl.u32 %v209, 7
    %v211 = vadd.s32 %v210, 16
    %212 = vset.pattern.permute.xlu0 %v211
    %213 = vperm.xlu0 %212, %v196
    %v214 = vpop.permute.xlu0 %213
    %v215 = vlaneseq
    %v216 = vshrl.u32 %v215, 7
    %v217 = vadd.s32 %v216, 24
    %218 = vset.pattern.permute.xlu0 %v217
    %219 = vperm.xlu0 %218, %v196
    %v220 = vpop.permute.xlu0 %219
    %v221 = vlaneseq
    %v222 = vshrl.u32 %v221, 7
    %v223 = vadd.s32 %v222, 32
    %224 = vset.pattern.permute.xlu0 %v223
    %225 = vperm.xlu0 %224, %v196
    %v226 = vpop.permute.xlu0 %225
    %v227 = vlaneseq
    %v228 = vshrl.u32 %v227, 7
    %v229 = vadd.s32 %v228, 40
    %230 = vset.pattern.permute.xlu0 %v229
    %231 = vperm.xlu0 %230, %v196
    %v232 = vpop.permute.xlu0 %231
    %v233 = vlaneseq
    %v234 = vshrl.u32 %v233, 7
    %v235 = vadd.s32 %v234, 48
    %236 = vset.pattern.permute.xlu0 %v235
    %237 = vperm.xlu0 %236, %v196
    %v238 = vpop.permute.xlu0 %237
    %v239 = vlaneseq
    %v240 = vshrl.u32 %v239, 7
    %v241 = vadd.s32 %v240, 56
    %242 = vset.pattern.permute.xlu0 %v241
    %243 = vperm.xlu0 %242, %v196
    %v244 = vpop.permute.xlu0 %243
    %v245 = vperm.slane %v143, 0
    %v246 = vmul.f32 %v153, %v245
    %v247 = vmul.f32 %v159, %v245
    %v248 = vmul.f32 %v165, %v245
    %v249 = vmul.f32 %v171, %v245
    %v250 = vmul.f32 %v177, %v245
    %v251 = vmul.f32 %v183, %v245
    %v252 = vmul.f32 %v189, %v245
    %v253 = vmul.f32 %v195, %v245
    %v254 = vmul.f32 %v202, %v245
    %v255 = vmul.f32 %v208, %v245
    %v256 = vmul.f32 %v214, %v245
    %v257 = vmul.f32 %v220, %v245
    %v258 = vmul.f32 %v226, %v245
    %v259 = vmul.f32 %v232, %v245
    %v260 = vmul.f32 %v238, %v245
    %v261 = vmul.f32 %v244, %v245
    %v262 = vadd.f32 %v246, 0.0
    %v263 = vadd.f32 %v247, 0.0
    %v264 = vadd.f32 %v248, 0.0
    %v265 = vadd.f32 %v249, 0.0
    %v266 = vadd.f32 %v250, 0.0
    %v267 = vadd.f32 %v251, 0.0
    %v268 = vadd.f32 %v252, 0.0
    %v269 = vadd.f32 %v253, 0.0
    %v270 = vadd.f32 %v254, 0.0
    %v271 = vadd.f32 %v255, 0.0
    %v272 = vadd.f32 %v256, 0.0
    %v273 = vadd.f32 %v257, 0.0
    %v274 = vadd.f32 %v258, 0.0
    %v275 = vadd.f32 %v259, 0.0
    %v276 = vadd.f32 %v260, 0.0
    %v277 = vadd.f32 %v261, 0.0
    %v278 = vlaneseq
    %v279 = vshrl.u32 %v278, 7
    %v280 = vadd.s32 %v279, 1
    %281 = vset.pattern.permute.xlu0 %v280
    %282 = vperm.xlu0 %281, %v147
    %v283 = vpop.permute.xlu0 %282
    %v284 = vlaneseq
    %v285 = vshrl.u32 %v284, 7
    %v286 = vadd.s32 %v285, 9
    %287 = vset.pattern.permute.xlu0 %v286
    %288 = vperm.xlu0 %287, %v147
    %v289 = vpop.permute.xlu0 %288
    %v290 = vlaneseq
    %v291 = vshrl.u32 %v290, 7
    %v292 = vadd.s32 %v291, 17
    %293 = vset.pattern.permute.xlu0 %v292
    %294 = vperm.xlu0 %293, %v147
    %v295 = vpop.permute.xlu0 %294
    %v296 = vlaneseq
    %v297 = vshrl.u32 %v296, 7
    %v298 = vadd.s32 %v297, 25
    %299 = vset.pattern.permute.xlu0 %v298
    %300 = vperm.xlu0 %299, %v147
    %v301 = vpop.permute.xlu0 %300
    %v302 = vlaneseq
    %v303 = vshrl.u32 %v302, 7
    %v304 = vadd.s32 %v303, 33
    %305 = vset.pattern.permute.xlu0 %v304
    %306 = vperm.xlu0 %305, %v147
    %v307 = vpop.permute.xlu0 %306
    %v308 = vlaneseq
    %v309 = vshrl.u32 %v308, 7
    %v310 = vadd.s32 %v309, 41
    %311 = vset.pattern.permute.xlu0 %v310
    %312 = vperm.xlu0 %311, %v147
    %v313 = vpop.permute.xlu0 %312
    %v314 = vlaneseq
    %v315 = vshrl.u32 %v314, 7
    %v316 = vadd.s32 %v315, 49
    %317 = vset.pattern.permute.xlu0 %v316
    %318 = vperm.xlu0 %317, %v147
    %v319 = vpop.permute.xlu0 %318
    %v320 = vlaneseq
    %v321 = vshrl.u32 %v320, 7
    %v322 = vadd.s32 %v321, 57
    %323 = vset.pattern.permute.xlu0 %v322
    %324 = vperm.xlu0 %323, %v147
    %v325 = vpop.permute.xlu0 %324
    %v326 = vlaneseq
    %v327 = vshrl.u32 %v326, 7
    %v328 = vadd.s32 %v327, 1
    %329 = vset.pattern.permute.xlu0 %v328
    %330 = vperm.xlu0 %329, %v196
    %v331 = vpop.permute.xlu0 %330
    %v332 = vlaneseq
    %v333 = vshrl.u32 %v332, 7
    %v334 = vadd.s32 %v333, 9
    %335 = vset.pattern.permute.xlu0 %v334
    %336 = vperm.xlu0 %335, %v196
    %v337 = vpop.permute.xlu0 %336
    %v338 = vlaneseq
    %v339 = vshrl.u32 %v338, 7
    %v340 = vadd.s32 %v339, 17
    %341 = vset.pattern.permute.xlu0 %v340
    %342 = vperm.xlu0 %341, %v196
    %v343 = vpop.permute.xlu0 %342
    %v344 = vlaneseq
    %v345 = vshrl.u32 %v344, 7
    %v346 = vadd.s32 %v345, 25
    %347 = vset.pattern.permute.xlu0 %v346
    %348 = vperm.xlu0 %347, %v196
    %v349 = vpop.permute.xlu0 %348
    %v350 = vlaneseq
    %v351 = vshrl.u32 %v350, 7
    %v352 = vadd.s32 %v351, 33
    %353 = vset.pattern.permute.xlu0 %v352
    %354 = vperm.xlu0 %353, %v196
    %v355 = vpop.permute.xlu0 %354
    %v356 = vlaneseq
    %v357 = vshrl.u32 %v356, 7
    %v358 = vadd.s32 %v357, 41
    %359 = vset.pattern.permute.xlu0 %v358
    %360 = vperm.xlu0 %359, %v196
    %v361 = vpop.permute.xlu0 %360
    %v362 = vlaneseq
    %v363 = vshrl.u32 %v362, 7
    %v364 = vadd.s32 %v363, 49
    %365 = vset.pattern.permute.xlu0 %v364
    %366 = vperm.xlu0 %365, %v196
    %v367 = vpop.permute.xlu0 %366
    %v368 = vlaneseq
    %v369 = vshrl.u32 %v368, 7
    %v370 = vadd.s32 %v369, 57
    %371 = vset.pattern.permute.xlu0 %v370
    %372 = vperm.xlu0 %371, %v196
    %v373 = vpop.permute.xlu0 %372
    %v374 = vperm.slane %v143, 1
    %v375 = vmul.f32 %v283, %v374
    %v376 = vmul.f32 %v289, %v374
    %v377 = vmul.f32 %v295, %v374
    %v378 = vmul.f32 %v301, %v374
    %v379 = vmul.f32 %v307, %v374
    %v380 = vmul.f32 %v313, %v374
    %v381 = vmul.f32 %v319, %v374
    %v382 = vmul.f32 %v325, %v374
    %v383 = vmul.f32 %v331, %v374
    %v384 = vmul.f32 %v337, %v374
    %v385 = vmul.f32 %v343, %v374
    %v386 = vmul.f32 %v349, %v374
    %v387 = vmul.f32 %v355, %v374
    %v388 = vmul.f32 %v361, %v374
    %v389 = vmul.f32 %v367, %v374
    %v390 = vmul.f32 %v373, %v374
    %v391 = vadd.f32 %v262, %v375
    %v392 = vadd.f32 %v263, %v376
    %v393 = vadd.f32 %v264, %v377
    %v394 = vadd.f32 %v265, %v378
    %v395 = vadd.f32 %v266, %v379
    %v396 = vadd.f32 %v267, %v380
    %v397 = vadd.f32 %v268, %v381
    %v398 = vadd.f32 %v269, %v382
    %v399 = vadd.f32 %v270, %v383
    %v400 = vadd.f32 %v271, %v384
    %v401 = vadd.f32 %v272, %v385
    %v402 = vadd.f32 %v273, %v386
    %v403 = vadd.f32 %v274, %v387
    %v404 = vadd.f32 %v275, %v388
    %v405 = vadd.f32 %v276, %v389
    %v406 = vadd.f32 %v277, %v390
    %v407 = vlaneseq
    %v408 = vshrl.u32 %v407, 7
    %v409 = vadd.s32 %v408, 2
    %410 = vset.pattern.permute.xlu0 %v409
    %411 = vperm.xlu0 %410, %v147
    %v412 = vpop.permute.xlu0 %411
    %v413 = vlaneseq
    %v414 = vshrl.u32 %v413, 7
    %v415 = vadd.s32 %v414, 10
    %416 = vset.pattern.permute.xlu0 %v415
    %417 = vperm.xlu0 %416, %v147
    %v418 = vpop.permute.xlu0 %417
    %v419 = vlaneseq
    %v420 = vshrl.u32 %v419, 7
    %v421 = vadd.s32 %v420, 18
    %422 = vset.pattern.permute.xlu0 %v421
    %423 = vperm.xlu0 %422, %v147
    %v424 = vpop.permute.xlu0 %423
    %v425 = vlaneseq
    %v426 = vshrl.u32 %v425, 7
    %v427 = vadd.s32 %v426, 26
    %428 = vset.pattern.permute.xlu0 %v427
    %429 = vperm.xlu0 %428, %v147
    %v430 = vpop.permute.xlu0 %429
    %v431 = vlaneseq
    %v432 = vshrl.u32 %v431, 7
    %v433 = vadd.s32 %v432, 34
    %434 = vset.pattern.permute.xlu0 %v433
    %435 = vperm.xlu0 %434, %v147
    %v436 = vpop.permute.xlu0 %435
    %v437 = vlaneseq
    %v438 = vshrl.u32 %v437, 7
    %v439 = vadd.s32 %v438, 42
    %440 = vset.pattern.permute.xlu0 %v439
    %441 = vperm.xlu0 %440, %v147
    %v442 = vpop.permute.xlu0 %441
    %v443 = vlaneseq
    %v444 = vshrl.u32 %v443, 7
    %v445 = vadd.s32 %v444, 50
    %446 = vset.pattern.permute.xlu0 %v445
    %447 = vperm.xlu0 %446, %v147
    %v448 = vpop.permute.xlu0 %447
    %v449 = vlaneseq
    %v450 = vshrl.u32 %v449, 7
    %v451 = vadd.s32 %v450, 58
    %452 = vset.pattern.permute.xlu0 %v451
    %453 = vperm.xlu0 %452, %v147
    %v454 = vpop.permute.xlu0 %453
    %v455 = vlaneseq
    %v456 = vshrl.u32 %v455, 7
    %v457 = vadd.s32 %v456, 2
    %458 = vset.pattern.permute.xlu0 %v457
    %459 = vperm.xlu0 %458, %v196
    %v460 = vpop.permute.xlu0 %459
    %v461 = vlaneseq
    %v462 = vshrl.u32 %v461, 7
    %v463 = vadd.s32 %v462, 10
    %464 = vset.pattern.permute.xlu0 %v463
    %465 = vperm.xlu0 %464, %v196
    %v466 = vpop.permute.xlu0 %465
    %v467 = vlaneseq
    %v468 = vshrl.u32 %v467, 7
    %v469 = vadd.s32 %v468, 18
    %470 = vset.pattern.permute.xlu0 %v469
    %471 = vperm.xlu0 %470, %v196
    %v472 = vpop.permute.xlu0 %471
    %v473 = vlaneseq
    %v474 = vshrl.u32 %v473, 7
    %v475 = vadd.s32 %v474, 26
    %476 = vset.pattern.permute.xlu0 %v475
    %477 = vperm.xlu0 %476, %v196
    %v478 = vpop.permute.xlu0 %477
    %v479 = vlaneseq
    %v480 = vshrl.u32 %v479, 7
    %v481 = vadd.s32 %v480, 34
    %482 = vset.pattern.permute.xlu0 %v481
    %483 = vperm.xlu0 %482, %v196
    %v484 = vpop.permute.xlu0 %483
    %v485 = vlaneseq
    %v486 = vshrl.u32 %v485, 7
    %v487 = vadd.s32 %v486, 42
    %488 = vset.pattern.permute.xlu0 %v487
    %489 = vperm.xlu0 %488, %v196
    %v490 = vpop.permute.xlu0 %489
    %v491 = vlaneseq
    %v492 = vshrl.u32 %v491, 7
    %v493 = vadd.s32 %v492, 50
    %494 = vset.pattern.permute.xlu0 %v493
    %495 = vperm.xlu0 %494, %v196
    %v496 = vpop.permute.xlu0 %495
    %v497 = vlaneseq
    %v498 = vshrl.u32 %v497, 7
    %v499 = vadd.s32 %v498, 58
    %500 = vset.pattern.permute.xlu0 %v499
    %501 = vperm.xlu0 %500, %v196
    %v502 = vpop.permute.xlu0 %501
    %v503 = vperm.slane %v143, 2
    %v504 = vmul.f32 %v412, %v503
    %v505 = vmul.f32 %v418, %v503
    %v506 = vmul.f32 %v424, %v503
    %v507 = vmul.f32 %v430, %v503
    %v508 = vmul.f32 %v436, %v503
    %v509 = vmul.f32 %v442, %v503
    %v510 = vmul.f32 %v448, %v503
    %v511 = vmul.f32 %v454, %v503
    %v512 = vmul.f32 %v460, %v503
    %v513 = vmul.f32 %v466, %v503
    %v514 = vmul.f32 %v472, %v503
    %v515 = vmul.f32 %v478, %v503
    %v516 = vmul.f32 %v484, %v503
    %v517 = vmul.f32 %v490, %v503
    %v518 = vmul.f32 %v496, %v503
    %v519 = vmul.f32 %v502, %v503
    %v520 = vadd.f32 %v391, %v504
    %v521 = vadd.f32 %v392, %v505
    %v522 = vadd.f32 %v393, %v506
    %v523 = vadd.f32 %v394, %v507
    %v524 = vadd.f32 %v395, %v508
    %v525 = vadd.f32 %v396, %v509
    %v526 = vadd.f32 %v397, %v510
    %v527 = vadd.f32 %v398, %v511
    %v528 = vadd.f32 %v399, %v512
    %v529 = vadd.f32 %v400, %v513
    %v530 = vadd.f32 %v401, %v514
    %v531 = vadd.f32 %v402, %v515
    %v532 = vadd.f32 %v403, %v516
    %v533 = vadd.f32 %v404, %v517
    %v534 = vadd.f32 %v405, %v518
    %v535 = vadd.f32 %v406, %v519
    %v536 = vlaneseq
    %v537 = vshrl.u32 %v536, 7
    %v538 = vadd.s32 %v537, 3
    %539 = vset.pattern.permute.xlu0 %v538
    %540 = vperm.xlu0 %539, %v147
    %v541 = vpop.permute.xlu0 %540
    %v542 = vlaneseq
    %v543 = vshrl.u32 %v542, 7
    %v544 = vadd.s32 %v543, 11
    %545 = vset.pattern.permute.xlu0 %v544
    %546 = vperm.xlu0 %545, %v147
    %v547 = vpop.permute.xlu0 %546
    %v548 = vlaneseq
    %v549 = vshrl.u32 %v548, 7
    %v550 = vadd.s32 %v549, 19
    %551 = vset.pattern.permute.xlu0 %v550
    %552 = vperm.xlu0 %551, %v147
    %v553 = vpop.permute.xlu0 %552
    %v554 = vlaneseq
    %v555 = vshrl.u32 %v554, 7
    %v556 = vadd.s32 %v555, 27
    %557 = vset.pattern.permute.xlu0 %v556
    %558 = vperm.xlu0 %557, %v147
    %v559 = vpop.permute.xlu0 %558
    %v560 = vlaneseq
    %v561 = vshrl.u32 %v560, 7
    %v562 = vadd.s32 %v561, 35
    %563 = vset.pattern.permute.xlu0 %v562
    %564 = vperm.xlu0 %563, %v147
    %v565 = vpop.permute.xlu0 %564
    %v566 = vlaneseq
    %v567 = vshrl.u32 %v566, 7
    %v568 = vadd.s32 %v567, 43
    %569 = vset.pattern.permute.xlu0 %v568
    %570 = vperm.xlu0 %569, %v147
    %v571 = vpop.permute.xlu0 %570
    %v572 = vlaneseq
    %v573 = vshrl.u32 %v572, 7
    %v574 = vadd.s32 %v573, 51
    %575 = vset.pattern.permute.xlu0 %v574
    %576 = vperm.xlu0 %575, %v147
    %v577 = vpop.permute.xlu0 %576
    %v578 = vlaneseq
    %v579 = vshrl.u32 %v578, 7
    %v580 = vadd.s32 %v579, 59
    %581 = vset.pattern.permute.xlu0 %v580
    %582 = vperm.xlu0 %581, %v147
    %v583 = vpop.permute.xlu0 %582
    %v584 = vlaneseq
    %v585 = vshrl.u32 %v584, 7
    %v586 = vadd.s32 %v585, 3
    %587 = vset.pattern.permute.xlu0 %v586
    %588 = vperm.xlu0 %587, %v196
    %v589 = vpop.permute.xlu0 %588
    %v590 = vlaneseq
    %v591 = vshrl.u32 %v590, 7
    %v592 = vadd.s32 %v591, 11
    %593 = vset.pattern.permute.xlu0 %v592
    %594 = vperm.xlu0 %593, %v196
    %v595 = vpop.permute.xlu0 %594
    %v596 = vlaneseq
    %v597 = vshrl.u32 %v596, 7
    %v598 = vadd.s32 %v597, 19
    %599 = vset.pattern.permute.xlu0 %v598
    %600 = vperm.xlu0 %599, %v196
    %v601 = vpop.permute.xlu0 %600
    %v602 = vlaneseq
    %v603 = vshrl.u32 %v602, 7
    %v604 = vadd.s32 %v603, 27
    %605 = vset.pattern.permute.xlu0 %v604
    %606 = vperm.xlu0 %605, %v196
    %v607 = vpop.permute.xlu0 %606
    %v608 = vlaneseq
    %v609 = vshrl.u32 %v608, 7
    %v610 = vadd.s32 %v609, 35
    %611 = vset.pattern.permute.xlu0 %v610
    %612 = vperm.xlu0 %611, %v196
    %v613 = vpop.permute.xlu0 %612
    %v614 = vlaneseq
    %v615 = vshrl.u32 %v614, 7
    %v616 = vadd.s32 %v615, 43
    %617 = vset.pattern.permute.xlu0 %v616
    %618 = vperm.xlu0 %617, %v196
    %v619 = vpop.permute.xlu0 %618
    %v620 = vlaneseq
    %v621 = vshrl.u32 %v620, 7
    %v622 = vadd.s32 %v621, 51
    %623 = vset.pattern.permute.xlu0 %v622
    %624 = vperm.xlu0 %623, %v196
    %v625 = vpop.permute.xlu0 %624
    %v626 = vlaneseq
    %v627 = vshrl.u32 %v626, 7
    %v628 = vadd.s32 %v627, 59
    %629 = vset.pattern.permute.xlu0 %v628
    %630 = vperm.xlu0 %629, %v196
    %v631 = vpop.permute.xlu0 %630
    %v632 = vperm.slane %v143, 3
    %v633 = vmul.f32 %v541, %v632
    %v634 = vmul.f32 %v547, %v632
    %v635 = vmul.f32 %v553, %v632
    %v636 = vmul.f32 %v559, %v632
    %v637 = vmul.f32 %v565, %v632
    %v638 = vmul.f32 %v571, %v632
    %v639 = vmul.f32 %v577, %v632
    %v640 = vmul.f32 %v583, %v632
    %v641 = vmul.f32 %v589, %v632
    %v642 = vmul.f32 %v595, %v632
    %v643 = vmul.f32 %v601, %v632
    %v644 = vmul.f32 %v607, %v632
    %v645 = vmul.f32 %v613, %v632
    %v646 = vmul.f32 %v619, %v632
    %v647 = vmul.f32 %v625, %v632
    %v648 = vmul.f32 %v631, %v632
    %v649 = vadd.f32 %v520, %v633
    %v650 = vadd.f32 %v521, %v634
    %v651 = vadd.f32 %v522, %v635
    %v652 = vadd.f32 %v523, %v636
    %v653 = vadd.f32 %v524, %v637
    %v654 = vadd.f32 %v525, %v638
    %v655 = vadd.f32 %v526, %v639
    %v656 = vadd.f32 %v527, %v640
    %v657 = vadd.f32 %v528, %v641
    %v658 = vadd.f32 %v529, %v642
    %v659 = vadd.f32 %v530, %v643
    %v660 = vadd.f32 %v531, %v644
    %v661 = vadd.f32 %v532, %v645
    %v662 = vadd.f32 %v533, %v646
    %v663 = vadd.f32 %v534, %v647
    %v664 = vadd.f32 %v535, %v648
    %v665 = vlaneseq
    %v666 = vshrl.u32 %v665, 7
    %v667 = vadd.s32 %v666, 4
    %668 = vset.pattern.permute.xlu0 %v667
    %669 = vperm.xlu0 %668, %v147
    %v670 = vpop.permute.xlu0 %669
    %v671 = vlaneseq
    %v672 = vshrl.u32 %v671, 7
    %v673 = vadd.s32 %v672, 12
    %674 = vset.pattern.permute.xlu0 %v673
    %675 = vperm.xlu0 %674, %v147
    %v676 = vpop.permute.xlu0 %675
    %v677 = vlaneseq
    %v678 = vshrl.u32 %v677, 7
    %v679 = vadd.s32 %v678, 20
    %680 = vset.pattern.permute.xlu0 %v679
    %681 = vperm.xlu0 %680, %v147
    %v682 = vpop.permute.xlu0 %681
    %v683 = vlaneseq
    %v684 = vshrl.u32 %v683, 7
    %v685 = vadd.s32 %v684, 28
    %686 = vset.pattern.permute.xlu0 %v685
    %687 = vperm.xlu0 %686, %v147
    %v688 = vpop.permute.xlu0 %687
    %v689 = vlaneseq
    %v690 = vshrl.u32 %v689, 7
    %v691 = vadd.s32 %v690, 36
    %692 = vset.pattern.permute.xlu0 %v691
    %693 = vperm.xlu0 %692, %v147
    %v694 = vpop.permute.xlu0 %693
    %v695 = vlaneseq
    %v696 = vshrl.u32 %v695, 7
    %v697 = vadd.s32 %v696, 44
    %698 = vset.pattern.permute.xlu0 %v697
    %699 = vperm.xlu0 %698, %v147
    %v700 = vpop.permute.xlu0 %699
    %v701 = vlaneseq
    %v702 = vshrl.u32 %v701, 7
    %v703 = vadd.s32 %v702, 52
    %704 = vset.pattern.permute.xlu0 %v703
    %705 = vperm.xlu0 %704, %v147
    %v706 = vpop.permute.xlu0 %705
    %v707 = vlaneseq
    %v708 = vshrl.u32 %v707, 7
    %v709 = vadd.s32 %v708, 60
    %710 = vset.pattern.permute.xlu0 %v709
    %711 = vperm.xlu0 %710, %v147
    %v712 = vpop.permute.xlu0 %711
    %v713 = vlaneseq
    %v714 = vshrl.u32 %v713, 7
    %v715 = vadd.s32 %v714, 4
    %716 = vset.pattern.permute.xlu0 %v715
    %717 = vperm.xlu0 %716, %v196
    %v718 = vpop.permute.xlu0 %717
    %v719 = vlaneseq
    %v720 = vshrl.u32 %v719, 7
    %v721 = vadd.s32 %v720, 12
    %722 = vset.pattern.permute.xlu0 %v721
    %723 = vperm.xlu0 %722, %v196
    %v724 = vpop.permute.xlu0 %723
    %v725 = vlaneseq
    %v726 = vshrl.u32 %v725, 7
    %v727 = vadd.s32 %v726, 20
    %728 = vset.pattern.permute.xlu0 %v727
    %729 = vperm.xlu0 %728, %v196
    %v730 = vpop.permute.xlu0 %729
    %v731 = vlaneseq
    %v732 = vshrl.u32 %v731, 7
    %v733 = vadd.s32 %v732, 28
    %734 = vset.pattern.permute.xlu0 %v733
    %735 = vperm.xlu0 %734, %v196
    %v736 = vpop.permute.xlu0 %735
    %v737 = vlaneseq
    %v738 = vshrl.u32 %v737, 7
    %v739 = vadd.s32 %v738, 36
    %740 = vset.pattern.permute.xlu0 %v739
    %741 = vperm.xlu0 %740, %v196
    %v742 = vpop.permute.xlu0 %741
    %v743 = vlaneseq
    %v744 = vshrl.u32 %v743, 7
    %v745 = vadd.s32 %v744, 44
    %746 = vset.pattern.permute.xlu0 %v745
    %747 = vperm.xlu0 %746, %v196
    %v748 = vpop.permute.xlu0 %747
    %v749 = vlaneseq
    %v750 = vshrl.u32 %v749, 7
    %v751 = vadd.s32 %v750, 52
    %752 = vset.pattern.permute.xlu0 %v751
    %753 = vperm.xlu0 %752, %v196
    %v754 = vpop.permute.xlu0 %753
    %v755 = vlaneseq
    %v756 = vshrl.u32 %v755, 7
    %v757 = vadd.s32 %v756, 60
    %758 = vset.pattern.permute.xlu0 %v757
    %759 = vperm.xlu0 %758, %v196
    %v760 = vpop.permute.xlu0 %759
    %v761 = vperm.slane %v143, 4
    %v762 = vmul.f32 %v670, %v761
    %v763 = vmul.f32 %v676, %v761
    %v764 = vmul.f32 %v682, %v761
    %v765 = vmul.f32 %v688, %v761
    %v766 = vmul.f32 %v694, %v761
    %v767 = vmul.f32 %v700, %v761
    %v768 = vmul.f32 %v706, %v761
    %v769 = vmul.f32 %v712, %v761
    %v770 = vmul.f32 %v718, %v761
    %v771 = vmul.f32 %v724, %v761
    %v772 = vmul.f32 %v730, %v761
    %v773 = vmul.f32 %v736, %v761
    %v774 = vmul.f32 %v742, %v761
    %v775 = vmul.f32 %v748, %v761
    %v776 = vmul.f32 %v754, %v761
    %v777 = vmul.f32 %v760, %v761
    %v778 = vadd.f32 %v649, %v762
    %v779 = vadd.f32 %v650, %v763
    %v780 = vadd.f32 %v651, %v764
    %v781 = vadd.f32 %v652, %v765
    %v782 = vadd.f32 %v653, %v766
    %v783 = vadd.f32 %v654, %v767
    %v784 = vadd.f32 %v655, %v768
    %v785 = vadd.f32 %v656, %v769
    %v786 = vadd.f32 %v657, %v770
    %v787 = vadd.f32 %v658, %v771
    %v788 = vadd.f32 %v659, %v772
    %v789 = vadd.f32 %v660, %v773
    %v790 = vadd.f32 %v661, %v774
    %v791 = vadd.f32 %v662, %v775
    %v792 = vadd.f32 %v663, %v776
    %v793 = vadd.f32 %v664, %v777
    %v794 = vlaneseq
    %v795 = vshrl.u32 %v794, 7
    %v796 = vadd.s32 %v795, 5
    %797 = vset.pattern.permute.xlu0 %v796
    %798 = vperm.xlu0 %797, %v147
    %v799 = vpop.permute.xlu0 %798
    %v800 = vlaneseq
    %v801 = vshrl.u32 %v800, 7
    %v802 = vadd.s32 %v801, 13
    %803 = vset.pattern.permute.xlu0 %v802
    %804 = vperm.xlu0 %803, %v147
    %v805 = vpop.permute.xlu0 %804
    %v806 = vlaneseq
    %v807 = vshrl.u32 %v806, 7
    %v808 = vadd.s32 %v807, 21
    %809 = vset.pattern.permute.xlu0 %v808
    %810 = vperm.xlu0 %809, %v147
    %v811 = vpop.permute.xlu0 %810
    %v812 = vlaneseq
    %v813 = vshrl.u32 %v812, 7
    %v814 = vadd.s32 %v813, 29
    %815 = vset.pattern.permute.xlu0 %v814
    %816 = vperm.xlu0 %815, %v147
    %v817 = vpop.permute.xlu0 %816
    %v818 = vlaneseq
    %v819 = vshrl.u32 %v818, 7
    %v820 = vadd.s32 %v819, 37
    %821 = vset.pattern.permute.xlu0 %v820
    %822 = vperm.xlu0 %821, %v147
    %v823 = vpop.permute.xlu0 %822
    %v824 = vlaneseq
    %v825 = vshrl.u32 %v824, 7
    %v826 = vadd.s32 %v825, 45
    %827 = vset.pattern.permute.xlu0 %v826
    %828 = vperm.xlu0 %827, %v147
    %v829 = vpop.permute.xlu0 %828
    %v830 = vlaneseq
    %v831 = vshrl.u32 %v830, 7
    %v832 = vadd.s32 %v831, 53
    %833 = vset.pattern.permute.xlu0 %v832
    %834 = vperm.xlu0 %833, %v147
    %v835 = vpop.permute.xlu0 %834
    %v836 = vlaneseq
    %v837 = vshrl.u32 %v836, 7
    %v838 = vadd.s32 %v837, 61
    %839 = vset.pattern.permute.xlu0 %v838
    %840 = vperm.xlu0 %839, %v147
    %v841 = vpop.permute.xlu0 %840
    %v842 = vlaneseq
    %v843 = vshrl.u32 %v842, 7
    %v844 = vadd.s32 %v843, 5
    %845 = vset.pattern.permute.xlu0 %v844
    %846 = vperm.xlu0 %845, %v196
    %v847 = vpop.permute.xlu0 %846
    %v848 = vlaneseq
    %v849 = vshrl.u32 %v848, 7
    %v850 = vadd.s32 %v849, 13
    %851 = vset.pattern.permute.xlu0 %v850
    %852 = vperm.xlu0 %851, %v196
    %v853 = vpop.permute.xlu0 %852
    %v854 = vlaneseq
    %v855 = vshrl.u32 %v854, 7
    %v856 = vadd.s32 %v855, 21
    %857 = vset.pattern.permute.xlu0 %v856
    %858 = vperm.xlu0 %857, %v196
    %v859 = vpop.permute.xlu0 %858
    %v860 = vlaneseq
    %v861 = vshrl.u32 %v860, 7
    %v862 = vadd.s32 %v861, 29
    %863 = vset.pattern.permute.xlu0 %v862
    %864 = vperm.xlu0 %863, %v196
    %v865 = vpop.permute.xlu0 %864
    %v866 = vlaneseq
    %v867 = vshrl.u32 %v866, 7
    %v868 = vadd.s32 %v867, 37
    %869 = vset.pattern.permute.xlu0 %v868
    %870 = vperm.xlu0 %869, %v196
    %v871 = vpop.permute.xlu0 %870
    %v872 = vlaneseq
    %v873 = vshrl.u32 %v872, 7
    %v874 = vadd.s32 %v873, 45
    %875 = vset.pattern.permute.xlu0 %v874
    %876 = vperm.xlu0 %875, %v196
    %v877 = vpop.permute.xlu0 %876
    %v878 = vlaneseq
    %v879 = vshrl.u32 %v878, 7
    %v880 = vadd.s32 %v879, 53
    %881 = vset.pattern.permute.xlu0 %v880
    %882 = vperm.xlu0 %881, %v196
    %v883 = vpop.permute.xlu0 %882
    %v884 = vlaneseq
    %v885 = vshrl.u32 %v884, 7
    %v886 = vadd.s32 %v885, 61
    %887 = vset.pattern.permute.xlu0 %v886
    %888 = vperm.xlu0 %887, %v196
    %v889 = vpop.permute.xlu0 %888
    %v890 = vperm.slane %v143, 5
    %v891 = vmul.f32 %v799, %v890
    %v892 = vmul.f32 %v805, %v890
    %v893 = vmul.f32 %v811, %v890
    %v894 = vmul.f32 %v817, %v890
    %v895 = vmul.f32 %v823, %v890
    %v896 = vmul.f32 %v829, %v890
    %v897 = vmul.f32 %v835, %v890
    %v898 = vmul.f32 %v841, %v890
    %v899 = vmul.f32 %v847, %v890
    %v900 = vmul.f32 %v853, %v890
    %v901 = vmul.f32 %v859, %v890
    %v902 = vmul.f32 %v865, %v890
    %v903 = vmul.f32 %v871, %v890
    %v904 = vmul.f32 %v877, %v890
    %v905 = vmul.f32 %v883, %v890
    %v906 = vmul.f32 %v889, %v890
    %v907 = vadd.f32 %v778, %v891
    %v908 = vadd.f32 %v779, %v892
    %v909 = vadd.f32 %v780, %v893
    %v910 = vadd.f32 %v781, %v894
    %v911 = vadd.f32 %v782, %v895
    %v912 = vadd.f32 %v783, %v896
    %v913 = vadd.f32 %v784, %v897
    %v914 = vadd.f32 %v785, %v898
    %v915 = vadd.f32 %v786, %v899
    %v916 = vadd.f32 %v787, %v900
    %v917 = vadd.f32 %v788, %v901
    %v918 = vadd.f32 %v789, %v902
    %v919 = vadd.f32 %v790, %v903
    %v920 = vadd.f32 %v791, %v904
    %v921 = vadd.f32 %v792, %v905
    %v922 = vadd.f32 %v793, %v906
    %v923 = vlaneseq
    %v924 = vshrl.u32 %v923, 7
    %v925 = vadd.s32 %v924, 6
    %926 = vset.pattern.permute.xlu0 %v925
    %927 = vperm.xlu0 %926, %v147
    %v928 = vpop.permute.xlu0 %927
    %v929 = vlaneseq
    %v930 = vshrl.u32 %v929, 7
    %v931 = vadd.s32 %v930, 14
    %932 = vset.pattern.permute.xlu0 %v931
    %933 = vperm.xlu0 %932, %v147
    %v934 = vpop.permute.xlu0 %933
    %v935 = vlaneseq
    %v936 = vshrl.u32 %v935, 7
    %v937 = vadd.s32 %v936, 22
    %938 = vset.pattern.permute.xlu0 %v937
    %939 = vperm.xlu0 %938, %v147
    %v940 = vpop.permute.xlu0 %939
    %v941 = vlaneseq
    %v942 = vshrl.u32 %v941, 7
    %v943 = vadd.s32 %v942, 30
    %944 = vset.pattern.permute.xlu0 %v943
    %945 = vperm.xlu0 %944, %v147
    %v946 = vpop.permute.xlu0 %945
    %v947 = vlaneseq
    %v948 = vshrl.u32 %v947, 7
    %v949 = vadd.s32 %v948, 38
    %950 = vset.pattern.permute.xlu0 %v949
    %951 = vperm.xlu0 %950, %v147
    %v952 = vpop.permute.xlu0 %951
    %v953 = vlaneseq
    %v954 = vshrl.u32 %v953, 7
    %v955 = vadd.s32 %v954, 46
    %956 = vset.pattern.permute.xlu0 %v955
    %957 = vperm.xlu0 %956, %v147
    %v958 = vpop.permute.xlu0 %957
    %v959 = vlaneseq
    %v960 = vshrl.u32 %v959, 7
    %v961 = vadd.s32 %v960, 54
    %962 = vset.pattern.permute.xlu0 %v961
    %963 = vperm.xlu0 %962, %v147
    %v964 = vpop.permute.xlu0 %963
    %v965 = vlaneseq
    %v966 = vshrl.u32 %v965, 7
    %v967 = vadd.s32 %v966, 62
    %968 = vset.pattern.permute.xlu0 %v967
    %969 = vperm.xlu0 %968, %v147
    %v970 = vpop.permute.xlu0 %969
    %v971 = vlaneseq
    %v972 = vshrl.u32 %v971, 7
    %v973 = vadd.s32 %v972, 6
    %974 = vset.pattern.permute.xlu0 %v973
    %975 = vperm.xlu0 %974, %v196
    %v976 = vpop.permute.xlu0 %975
    %v977 = vlaneseq
    %v978 = vshrl.u32 %v977, 7
    %v979 = vadd.s32 %v978, 14
    %980 = vset.pattern.permute.xlu0 %v979
    %981 = vperm.xlu0 %980, %v196
    %v982 = vpop.permute.xlu0 %981
    %v983 = vlaneseq
    %v984 = vshrl.u32 %v983, 7
    %v985 = vadd.s32 %v984, 22
    %986 = vset.pattern.permute.xlu0 %v985
    %987 = vperm.xlu0 %986, %v196
    %v988 = vpop.permute.xlu0 %987
    %v989 = vlaneseq
    %v990 = vshrl.u32 %v989, 7
    %v991 = vadd.s32 %v990, 30
    %992 = vset.pattern.permute.xlu0 %v991
    %993 = vperm.xlu0 %992, %v196
    %v994 = vpop.permute.xlu0 %993
    %v995 = vlaneseq
    %v996 = vshrl.u32 %v995, 7
    %v997 = vadd.s32 %v996, 38
    %998 = vset.pattern.permute.xlu0 %v997
    %999 = vperm.xlu0 %998, %v196
    %v1000 = vpop.permute.xlu0 %999
    %v1001 = vlaneseq
    %v1002 = vshrl.u32 %v1001, 7
    %v1003 = vadd.s32 %v1002, 46
    %1004 = vset.pattern.permute.xlu0 %v1003
    %1005 = vperm.xlu0 %1004, %v196
    %v1006 = vpop.permute.xlu0 %1005
    %v1007 = vlaneseq
    %v1008 = vshrl.u32 %v1007, 7
    %v1009 = vadd.s32 %v1008, 54
    %1010 = vset.pattern.permute.xlu0 %v1009
    %1011 = vperm.xlu0 %1010, %v196
    %v1012 = vpop.permute.xlu0 %1011
    %v1013 = vlaneseq
    %v1014 = vshrl.u32 %v1013, 7
    %v1015 = vadd.s32 %v1014, 62
    %1016 = vset.pattern.permute.xlu0 %v1015
    %1017 = vperm.xlu0 %1016, %v196
    %v1018 = vpop.permute.xlu0 %1017
    %v1019 = vperm.slane %v143, 6
    %v1020 = vmul.f32 %v928, %v1019
    %v1021 = vmul.f32 %v934, %v1019
    %v1022 = vmul.f32 %v940, %v1019
    %v1023 = vmul.f32 %v946, %v1019
    %v1024 = vmul.f32 %v952, %v1019
    %v1025 = vmul.f32 %v958, %v1019
    %v1026 = vmul.f32 %v964, %v1019
    %v1027 = vmul.f32 %v970, %v1019
    %v1028 = vmul.f32 %v976, %v1019
    %v1029 = vmul.f32 %v982, %v1019
    %v1030 = vmul.f32 %v988, %v1019
    %v1031 = vmul.f32 %v994, %v1019
    %v1032 = vmul.f32 %v1000, %v1019
    %v1033 = vmul.f32 %v1006, %v1019
    %v1034 = vmul.f32 %v1012, %v1019
    %v1035 = vmul.f32 %v1018, %v1019
    %v1036 = vadd.f32 %v907, %v1020
    %v1037 = vadd.f32 %v908, %v1021
    %v1038 = vadd.f32 %v909, %v1022
    %v1039 = vadd.f32 %v910, %v1023
    %v1040 = vadd.f32 %v911, %v1024
    %v1041 = vadd.f32 %v912, %v1025
    %v1042 = vadd.f32 %v913, %v1026
    %v1043 = vadd.f32 %v914, %v1027
    %v1044 = vadd.f32 %v915, %v1028
    %v1045 = vadd.f32 %v916, %v1029
    %v1046 = vadd.f32 %v917, %v1030
    %v1047 = vadd.f32 %v918, %v1031
    %v1048 = vadd.f32 %v919, %v1032
    %v1049 = vadd.f32 %v920, %v1033
    %v1050 = vadd.f32 %v921, %v1034
    %v1051 = vadd.f32 %v922, %v1035
    %v1052 = vlaneseq
    %v1053 = vshrl.u32 %v1052, 7
    %v1054 = vadd.s32 %v1053, 7
    %1055 = vset.pattern.permute.xlu0 %v1054
    %1056 = vperm.xlu0 %1055, %v147
    %v1057 = vpop.permute.xlu0 %1056
    %v1058 = vlaneseq
    %v1059 = vshrl.u32 %v1058, 7
    %v1060 = vadd.s32 %v1059, 15
    %1061 = vset.pattern.permute.xlu0 %v1060
    %1062 = vperm.xlu0 %1061, %v147
    %v1063 = vpop.permute.xlu0 %1062
    %v1064 = vlaneseq
    %v1065 = vshrl.u32 %v1064, 7
    %v1066 = vadd.s32 %v1065, 23
    %1067 = vset.pattern.permute.xlu0 %v1066
    %1068 = vperm.xlu0 %1067, %v147
    %v1069 = vpop.permute.xlu0 %1068
    %v1070 = vlaneseq
    %v1071 = vshrl.u32 %v1070, 7
    %v1072 = vadd.s32 %v1071, 31
    %1073 = vset.pattern.permute.xlu0 %v1072
    %1074 = vperm.xlu0 %1073, %v147
    %v1075 = vpop.permute.xlu0 %1074
    %v1076 = vlaneseq
    %v1077 = vshrl.u32 %v1076, 7
    %v1078 = vadd.s32 %v1077, 39
    %1079 = vset.pattern.permute.xlu0 %v1078
    %1080 = vperm.xlu0 %1079, %v147
    %v1081 = vpop.permute.xlu0 %1080
    %v1082 = vlaneseq
    %v1083 = vshrl.u32 %v1082, 7
    %v1084 = vadd.s32 %v1083, 47
    %1085 = vset.pattern.permute.xlu0 %v1084
    %1086 = vperm.xlu0 %1085, %v147
    %v1087 = vpop.permute.xlu0 %1086
    %v1088 = vlaneseq
    %v1089 = vshrl.u32 %v1088, 7
    %v1090 = vadd.s32 %v1089, 55
    %1091 = vset.pattern.permute.xlu0 %v1090
    %1092 = vperm.xlu0 %1091, %v147
    %v1093 = vpop.permute.xlu0 %1092
    %v1094 = vlaneseq
    %v1095 = vshrl.u32 %v1094, 7
    %v1096 = vadd.s32 %v1095, 63
    %1097 = vset.pattern.permute.xlu0 %v1096
    %1098 = vperm.xlu0 %1097, %v147
    %v1099 = vpop.permute.xlu0 %1098
    %v1100 = vlaneseq
    %v1101 = vshrl.u32 %v1100, 7
    %v1102 = vadd.s32 %v1101, 7
    %1103 = vset.pattern.permute.xlu0 %v1102
    %1104 = vperm.xlu0 %1103, %v196
    %v1105 = vpop.permute.xlu0 %1104
    %v1106 = vlaneseq
    %v1107 = vshrl.u32 %v1106, 7
    %v1108 = vadd.s32 %v1107, 15
    %1109 = vset.pattern.permute.xlu0 %v1108
    %1110 = vperm.xlu0 %1109, %v196
    %v1111 = vpop.permute.xlu0 %1110
    %v1112 = vlaneseq
    %v1113 = vshrl.u32 %v1112, 7
    %v1114 = vadd.s32 %v1113, 23
    %1115 = vset.pattern.permute.xlu0 %v1114
    %1116 = vperm.xlu0 %1115, %v196
    %v1117 = vpop.permute.xlu0 %1116
    %v1118 = vlaneseq
    %v1119 = vshrl.u32 %v1118, 7
    %v1120 = vadd.s32 %v1119, 31
    %1121 = vset.pattern.permute.xlu0 %v1120
    %1122 = vperm.xlu0 %1121, %v196
    %v1123 = vpop.permute.xlu0 %1122
    %v1124 = vlaneseq
    %v1125 = vshrl.u32 %v1124, 7
    %v1126 = vadd.s32 %v1125, 39
    %1127 = vset.pattern.permute.xlu0 %v1126
    %1128 = vperm.xlu0 %1127, %v196
    %v1129 = vpop.permute.xlu0 %1128
    %v1130 = vlaneseq
    %v1131 = vshrl.u32 %v1130, 7
    %v1132 = vadd.s32 %v1131, 47
    %1133 = vset.pattern.permute.xlu0 %v1132
    %1134 = vperm.xlu0 %1133, %v196
    %v1135 = vpop.permute.xlu0 %1134
    %v1136 = vlaneseq
    %v1137 = vshrl.u32 %v1136, 7
    %v1138 = vadd.s32 %v1137, 55
    %1139 = vset.pattern.permute.xlu0 %v1138
    %1140 = vperm.xlu0 %1139, %v196
    %v1141 = vpop.permute.xlu0 %1140
    %v1142 = vlaneseq
    %v1143 = vshrl.u32 %v1142, 7
    %v1144 = vadd.s32 %v1143, 63
    %1145 = vset.pattern.permute.xlu0 %v1144
    %1146 = vperm.xlu0 %1145, %v196
    %v1147 = vpop.permute.xlu0 %1146
    %v1148 = vperm.slane %v143, 7
    %v1149 = vmul.f32 %v1057, %v1148
    %v1150 = vmul.f32 %v1063, %v1148
    %v1151 = vmul.f32 %v1069, %v1148
    %v1152 = vmul.f32 %v1075, %v1148
    %v1153 = vmul.f32 %v1081, %v1148
    %v1154 = vmul.f32 %v1087, %v1148
    %v1155 = vmul.f32 %v1093, %v1148
    %v1156 = vmul.f32 %v1099, %v1148
    %v1157 = vmul.f32 %v1105, %v1148
    %v1158 = vmul.f32 %v1111, %v1148
    %v1159 = vmul.f32 %v1117, %v1148
    %v1160 = vmul.f32 %v1123, %v1148
    %v1161 = vmul.f32 %v1129, %v1148
    %v1162 = vmul.f32 %v1135, %v1148
    %v1163 = vmul.f32 %v1141, %v1148
    %v1164 = vmul.f32 %v1147, %v1148
    %v1165 = vadd.f32 %v1036, %v1149
    %v1166 = vadd.f32 %v1037, %v1150
    %v1167 = vadd.f32 %v1038, %v1151
    %v1168 = vadd.f32 %v1039, %v1152
    %v1169 = vadd.f32 %v1040, %v1153
    %v1170 = vadd.f32 %v1041, %v1154
    %v1171 = vadd.f32 %v1042, %v1155
    %v1172 = vadd.f32 %v1043, %v1156
    %v1173 = vadd.f32 %v1044, %v1157
    %v1174 = vadd.f32 %v1045, %v1158
    %v1175 = vadd.f32 %v1046, %v1159
    %v1176 = vadd.f32 %v1047, %v1160
    %v1177 = vadd.f32 %v1048, %v1161
    %v1178 = vadd.f32 %v1049, %v1162
    %v1179 = vadd.f32 %v1050, %v1163
    %v1180 = vadd.f32 %v1051, %v1164
    %v1181 = vlaneseq
    %v1182 = vshrl.u32 %v1181, 7
    %v1183 = vadd.s32 %v1182, 64
    %1184 = vset.pattern.permute.xlu0 %v1183
    %1185 = vperm.xlu0 %1184, %v147
    %v1186 = vpop.permute.xlu0 %1185
    %v1187 = vlaneseq
    %v1188 = vshrl.u32 %v1187, 7
    %v1189 = vadd.s32 %v1188, 64
    %1190 = vset.pattern.permute.xlu0 %v1189
    %1191 = vperm.xlu0 %1190, %v196
    %v1192 = vpop.permute.xlu0 %1191
    %v1193 = vperm.slane %v144, 0
    %v1194 = vmul.f32 %v159, %v1193
    %v1195 = vmul.f32 %v165, %v1193
    %v1196 = vmul.f32 %v171, %v1193
    %v1197 = vmul.f32 %v177, %v1193
    %v1198 = vmul.f32 %v183, %v1193
    %v1199 = vmul.f32 %v189, %v1193
    %v1200 = vmul.f32 %v195, %v1193
    %v1201 = vmul.f32 %v1186, %v1193
    %v1202 = vmul.f32 %v208, %v1193
    %v1203 = vmul.f32 %v214, %v1193
    %v1204 = vmul.f32 %v220, %v1193
    %v1205 = vmul.f32 %v226, %v1193
    %v1206 = vmul.f32 %v232, %v1193
    %v1207 = vmul.f32 %v238, %v1193
    %v1208 = vmul.f32 %v244, %v1193
    %v1209 = vmul.f32 %v1192, %v1193
    %v1210 = vadd.f32 %v1165, %v1194
    %v1211 = vadd.f32 %v1166, %v1195
    %v1212 = vadd.f32 %v1167, %v1196
    %v1213 = vadd.f32 %v1168, %v1197
    %v1214 = vadd.f32 %v1169, %v1198
    %v1215 = vadd.f32 %v1170, %v1199
    %v1216 = vadd.f32 %v1171, %v1200
    %v1217 = vadd.f32 %v1172, %v1201
    %v1218 = vadd.f32 %v1173, %v1202
    %v1219 = vadd.f32 %v1174, %v1203
    %v1220 = vadd.f32 %v1175, %v1204
    %v1221 = vadd.f32 %v1176, %v1205
    %v1222 = vadd.f32 %v1177, %v1206
    %v1223 = vadd.f32 %v1178, %v1207
    %v1224 = vadd.f32 %v1179, %v1208
    %v1225 = vadd.f32 %v1180, %v1209
    %v1226 = vlaneseq
    %v1227 = vshrl.u32 %v1226, 7
    %v1228 = vadd.s32 %v1227, 65
    %1229 = vset.pattern.permute.xlu0 %v1228
    %1230 = vperm.xlu0 %1229, %v147
    %v1231 = vpop.permute.xlu0 %1230
    %v1232 = vlaneseq
    %v1233 = vshrl.u32 %v1232, 7
    %v1234 = vadd.s32 %v1233, 65
    %1235 = vset.pattern.permute.xlu0 %v1234
    %1236 = vperm.xlu0 %1235, %v196
    %v1237 = vpop.permute.xlu0 %1236
    %v1238 = vperm.slane %v144, 1
    %v1239 = vmul.f32 %v289, %v1238
    %v1240 = vmul.f32 %v295, %v1238
    %v1241 = vmul.f32 %v301, %v1238
    %v1242 = vmul.f32 %v307, %v1238
    %v1243 = vmul.f32 %v313, %v1238
    %v1244 = vmul.f32 %v319, %v1238
    %v1245 = vmul.f32 %v325, %v1238
    %v1246 = vmul.f32 %v1231, %v1238
    %v1247 = vmul.f32 %v337, %v1238
    %v1248 = vmul.f32 %v343, %v1238
    %v1249 = vmul.f32 %v349, %v1238
    %v1250 = vmul.f32 %v355, %v1238
    %v1251 = vmul.f32 %v361, %v1238
    %v1252 = vmul.f32 %v367, %v1238
    %v1253 = vmul.f32 %v373, %v1238
    %v1254 = vmul.f32 %v1237, %v1238
    %v1255 = vadd.f32 %v1210, %v1239
    %v1256 = vadd.f32 %v1211, %v1240
    %v1257 = vadd.f32 %v1212, %v1241
    %v1258 = vadd.f32 %v1213, %v1242
    %v1259 = vadd.f32 %v1214, %v1243
    %v1260 = vadd.f32 %v1215, %v1244
    %v1261 = vadd.f32 %v1216, %v1245
    %v1262 = vadd.f32 %v1217, %v1246
    %v1263 = vadd.f32 %v1218, %v1247
    %v1264 = vadd.f32 %v1219, %v1248
    %v1265 = vadd.f32 %v1220, %v1249
    %v1266 = vadd.f32 %v1221, %v1250
    %v1267 = vadd.f32 %v1222, %v1251
    %v1268 = vadd.f32 %v1223, %v1252
    %v1269 = vadd.f32 %v1224, %v1253
    %v1270 = vadd.f32 %v1225, %v1254
    %v1271 = vlaneseq
    %v1272 = vshrl.u32 %v1271, 7
    %v1273 = vadd.s32 %v1272, 66
    %1274 = vset.pattern.permute.xlu0 %v1273
    %1275 = vperm.xlu0 %1274, %v147
    %v1276 = vpop.permute.xlu0 %1275
    %v1277 = vlaneseq
    %v1278 = vshrl.u32 %v1277, 7
    %v1279 = vadd.s32 %v1278, 66
    %1280 = vset.pattern.permute.xlu0 %v1279
    %1281 = vperm.xlu0 %1280, %v196
    %v1282 = vpop.permute.xlu0 %1281
    %v1283 = vperm.slane %v144, 2
    %v1284 = vmul.f32 %v418, %v1283
    %v1285 = vmul.f32 %v424, %v1283
    %v1286 = vmul.f32 %v430, %v1283
    %v1287 = vmul.f32 %v436, %v1283
    %v1288 = vmul.f32 %v442, %v1283
    %v1289 = vmul.f32 %v448, %v1283
    %v1290 = vmul.f32 %v454, %v1283
    %v1291 = vmul.f32 %v1276, %v1283
    %v1292 = vmul.f32 %v466, %v1283
    %v1293 = vmul.f32 %v472, %v1283
    %v1294 = vmul.f32 %v478, %v1283
    %v1295 = vmul.f32 %v484, %v1283
    %v1296 = vmul.f32 %v490, %v1283
    %v1297 = vmul.f32 %v496, %v1283
    %v1298 = vmul.f32 %v502, %v1283
    %v1299 = vmul.f32 %v1282, %v1283
    %v1300 = vadd.f32 %v1255, %v1284
    %v1301 = vadd.f32 %v1256, %v1285
    %v1302 = vadd.f32 %v1257, %v1286
    %v1303 = vadd.f32 %v1258, %v1287
    %v1304 = vadd.f32 %v1259, %v1288
    %v1305 = vadd.f32 %v1260, %v1289
    %v1306 = vadd.f32 %v1261, %v1290
    %v1307 = vadd.f32 %v1262, %v1291
    %v1308 = vadd.f32 %v1263, %v1292
    %v1309 = vadd.f32 %v1264, %v1293
    %v1310 = vadd.f32 %v1265, %v1294
    %v1311 = vadd.f32 %v1266, %v1295
    %v1312 = vadd.f32 %v1267, %v1296
    %v1313 = vadd.f32 %v1268, %v1297
    %v1314 = vadd.f32 %v1269, %v1298
    %v1315 = vadd.f32 %v1270, %v1299
    %v1317 = vperm.slane %v145, 0
    %v1319 = vmul.f32 %v1300, %v1317
    %v1320 = vmul.f32 %v1301, %v1317
    %v1321 = vmul.f32 %v1302, %v1317
    %v1322 = vmul.f32 %v1303, %v1317
    %v1323 = vmul.f32 %v1304, %v1317
    %v1324 = vmul.f32 %v1305, %v1317
    %v1325 = vmul.f32 %v1306, %v1317
    %v1326 = vmul.f32 %v1307, %v1317
    %v1327 = vmul.f32 %v1308, %v1317
    %v1328 = vmul.f32 %v1309, %v1317
    %v1329 = vmul.f32 %v1310, %v1317
    %v1330 = vmul.f32 %v1311, %v1317
    %v1331 = vmul.f32 %v1312, %v1317
    %v1332 = vmul.f32 %v1313, %v1317
    %v1333 = vmul.f32 %v1314, %v1317
    %v1334 = vmul.f32 %v1315, %v1317
    %v1336 = vperm.slane %v146, 0
    %v1338 = vadd.f32 %v1319, %v1336
    %v1339 = vadd.f32 %v1320, %v1336
    %v1340 = vadd.f32 %v1321, %v1336
    %v1341 = vadd.f32 %v1322, %v1336
    %v1342 = vadd.f32 %v1323, %v1336
    %v1343 = vadd.f32 %v1324, %v1336
    %v1344 = vadd.f32 %v1325, %v1336
    %v1345 = vadd.f32 %v1326, %v1336
    %v1346 = vadd.f32 %v1327, %v1336
    %v1347 = vadd.f32 %v1328, %v1336
    %v1348 = vadd.f32 %v1329, %v1336
    %v1349 = vadd.f32 %v1330, %v1336
    %v1350 = vadd.f32 %v1331, %v1336
    %v1351 = vadd.f32 %v1332, %v1336
    %v1352 = vadd.f32 %v1333, %v1336
    %v1353 = vadd.f32 %v1334, %v1336
    %v1354 = vmax.f32 %v1338, 0.0
    %v1355 = vmax.f32 %v1339, 0.0
    %v1356 = vmax.f32 %v1340, 0.0
    %v1357 = vmax.f32 %v1341, 0.0
    %v1358 = vmax.f32 %v1342, 0.0
    %v1359 = vmax.f32 %v1343, 0.0
    %v1360 = vmax.f32 %v1344, 0.0
    %v1361 = vmax.f32 %v1345, 0.0
    %v1362 = vmax.f32 %v1346, 0.0
    %v1363 = vmax.f32 %v1347, 0.0
    %v1364 = vmax.f32 %v1348, 0.0
    %v1365 = vmax.f32 %v1349, 0.0
    %v1366 = vmax.f32 %v1350, 0.0
    %v1367 = vmax.f32 %v1351, 0.0
    %v1368 = vmax.f32 %v1352, 0.0
    %v1369 = vmax.f32 %v1353, 0.0
    %v1372 = vrot.slane %v1354, 1
    %v1373 = vrot.slane %v1362, 1
    %v1376 = vmax.f32 %v1354, %v1372
    %v1377 = vmax.f32 %v1362, %v1373
    %v1378 = vrot.slane %v1354, 2
    %v1379 = vrot.slane %v1362, 2
    %v1382 = vmax.f32 %v1376, %v1378
    %v1383 = vmax.f32 %v1377, %v1379
    %v1384 = vrot.slane %v1354, 3
    %v1385 = vrot.slane %v1362, 3
    %v1388 = vmax.f32 %v1382, %v1384
    %v1389 = vmax.f32 %v1383, %v1385
    %v1392 = vrot.slane %v1355, 1
    %v1393 = vrot.slane %v1363, 1
    %v1396 = vmax.f32 %v1355, %v1392
    %v1397 = vmax.f32 %v1363, %v1393
    %v1398 = vrot.slane %v1355, 2
    %v1399 = vrot.slane %v1363, 2
    %v1402 = vmax.f32 %v1396, %v1398
    %v1403 = vmax.f32 %v1397, %v1399
    %v1404 = vrot.slane %v1355, 3
    %v1405 = vrot.slane %v1363, 3
    %v1408 = vmax.f32 %v1402, %v1404
    %v1409 = vmax.f32 %v1403, %v1405
    %v1412 = vrot.slane %v1356, 1
    %v1413 = vrot.slane %v1364, 1
    %v1416 = vmax.f32 %v1356, %v1412
    %v1417 = vmax.f32 %v1364, %v1413
    %v1418 = vrot.slane %v1356, 2
    %v1419 = vrot.slane %v1364, 2
    %v1422 = vmax.f32 %v1416, %v1418
    %v1423 = vmax.f32 %v1417, %v1419
    %v1424 = vrot.slane %v1356, 3
    %v1425 = vrot.slane %v1364, 3
    %v1428 = vmax.f32 %v1422, %v1424
    %v1429 = vmax.f32 %v1423, %v1425
    %v1432 = vrot.slane %v1357, 1
    %v1433 = vrot.slane %v1365, 1
    %v1436 = vmax.f32 %v1357, %v1432
    %v1437 = vmax.f32 %v1365, %v1433
    %v1438 = vrot.slane %v1357, 2
    %v1439 = vrot.slane %v1365, 2
    %v1442 = vmax.f32 %v1436, %v1438
    %v1443 = vmax.f32 %v1437, %v1439
    %v1444 = vrot.slane %v1357, 3
    %v1445 = vrot.slane %v1365, 3
    %v1448 = vmax.f32 %v1442, %v1444
    %v1449 = vmax.f32 %v1443, %v1445
    %v1452 = vrot.slane %v1358, 1
    %v1453 = vrot.slane %v1366, 1
    %v1456 = vmax.f32 %v1358, %v1452
    %v1457 = vmax.f32 %v1366, %v1453
    %v1458 = vrot.slane %v1358, 2
    %v1459 = vrot.slane %v1366, 2
    %v1462 = vmax.f32 %v1456, %v1458
    %v1463 = vmax.f32 %v1457, %v1459
    %v1464 = vrot.slane %v1358, 3
    %v1465 = vrot.slane %v1366, 3
    %v1468 = vmax.f32 %v1462, %v1464
    %v1469 = vmax.f32 %v1463, %v1465
    %v1472 = vrot.slane %v1359, 1
    %v1473 = vrot.slane %v1367, 1
    %v1476 = vmax.f32 %v1359, %v1472
    %v1477 = vmax.f32 %v1367, %v1473
    %v1478 = vrot.slane %v1359, 2
    %v1479 = vrot.slane %v1367, 2
    %v1482 = vmax.f32 %v1476, %v1478
    %v1483 = vmax.f32 %v1477, %v1479
    %v1484 = vrot.slane %v1359, 3
    %v1485 = vrot.slane %v1367, 3
    %v1488 = vmax.f32 %v1482, %v1484
    %v1489 = vmax.f32 %v1483, %v1485
    %v1492 = vrot.slane %v1360, 1
    %v1493 = vrot.slane %v1368, 1
    %v1496 = vmax.f32 %v1360, %v1492
    %v1497 = vmax.f32 %v1368, %v1493
    %v1498 = vrot.slane %v1360, 2
    %v1499 = vrot.slane %v1368, 2
    %v1502 = vmax.f32 %v1496, %v1498
    %v1503 = vmax.f32 %v1497, %v1499
    %v1504 = vrot.slane %v1360, 3
    %v1505 = vrot.slane %v1368, 3
    %v1508 = vmax.f32 %v1502, %v1504
    %v1509 = vmax.f32 %v1503, %v1505
    %v1512 = vrot.slane %v1361, 1
    %v1513 = vrot.slane %v1369, 1
    %v1516 = vmax.f32 %v1361, %v1512
    %v1517 = vmax.f32 %v1369, %v1513
    %v1518 = vrot.slane %v1361, 2
    %v1519 = vrot.slane %v1369, 2
    %v1522 = vmax.f32 %v1516, %v1518
    %v1523 = vmax.f32 %v1517, %v1519
    %v1524 = vrot.slane %v1361, 3
    %v1525 = vrot.slane %v1369, 3
    %v1528 = vmax.f32 %v1522, %v1524
    %v1529 = vmax.f32 %v1523, %v1525
    %v1532 = vrot.slane %v1389, 7
    %vm1533 = vcmask 1041409
    %v1534 = vsel %vm1533, %v1532, %v1388
    %v1536 = vrot.slane %v1388, 2
    %v1537 = vrot.slane %v1389, 1
    %vm1538 = vcmask 1043459
    %v1539 = vsel %vm1538, %v1537, %v1536
    %v1543 = vrot.slane %v1408, 4
    %v1544 = vrot.slane %v1409, 3
    %vm1545 = vcmask 1045509
    %v1546 = vsel %vm1545, %v1544, %v1543
    %v1548 = vrot.slane %v1408, 6
    %v1549 = vrot.slane %v1409, 5
    %vm1550 = vcmask 1047559
    %v1551 = vsel %vm1550, %v1549, %v1548
    %v1555 = vrot.slane %v1429, 7
    %v1556 = vsel %vm1533, %v1555, %v1428
    %v1558 = vrot.slane %v1428, 2
    %v1559 = vrot.slane %v1429, 1
    %v1560 = vsel %vm1538, %v1559, %v1558
    %v1564 = vrot.slane %v1448, 4
    %v1565 = vrot.slane %v1449, 3
    %v1566 = vsel %vm1545, %v1565, %v1564
    %v1568 = vrot.slane %v1448, 6
    %v1569 = vrot.slane %v1449, 5
    %v1570 = vsel %vm1550, %v1569, %v1568
    %v1574 = vrot.slane %v1469, 7
    %v1575 = vsel %vm1533, %v1574, %v1468
    %v1577 = vrot.slane %v1468, 2
    %v1578 = vrot.slane %v1469, 1
    %v1579 = vsel %vm1538, %v1578, %v1577
    %v1583 = vrot.slane %v1488, 4
    %v1584 = vrot.slane %v1489, 3
    %v1585 = vsel %vm1545, %v1584, %v1583
    %v1587 = vrot.slane %v1488, 6
    %v1588 = vrot.slane %v1489, 5
    %v1589 = vsel %vm1550, %v1588, %v1587
    %v1593 = vrot.slane %v1509, 7
    %v1594 = vsel %vm1533, %v1593, %v1508
    %v1596 = vrot.slane %v1508, 2
    %v1597 = vrot.slane %v1509, 1
    %v1598 = vsel %vm1538, %v1597, %v1596
    %v1602 = vrot.slane %v1528, 4
    %v1603 = vrot.slane %v1529, 3
    %v1604 = vsel %vm1545, %v1603, %v1602
    %v1606 = vrot.slane %v1528, 6
    %v1607 = vrot.slane %v1529, 5
    %v1608 = vsel %vm1550, %v1607, %v1606
    %vm1610 = vcmask 1041408
    %v1611 = vsel %vm1610, %v1534, %v1539
    %vm1612 = vcmask 1043456
    %v1613 = vsel %vm1612, %v1611, %v1546
    %vm1614 = vcmask 1045504
    %v1615 = vsel %vm1614, %v1613, %v1551
    %v1616 = vsel %vm1610, %v1556, %v1560
    %v1617 = vsel %vm1612, %v1616, %v1566
    %v1618 = vsel %vm1614, %v1617, %v1570
    %v1619 = vsel %vm1610, %v1575, %v1579
    %v1620 = vsel %vm1612, %v1619, %v1585
    %v1621 = vsel %vm1614, %v1620, %v1589
    %v1622 = vsel %vm1610, %v1594, %v1598
    %v1623 = vsel %vm1612, %v1622, %v1604
    %v1624 = vsel %vm1614, %v1623, %v1608
    %v1625 = vsel %vm1533, %v1603, %v1602
    %v1627 = vsel %vm1538, %v1607, %v1606
    %v1629 = vsel %vm1545, %v1593, %v1508
    %v1631 = vsel %vm1550, %v1597, %v1596
    %v1633 = vsel %vm1533, %v1584, %v1583
    %v1635 = vsel %vm1538, %v1588, %v1587
    %v1637 = vsel %vm1545, %v1574, %v1468
    %v1639 = vsel %vm1550, %v1578, %v1577
    %v1641 = vsel %vm1533, %v1565, %v1564
    %v1643 = vsel %vm1538, %v1569, %v1568
    %v1645 = vsel %vm1545, %v1555, %v1428
    %v1647 = vsel %vm1550, %v1559, %v1558
    %v1649 = vsel %vm1533, %v1544, %v1543
    %v1651 = vsel %vm1538, %v1549, %v1548
    %v1653 = vsel %vm1545, %v1532, %v1388
    %v1655 = vsel %vm1550, %v1537, %v1536
    %v1657 = vsel %vm1610, %v1625, %v1627
    %v1658 = vsel %vm1612, %v1657, %v1629
    %v1659 = vsel %vm1614, %v1658, %v1631
    %v1660 = vsel %vm1610, %v1633, %v1635
    %v1661 = vsel %vm1612, %v1660, %v1637
    %v1662 = vsel %vm1614, %v1661, %v1639
    %v1663 = vsel %vm1610, %v1641, %v1643
    %v1664 = vsel %vm1612, %v1663, %v1645
    %v1665 = vsel %vm1614, %v1664, %v1647
    %v1666 = vsel %vm1610, %v1649, %v1651
    %v1667 = vsel %vm1612, %v1666, %v1653
    %v1668 = vsel %vm1614, %v1667, %v1655
    %v1669 = vld [vmem:[%s4] sm:$0xff]
    %v1670 = vld [vmem:[%s5] sm:$0xff]
    %v1671 = vld [vmem:[%s6] sm:$0xff]
    %v1672 = vld [vmem:[%s6 + $0x8] sm:$0xff]
    %v1673 = vld [vmem:[%s6 + $0x10] sm:$0xff]
    %v1674 = vld [vmem:[%s6 + $0x18] sm:$0xff]
    %v1675 = vld [vmem:[%s7] sm:$0x1]
    %vm1676 = vcmask 64512
    %v1678 = vsel %vm1676, %v1659, 0
    %v1681 = vsel %vm1676, %v1662, 0
    %v1684 = vsel %vm1676, %v1665, 0
    %v1687 = vsel %vm1676, %v1668, 0
    %1689 = vmatpush.msra.mxu0 0.0
    %1690 = vmatpush.msra.mxu0 0.0
    %1691 = vmatpush.msra.mxu0 0.0
    %1692 = vmatpush.msra.mxu0 0.0
    %1693 = vmatpush.msra.mxu0 0.0
    %1694 = vmatpush.msra.mxu0 0.0
    %1695 = vmatpush.msra.mxu0 0.0
    %1696 = vmatpush.msra.mxu0 0.0
    %1697 = vmatpush.msra.mxu0 0.0
    %1698 = vmatpush.msra.mxu0 0.0
    %1699 = vmatpush.msra.mxu0 0.0
    %1700 = vmatpush.msra.mxu0 0.0
    %1701 = vmatpush.msra.mxu0 0.0
    %1702 = vmatpush.msra.mxu0 0.0
    %1703 = vmatpush.msra.mxu0 0.0
    %1704 = vmatpush.msra.mxu0 %v1670
    %1705 = vmatmul.f32.gmra.mxu0 %v1678
    %v1706 = vpop.f32.mrf.mxu0
    %v1707 = vadd.f32 0.0, %v1706
    %1708 = vmatmul.f32.gmra.mxu0 %v1681
    %v1709 = vpop.f32.mrf.mxu0
    %v1710 = vadd.f32 0.0, %v1709
    %1711 = vmatmul.f32.gmra.mxu0 %v1684
    %v1712 = vpop.f32.mrf.mxu0
    %v1713 = vadd.f32 0.0, %v1712
    %1714 = vmatmul.f32.gmra.mxu0 %v1687
    %v1715 = vpop.f32.mrf.mxu0
    %v1716 = vadd.f32 0.0, %v1715
    %1717 = vdwg.mxu0
    %v1719 = vsel %vm1676, %v1615, 0
    %v1722 = vsel %vm1676, %v1618, 0
    %v1725 = vsel %vm1676, %v1621, 0
    %v1728 = vsel %vm1676, %v1624, 0
    %1730 = vmatpush.msra.mxu0 0.0
    %1731 = vmatpush.msra.mxu0 0.0
    %1732 = vmatpush.msra.mxu0 0.0
    %1733 = vmatpush.msra.mxu0 0.0
    %1734 = vmatpush.msra.mxu0 0.0
    %1735 = vmatpush.msra.mxu0 0.0
    %1736 = vmatpush.msra.mxu0 0.0
    %1737 = vmatpush.msra.mxu0 0.0
    %1738 = vmatpush.msra.mxu0 0.0
    %1739 = vmatpush.msra.mxu0 0.0
    %1740 = vmatpush.msra.mxu0 0.0
    %1741 = vmatpush.msra.mxu0 0.0
    %1742 = vmatpush.msra.mxu0 0.0
    %1743 = vmatpush.msra.mxu0 0.0
    %1744 = vmatpush.msra.mxu0 0.0
    %1745 = vmatpush.msra.mxu0 %v1669
    %1746 = vmatmul.f32.gmra.mxu0 %v1719
    %v1747 = vpop.f32.mrf.mxu0
    %v1748 = vadd.f32 %v1707, %v1747
    %1749 = vmatmul.f32.gmra.mxu0 %v1722
    %v1750 = vpop.f32.mrf.mxu0
    %v1751 = vadd.f32 %v1710, %v1750
    %1752 = vmatmul.f32.gmra.mxu0 %v1725
    %v1753 = vpop.f32.mrf.mxu0
    %v1754 = vadd.f32 %v1713, %v1753
    %1755 = vmatmul.f32.gmra.mxu0 %v1728
    %v1756 = vpop.f32.mrf.mxu0
    %v1757 = vadd.f32 %v1716, %v1756
    %1758 = vdwg.mxu0
    %v1760 = vperm.slane %v1675, 0
    %v1762 = vadd.f32 %v1748, %v1760
    %v1763 = vadd.f32 %v1751, %v1760
    %v1764 = vadd.f32 %v1754, %v1760
    %v1765 = vadd.f32 %v1757, %v1760
    %vm1766 = vcmask 261120
    %v1768 = vsel %vm1766, 0.0, 0
    %1770 = vmatpush.msra.mxu0 0.0
    %1771 = vmatpush.msra.mxu0 0.0
    %1772 = vmatpush.msra.mxu0 0.0
    %1773 = vmatpush.msra.mxu0 0.0
    %1774 = vmatpush.msra.mxu0 0.0
    %1775 = vmatpush.msra.mxu0 0.0
    %1776 = vmatpush.msra.mxu0 0.0
    %1777 = vmatpush.msra.mxu0 0.0
    %1778 = vmatpush.msra.mxu0 0.0
    %1779 = vmatpush.msra.mxu0 0.0
    %1780 = vmatpush.msra.mxu0 0.0
    %1781 = vmatpush.msra.mxu0 0.0
    %1782 = vmatpush.msra.mxu0 %v1674
    %1783 = vmatpush.msra.mxu0 %v1673
    %1784 = vmatpush.msra.mxu0 %v1672
    %1785 = vmatpush.msra.mxu0 %v1671
    %1786 = vmatmul.f32.gmra.mxu0 %v1768
    %v1787 = vpop.f32.mrf.mxu0
    %v1788 = vadd.f32 0.0, %v1787
    %1789 = vdwg.mxu0
    %v1790 = vadd.f32 %v1762, %v1788
    %v1791 = vxor.u32 %v1790, 2147483648
    %v1792 = vmul.f32 %v1791, 1.442695
    %v1793 = vpow.pop %v1792
    %v1794 = vadd.f32 %v1793, 1.0
    %v1795 = vrcp.pop %v1794
    %v1796 = vmul.f32 %v1794, %v1795
    %v1797 = vsub.f32 1.0, %v1796
    %v1798 = vmul.f32 %v1795, %v1797
    %v1799 = vadd.f32 %v1795, %v1798
    %vm1800 = vweird.f32 %v1794
    %vm1801 = vweird.f32 %v1795
    %vm1802 = vmor %vm1800, %vm1801
    %v1803 = vsel %vm1802, %v1795, %v1799
    %v1804 = vand.u32 2147483647, %v1794
    %vm1805 = vcmp.eq.f32.partialorder %v1804, 8.507059e+37
    %v1806 = vand.u32 %v1794, 2147483648
    %v1807 = vor.u32 1.1754944e-38, %v1806
    %v1808 = vsel %vm1805, %v1807, %v1803
    %v1809 = vmul.f32 1.0, %v1808
    %v1810 = vtanh.pop %v1790
    %v1811 = vmul.f32 %v1809, 0.0
    %1813 = vrot.lane.b32.xlu0 %v1810, 64
    %v1814 = vpop.permute.xlu0 %1813
    %v1816 = vmul.f32 %v1809, %v1814
    %1818 = vrot.lane.b32.xlu0 %v1816, 32
    %v1819 = vpop.permute.xlu0 %1818
    %v1821 = vadd.f32 %v1811, %v1819
    %v1822 = vtanh.pop %v1821
    %1824 = vrot.lane.b32.xlu0 %v1822, 64
    %v1825 = vpop.permute.xlu0 %1824
    %v1827 = vmul.f32 %v1809, %v1825
    %1829 = vrot.lane.b32.xlu0 %v1827, 32
    %v1830 = vpop.permute.xlu0 %1829
    %v1831 = vsel %vm1766, %v1830, 0
    %1833 = vmatpush.msra.mxu0 0.0
    %1834 = vmatpush.msra.mxu0 0.0
    %1835 = vmatpush.msra.mxu0 0.0
    %1836 = vmatpush.msra.mxu0 0.0
    %1837 = vmatpush.msra.mxu0 0.0
    %1838 = vmatpush.msra.mxu0 0.0
    %1839 = vmatpush.msra.mxu0 0.0
    %1840 = vmatpush.msra.mxu0 0.0
    %1841 = vmatpush.msra.mxu0 0.0
    %1842 = vmatpush.msra.mxu0 0.0
    %1843 = vmatpush.msra.mxu0 0.0
    %1844 = vmatpush.msra.mxu0 0.0
    %1845 = vmatpush.msra.mxu0 %v1674
    %1846 = vmatpush.msra.mxu0 %v1673
    %1847 = vmatpush.msra.mxu0 %v1672
    %1848 = vmatpush.msra.mxu0 %v1671
    %1849 = vmatmul.f32.gmra.mxu0 %v1831
    %v1850 = vpop.f32.mrf.mxu0
    %v1851 = vadd.f32 0.0, %v1850
    %1852 = vdwg.mxu0
    %v1854 = vrot.slane %v1851, 6
    %v1856 = vadd.f32 %v1762, %v1854
    %v1857 = vxor.u32 %v1856, 2147483648
    %v1858 = vmul.f32 %v1857, 1.442695
    %v1859 = vpow.pop %v1858
    %v1860 = vadd.f32 %v1859, 1.0
    %v1861 = vrcp.pop %v1860
    %v1862 = vmul.f32 %v1860, %v1861
    %v1863 = vsub.f32 1.0, %v1862
    %v1864 = vmul.f32 %v1861, %v1863
    %v1865 = vadd.f32 %v1861, %v1864
    %vm1866 = vweird.f32 %v1860
    %vm1867 = vweird.f32 %v1861
    %vm1868 = vmor %vm1866, %vm1867
    %v1869 = vsel %vm1868, %v1861, %v1865
    %v1870 = vand.u32 2147483647, %v1860
    %vm1871 = vcmp.eq.f32.partialorder %v1870, 8.507059e+37
    %v1872 = vand.u32 %v1860, 2147483648
    %v1873 = vor.u32 1.1754944e-38, %v1872
    %v1874 = vsel %vm1871, %v1873, %v1869
    %v1875 = vmul.f32 1.0, %v1874
    %v1876 = vtanh.pop %v1856
    %v1878 = vrot.slane %v1821, 6
    %v1880 = vmul.f32 %v1875, %v1878
    %1882 = vrot.lane.b32.xlu0 %v1876, 64
    %v1883 = vpop.permute.xlu0 %1882
    %v1885 = vmul.f32 %v1875, %v1883
    %1887 = vrot.lane.b32.xlu0 %v1885, 32
    %v1888 = vpop.permute.xlu0 %1887
    %v1890 = vadd.f32 %v1880, %v1888
    %v1891 = vtanh.pop %v1890
    %1893 = vrot.lane.b32.xlu0 %v1891, 64
    %v1894 = vpop.permute.xlu0 %1893
    %v1896 = vmul.f32 %v1875, %v1894
    %v1898 = vrot.slane %v1896, 2
    %1899 = vrot.lane.b32.xlu0 %v1898, 32
    %v1900 = vpop.permute.xlu0 %1899
    %v1901 = vsel %vm1766, %v1900, 0
    %1903 = vmatpush.msra.mxu0 0.0
    %1904 = vmatpush.msra.mxu0 0.0
    %1905 = vmatpush.msra.mxu0 0.0
    %1906 = vmatpush.msra.mxu0 0.0
    %1907 = vmatpush.msra.mxu0 0.0
    %1908 = vmatpush.msra.mxu0 0.0
    %1909 = vmatpush.msra.mxu0 0.0
    %1910 = vmatpush.msra.mxu0 0.0
    %1911 = vmatpush.msra.mxu0 0.0
    %1912 = vmatpush.msra.mxu0 0.0
    %1913 = vmatpush.msra.mxu0 0.0
    %1914 = vmatpush.msra.mxu0 0.0
    %1915 = vmatpush.msra.mxu0 %v1674
    %1916 = vmatpush.msra.mxu0 %v1673
    %1917 = vmatpush.msra.mxu0 %v1672
    %1918 = vmatpush.msra.mxu0 %v1671
    %1919 = vmatmul.f32.gmra.mxu0 %v1901
    %v1920 = vpop.f32.mrf.mxu0
    %v1921 = vadd.f32 0.0, %v1920
    %1922 = vdwg.mxu0
    %v1924 = vrot.slane %v1921, 4
    %v1926 = vadd.f32 %v1762, %v1924
    %v1927 = vxor.u32 %v1926, 2147483648
    %v1928 = vmul.f32 %v1927, 1.442695
    %v1929 = vpow.pop %v1928
    %v1930 = vadd.f32 %v1929, 1.0
    %v1931 = vrcp.pop %v1930
    %v1932 = vmul.f32 %v1930, %v1931
    %v1933 = vsub.f32 1.0, %v1932
    %v1934 = vmul.f32 %v1931, %v1933
    %v1935 = vadd.f32 %v1931, %v1934
    %vm1936 = vweird.f32 %v1930
    %vm1937 = vweird.f32 %v1931
    %vm1938 = vmor %vm1936, %vm1937
    %v1939 = vsel %vm1938, %v1931, %v1935
    %v1940 = vand.u32 2147483647, %v1930
    %vm1941 = vcmp.eq.f32.partialorder %v1940, 8.507059e+37
    %v1942 = vand.u32 %v1930, 2147483648
    %v1943 = vor.u32 1.1754944e-38, %v1942
    %v1944 = vsel %vm1941, %v1943, %v1939
    %v1945 = vmul.f32 1.0, %v1944
    %v1946 = vtanh.pop %v1926
    %v1948 = vrot.slane %v1890, 6
    %v1950 = vmul.f32 %v1945, %v1948
    %1952 = vrot.lane.b32.xlu0 %v1946, 64
    %v1953 = vpop.permute.xlu0 %1952
    %v1955 = vmul.f32 %v1945, %v1953
    %1957 = vrot.lane.b32.xlu0 %v1955, 32
    %v1958 = vpop.permute.xlu0 %1957
    %v1960 = vadd.f32 %v1950, %v1958
    %v1961 = vtanh.pop %v1960
    %1963 = vrot.lane.b32.xlu0 %v1961, 64
    %v1964 = vpop.permute.xlu0 %1963
    %v1966 = vmul.f32 %v1945, %v1964
    %v1968 = vrot.slane %v1966, 4
    %1969 = vrot.lane.b32.xlu0 %v1968, 32
    %v1970 = vpop.permute.xlu0 %1969
    %v1971 = vsel %vm1766, %v1970, 0
    %1973 = vmatpush.msra.mxu0 0.0
    %1974 = vmatpush.msra.mxu0 0.0
    %1975 = vmatpush.msra.mxu0 0.0
    %1976 = vmatpush.msra.mxu0 0.0
    %1977 = vmatpush.msra.mxu0 0.0
    %1978 = vmatpush.msra.mxu0 0.0
    %1979 = vmatpush.msra.mxu0 0.0
    %1980 = vmatpush.msra.mxu0 0.0
    %1981 = vmatpush.msra.mxu0 0.0
    %1982 = vmatpush.msra.mxu0 0.0
    %1983 = vmatpush.msra.mxu0 0.0
    %1984 = vmatpush.msra.mxu0 0.0
    %1985 = vmatpush.msra.mxu0 %v1674
    %1986 = vmatpush.msra.mxu0 %v1673
    %1987 = vmatpush.msra.mxu0 %v1672
    %1988 = vmatpush.msra.mxu0 %v1671
    %1989 = vmatmul.f32.gmra.mxu0 %v1971
    %v1990 = vpop.f32.mrf.mxu0
    %v1991 = vadd.f32 0.0, %v1990
    %1992 = vdwg.mxu0
    %v1994 = vrot.slane %v1991, 2
    %v1996 = vadd.f32 %v1762, %v1994
    %v1997 = vxor.u32 %v1996, 2147483648
    %v1998 = vmul.f32 %v1997, 1.442695
    %v1999 = vpow.pop %v1998
    %v2000 = vadd.f32 %v1999, 1.0
    %v2001 = vrcp.pop %v2000
    %v2002 = vmul.f32 %v2000, %v2001
    %v2003 = vsub.f32 1.0, %v2002
    %v2004 = vmul.f32 %v2001, %v2003
    %v2005 = vadd.f32 %v2001, %v2004
    %vm2006 = vweird.f32 %v2000
    %vm2007 = vweird.f32 %v2001
    %vm2008 = vmor %vm2006, %vm2007
    %v2009 = vsel %vm2008, %v2001, %v2005
    %v2010 = vand.u32 2147483647, %v2000
    %vm2011 = vcmp.eq.f32.partialorder %v2010, 8.507059e+37
    %v2012 = vand.u32 %v2000, 2147483648
    %v2013 = vor.u32 1.1754944e-38, %v2012
    %v2014 = vsel %vm2011, %v2013, %v2009
    %v2015 = vmul.f32 1.0, %v2014
    %v2016 = vtanh.pop %v1996
    %v2018 = vrot.slane %v1960, 6
    %v2020 = vmul.f32 %v2015, %v2018
    %2022 = vrot.lane.b32.xlu0 %v2016, 64
    %v2023 = vpop.permute.xlu0 %2022
    %v2025 = vmul.f32 %v2015, %v2023
    %2027 = vrot.lane.b32.xlu0 %v2025, 32
    %v2028 = vpop.permute.xlu0 %2027
    %v2030 = vadd.f32 %v2020, %v2028
    %v2031 = vtanh.pop %v2030
    %2033 = vrot.lane.b32.xlu0 %v2031, 64
    %v2034 = vpop.permute.xlu0 %2033
    %v2036 = vmul.f32 %v2015, %v2034
    %v2038 = vrot.slane %v2036, 6
    %2039 = vrot.lane.b32.xlu0 %v2038, 32
    %v2040 = vpop.permute.xlu0 %2039
    %v2041 = vsel %vm1766, %v2040, 0
    %2043 = vmatpush.msra.mxu0 0.0
    %2044 = vmatpush.msra.mxu0 0.0
    %2045 = vmatpush.msra.mxu0 0.0
    %2046 = vmatpush.msra.mxu0 0.0
    %2047 = vmatpush.msra.mxu0 0.0
    %2048 = vmatpush.msra.mxu0 0.0
    %2049 = vmatpush.msra.mxu0 0.0
    %2050 = vmatpush.msra.mxu0 0.0
    %2051 = vmatpush.msra.mxu0 0.0
    %2052 = vmatpush.msra.mxu0 0.0
    %2053 = vmatpush.msra.mxu0 0.0
    %2054 = vmatpush.msra.mxu0 0.0
    %2055 = vmatpush.msra.mxu0 %v1674
    %2056 = vmatpush.msra.mxu0 %v1673
    %2057 = vmatpush.msra.mxu0 %v1672
    %2058 = vmatpush.msra.mxu0 %v1671
    %2059 = vmatmul.f32.gmra.mxu0 %v2041
    %v2060 = vpop.f32.mrf.mxu0
    %v2061 = vadd.f32 0.0, %v2060
    %2062 = vdwg.mxu0
    %v2063 = vadd.f32 %v1763, %v2061
    %v2064 = vxor.u32 %v2063, 2147483648
    %v2065 = vmul.f32 %v2064, 1.442695
    %v2066 = vpow.pop %v2065
    %v2067 = vadd.f32 %v2066, 1.0
    %v2068 = vrcp.pop %v2067
    %v2069 = vmul.f32 %v2067, %v2068
    %v2070 = vsub.f32 1.0, %v2069
    %v2071 = vmul.f32 %v2068, %v2070
    %v2072 = vadd.f32 %v2068, %v2071
    %vm2073 = vweird.f32 %v2067
    %vm2074 = vweird.f32 %v2068
    %vm2075 = vmor %vm2073, %vm2074
    %v2076 = vsel %vm2075, %v2068, %v2072
    %v2077 = vand.u32 2147483647, %v2067
    %vm2078 = vcmp.eq.f32.partialorder %v2077, 8.507059e+37
    %v2079 = vand.u32 %v2067, 2147483648
    %v2080 = vor.u32 1.1754944e-38, %v2079
    %v2081 = vsel %vm2078, %v2080, %v2076
    %v2082 = vmul.f32 1.0, %v2081
    %v2083 = vtanh.pop %v2063
    %v2085 = vrot.slane %v2030, 6
    %v2087 = vmul.f32 %v2082, %v2085
    %2089 = vrot.lane.b32.xlu0 %v2083, 64
    %v2090 = vpop.permute.xlu0 %2089
    %v2092 = vmul.f32 %v2082, %v2090
    %2094 = vrot.lane.b32.xlu0 %v2092, 32
    %v2095 = vpop.permute.xlu0 %2094
    %v2097 = vadd.f32 %v2087, %v2095
    %v2098 = vtanh.pop %v2097
    %2100 = vrot.lane.b32.xlu0 %v2098, 64
    %v2101 = vpop.permute.xlu0 %2100
    %v2103 = vmul.f32 %v2082, %v2101
    %2105 = vrot.lane.b32.xlu0 %v2103, 32
    %v2106 = vpop.permute.xlu0 %2105
    %v2107 = vsel %vm1766, %v2106, 0
    %2109 = vmatpush.msra.mxu0 0.0
    %2110 = vmatpush.msra.mxu0 0.0
    %2111 = vmatpush.msra.mxu0 0.0
    %2112 = vmatpush.msra.mxu0 0.0
    %2113 = vmatpush.msra.mxu0 0.0
    %2114 = vmatpush.msra.mxu0 0.0
    %2115 = vmatpush.msra.mxu0 0.0
    %2116 = vmatpush.msra.mxu0 0.0
    %2117 = vmatpush.msra.mxu0 0.0
    %2118 = vmatpush.msra.mxu0 0.0
    %2119 = vmatpush.msra.mxu0 0.0
    %2120 = vmatpush.msra.mxu0 0.0
    %2121 = vmatpush.msra.mxu0 %v1674
    %2122 = vmatpush.msra.mxu0 %v1673
    %2123 = vmatpush.msra.mxu0 %v1672
    %2124 = vmatpush.msra.mxu0 %v1671
    %2125 = vmatmul.f32.gmra.mxu0 %v2107
    %v2126 = vpop.f32.mrf.mxu0
    %v2127 = vadd.f32 0.0, %v2126
    %2128 = vdwg.mxu0
    %v2130 = vrot.slane %v2127, 6
    %v2132 = vadd.f32 %v1763, %v2130
    %v2133 = vxor.u32 %v2132, 2147483648
    %v2134 = vmul.f32 %v2133, 1.442695
    %v2135 = vpow.pop %v2134
    %v2136 = vadd.f32 %v2135, 1.0
    %v2137 = vrcp.pop %v2136
    %v2138 = vmul.f32 %v2136, %v2137
    %v2139 = vsub.f32 1.0, %v2138
    %v2140 = vmul.f32 %v2137, %v2139
    %v2141 = vadd.f32 %v2137, %v2140
    %vm2142 = vweird.f32 %v2136
    %vm2143 = vweird.f32 %v2137
    %vm2144 = vmor %vm2142, %vm2143
    %v2145 = vsel %vm2144, %v2137, %v2141
    %v2146 = vand.u32 2147483647, %v2136
    %vm2147 = vcmp.eq.f32.partialorder %v2146, 8.507059e+37
    %v2148 = vand.u32 %v2136, 2147483648
    %v2149 = vor.u32 1.1754944e-38, %v2148
    %v2150 = vsel %vm2147, %v2149, %v2145
    %v2151 = vmul.f32 1.0, %v2150
    %v2152 = vtanh.pop %v2132
    %v2154 = vrot.slane %v2097, 6
    %v2156 = vmul.f32 %v2151, %v2154
    %2158 = vrot.lane.b32.xlu0 %v2152, 64
    %v2159 = vpop.permute.xlu0 %2158
    %v2161 = vmul.f32 %v2151, %v2159
    %2163 = vrot.lane.b32.xlu0 %v2161, 32
    %v2164 = vpop.permute.xlu0 %2163
    %v2166 = vadd.f32 %v2156, %v2164
    %v2167 = vtanh.pop %v2166
    %2169 = vrot.lane.b32.xlu0 %v2167, 64
    %v2170 = vpop.permute.xlu0 %2169
    %v2172 = vmul.f32 %v2151, %v2170
    %v2174 = vrot.slane %v2172, 2
    %2175 = vrot.lane.b32.xlu0 %v2174, 32
    %v2176 = vpop.permute.xlu0 %2175
    %v2177 = vsel %vm1766, %v2176, 0
    %2179 = vmatpush.msra.mxu0 0.0
    %2180 = vmatpush.msra.mxu0 0.0
    %2181 = vmatpush.msra.mxu0 0.0
    %2182 = vmatpush.msra.mxu0 0.0
    %2183 = vmatpush.msra.mxu0 0.0
    %2184 = vmatpush.msra.mxu0 0.0
    %2185 = vmatpush.msra.mxu0 0.0
    %2186 = vmatpush.msra.mxu0 0.0
    %2187 = vmatpush.msra.mxu0 0.0
    %2188 = vmatpush.msra.mxu0 0.0
    %2189 = vmatpush.msra.mxu0 0.0
    %2190 = vmatpush.msra.mxu0 0.0
    %2191 = vmatpush.msra.mxu0 %v1674
    %2192 = vmatpush.msra.mxu0 %v1673
    %2193 = vmatpush.msra.mxu0 %v1672
    %2194 = vmatpush.msra.mxu0 %v1671
    %2195 = vmatmul.f32.gmra.mxu0 %v2177
    %v2196 = vpop.f32.mrf.mxu0
    %v2197 = vadd.f32 0.0, %v2196
    %2198 = vdwg.mxu0
    %v2200 = vrot.slane %v2197, 4
    %v2202 = vadd.f32 %v1763, %v2200
    %v2203 = vxor.u32 %v2202, 2147483648
    %v2204 = vmul.f32 %v2203, 1.442695
    %v2205 = vpow.pop %v2204
    %v2206 = vadd.f32 %v2205, 1.0
    %v2207 = vrcp.pop %v2206
    %v2208 = vmul.f32 %v2206, %v2207
    %v2209 = vsub.f32 1.0, %v2208
    %v2210 = vmul.f32 %v2207, %v2209
    %v2211 = vadd.f32 %v2207, %v2210
    %vm2212 = vweird.f32 %v2206
    %vm2213 = vweird.f32 %v2207
    %vm2214 = vmor %vm2212, %vm2213
    %v2215 = vsel %vm2214, %v2207, %v2211
    %v2216 = vand.u32 2147483647, %v2206
    %vm2217 = vcmp.eq.f32.partialorder %v2216, 8.507059e+37
    %v2218 = vand.u32 %v2206, 2147483648
    %v2219 = vor.u32 1.1754944e-38, %v2218
    %v2220 = vsel %vm2217, %v2219, %v2215
    %v2221 = vmul.f32 1.0, %v2220
    %v2222 = vtanh.pop %v2202
    %v2224 = vrot.slane %v2166, 6
    %v2226 = vmul.f32 %v2221, %v2224
    %2228 = vrot.lane.b32.xlu0 %v2222, 64
    %v2229 = vpop.permute.xlu0 %2228
    %v2231 = vmul.f32 %v2221, %v2229
    %2233 = vrot.lane.b32.xlu0 %v2231, 32
    %v2234 = vpop.permute.xlu0 %2233
    %v2236 = vadd.f32 %v2226, %v2234
    %v2237 = vtanh.pop %v2236
    %2239 = vrot.lane.b32.xlu0 %v2237, 64
    %v2240 = vpop.permute.xlu0 %2239
    %v2242 = vmul.f32 %v2221, %v2240
    %v2244 = vrot.slane %v2242, 4
    %2245 = vrot.lane.b32.xlu0 %v2244, 32
    %v2246 = vpop.permute.xlu0 %2245
    %v2247 = vsel %vm1766, %v2246, 0
    %2249 = vmatpush.msra.mxu0 0.0
    %2250 = vmatpush.msra.mxu0 0.0
    %2251 = vmatpush.msra.mxu0 0.0
    %2252 = vmatpush.msra.mxu0 0.0
    %2253 = vmatpush.msra.mxu0 0.0
    %2254 = vmatpush.msra.mxu0 0.0
    %2255 = vmatpush.msra.mxu0 0.0
    %2256 = vmatpush.msra.mxu0 0.0
    %2257 = vmatpush.msra.mxu0 0.0
    %2258 = vmatpush.msra.mxu0 0.0
    %2259 = vmatpush.msra.mxu0 0.0
    %2260 = vmatpush.msra.mxu0 0.0
    %2261 = vmatpush.msra.mxu0 %v1674
    %2262 = vmatpush.msra.mxu0 %v1673
    %2263 = vmatpush.msra.mxu0 %v1672
    %2264 = vmatpush.msra.mxu0 %v1671
    %2265 = vmatmul.f32.gmra.mxu0 %v2247
    %v2266 = vpop.f32.mrf.mxu0
    %v2267 = vadd.f32 0.0, %v2266
    %2268 = vdwg.mxu0
    %v2270 = vrot.slane %v2267, 2
    %v2272 = vadd.f32 %v1763, %v2270
    %v2273 = vxor.u32 %v2272, 2147483648
    %v2274 = vmul.f32 %v2273, 1.442695
    %v2275 = vpow.pop %v2274
    %v2276 = vadd.f32 %v2275, 1.0
    %v2277 = vrcp.pop %v2276
    %v2278 = vmul.f32 %v2276, %v2277
    %v2279 = vsub.f32 1.0, %v2278
    %v2280 = vmul.f32 %v2277, %v2279
    %v2281 = vadd.f32 %v2277, %v2280
    %vm2282 = vweird.f32 %v2276
    %vm2283 = vweird.f32 %v2277
    %vm2284 = vmor %vm2282, %vm2283
    %v2285 = vsel %vm2284, %v2277, %v2281
    %v2286 = vand.u32 2147483647, %v2276
    %vm2287 = vcmp.eq.f32.partialorder %v2286, 8.507059e+37
    %v2288 = vand.u32 %v2276, 2147483648
    %v2289 = vor.u32 1.1754944e-38, %v2288
    %v2290 = vsel %vm2287, %v2289, %v2285
    %v2291 = vmul.f32 1.0, %v2290
    %v2292 = vtanh.pop %v2272
    %v2294 = vrot.slane %v2236, 6
    %v2296 = vmul.f32 %v2291, %v2294
    %2298 = vrot.lane.b32.xlu0 %v2292, 64
    %v2299 = vpop.permute.xlu0 %2298
    %v2301 = vmul.f32 %v2291, %v2299
    %2303 = vrot.lane.b32.xlu0 %v2301, 32
    %v2304 = vpop.permute.xlu0 %2303
    %v2306 = vadd.f32 %v2296, %v2304
    %v2307 = vtanh.pop %v2306
    %2309 = vrot.lane.b32.xlu0 %v2307, 64
    %v2310 = vpop.permute.xlu0 %2309
    %v2312 = vmul.f32 %v2291, %v2310
    %v2314 = vrot.slane %v2312, 6
    %2315 = vrot.lane.b32.xlu0 %v2314, 32
    %v2316 = vpop.permute.xlu0 %2315
    %v2317 = vsel %vm1766, %v2316, 0
    %2319 = vmatpush.msra.mxu0 0.0
    %2320 = vmatpush.msra.mxu0 0.0
    %2321 = vmatpush.msra.mxu0 0.0
    %2322 = vmatpush.msra.mxu0 0.0
    %2323 = vmatpush.msra.mxu0 0.0
    %2324 = vmatpush.msra.mxu0 0.0
    %2325 = vmatpush.msra.mxu0 0.0
    %2326 = vmatpush.msra.mxu0 0.0
    %2327 = vmatpush.msra.mxu0 0.0
    %2328 = vmatpush.msra.mxu0 0.0
    %2329 = vmatpush.msra.mxu0 0.0
    %2330 = vmatpush.msra.mxu0 0.0
    %2331 = vmatpush.msra.mxu0 %v1674
    %2332 = vmatpush.msra.mxu0 %v1673
    %2333 = vmatpush.msra.mxu0 %v1672
    %2334 = vmatpush.msra.mxu0 %v1671
    %2335 = vmatmul.f32.gmra.mxu0 %v2317
    %v2336 = vpop.f32.mrf.mxu0
    %v2337 = vadd.f32 0.0, %v2336
    %2338 = vdwg.mxu0
    %v2339 = vadd.f32 %v1764, %v2337
    %v2340 = vxor.u32 %v2339, 2147483648
    %v2341 = vmul.f32 %v2340, 1.442695
    %v2342 = vpow.pop %v2341
    %v2343 = vadd.f32 %v2342, 1.0
    %v2344 = vrcp.pop %v2343
    %v2345 = vmul.f32 %v2343, %v2344
    %v2346 = vsub.f32 1.0, %v2345
    %v2347 = vmul.f32 %v2344, %v2346
    %v2348 = vadd.f32 %v2344, %v2347
    %vm2349 = vweird.f32 %v2343
    %vm2350 = vweird.f32 %v2344
    %vm2351 = vmor %vm2349, %vm2350
    %v2352 = vsel %vm2351, %v2344, %v2348
    %v2353 = vand.u32 2147483647, %v2343
    %vm2354 = vcmp.eq.f32.partialorder %v2353, 8.507059e+37
    %v2355 = vand.u32 %v2343, 2147483648
    %v2356 = vor.u32 1.1754944e-38, %v2355
    %v2357 = vsel %vm2354, %v2356, %v2352
    %v2358 = vmul.f32 1.0, %v2357
    %v2359 = vtanh.pop %v2339
    %v2361 = vrot.slane %v2306, 6
    %v2363 = vmul.f32 %v2358, %v2361
    %2365 = vrot.lane.b32.xlu0 %v2359, 64
    %v2366 = vpop.permute.xlu0 %2365
    %v2368 = vmul.f32 %v2358, %v2366
    %2370 = vrot.lane.b32.xlu0 %v2368, 32
    %v2371 = vpop.permute.xlu0 %2370
    %v2373 = vadd.f32 %v2363, %v2371
    %v2374 = vtanh.pop %v2373
    %2376 = vrot.lane.b32.xlu0 %v2374, 64
    %v2377 = vpop.permute.xlu0 %2376
    %v2379 = vmul.f32 %v2358, %v2377
    %2381 = vrot.lane.b32.xlu0 %v2379, 32
    %v2382 = vpop.permute.xlu0 %2381
    %v2383 = vsel %vm1766, %v2382, 0
    %2385 = vmatpush.msra.mxu0 0.0
    %2386 = vmatpush.msra.mxu0 0.0
    %2387 = vmatpush.msra.mxu0 0.0
    %2388 = vmatpush.msra.mxu0 0.0
    %2389 = vmatpush.msra.mxu0 0.0
    %2390 = vmatpush.msra.mxu0 0.0
    %2391 = vmatpush.msra.mxu0 0.0
    %2392 = vmatpush.msra.mxu0 0.0
    %2393 = vmatpush.msra.mxu0 0.0
    %2394 = vmatpush.msra.mxu0 0.0
    %2395 = vmatpush.msra.mxu0 0.0
    %2396 = vmatpush.msra.mxu0 0.0
    %2397 = vmatpush.msra.mxu0 %v1674
    %2398 = vmatpush.msra.mxu0 %v1673
    %2399 = vmatpush.msra.mxu0 %v1672
    %2400 = vmatpush.msra.mxu0 %v1671
    %2401 = vmatmul.f32.gmra.mxu0 %v2383
    %v2402 = vpop.f32.mrf.mxu0
    %v2403 = vadd.f32 0.0, %v2402
    %2404 = vdwg.mxu0
    %v2406 = vrot.slane %v2403, 6
    %v2408 = vadd.f32 %v1764, %v2406
    %v2409 = vxor.u32 %v2408, 2147483648
    %v2410 = vmul.f32 %v2409, 1.442695
    %v2411 = vpow.pop %v2410
    %v2412 = vadd.f32 %v2411, 1.0
    %v2413 = vrcp.pop %v2412
    %v2414 = vmul.f32 %v2412, %v2413
    %v2415 = vsub.f32 1.0, %v2414
    %v2416 = vmul.f32 %v2413, %v2415
    %v2417 = vadd.f32 %v2413, %v2416
    %vm2418 = vweird.f32 %v2412
    %vm2419 = vweird.f32 %v2413
    %vm2420 = vmor %vm2418, %vm2419
    %v2421 = vsel %vm2420, %v2413, %v2417
    %v2422 = vand.u32 2147483647, %v2412
    %vm2423 = vcmp.eq.f32.partialorder %v2422, 8.507059e+37
    %v2424 = vand.u32 %v2412, 2147483648
    %v2425 = vor.u32 1.1754944e-38, %v2424
    %v2426 = vsel %vm2423, %v2425, %v2421
    %v2427 = vmul.f32 1.0, %v2426
    %v2428 = vtanh.pop %v2408
    %v2430 = vrot.slane %v2373, 6
    %v2432 = vmul.f32 %v2427, %v2430
    %2434 = vrot.lane.b32.xlu0 %v2428, 64
    %v2435 = vpop.permute.xlu0 %2434
    %v2437 = vmul.f32 %v2427, %v2435
    %2439 = vrot.lane.b32.xlu0 %v2437, 32
    %v2440 = vpop.permute.xlu0 %2439
    %v2442 = vadd.f32 %v2432, %v2440
    %v2443 = vtanh.pop %v2442
    %2445 = vrot.lane.b32.xlu0 %v2443, 64
    %v2446 = vpop.permute.xlu0 %2445
    %v2448 = vmul.f32 %v2427, %v2446
    %v2450 = vrot.slane %v2448, 2
    %2451 = vrot.lane.b32.xlu0 %v2450, 32
    %v2452 = vpop.permute.xlu0 %2451
    %v2453 = vsel %vm1766, %v2452, 0
    %2455 = vmatpush.msra.mxu0 0.0
    %2456 = vmatpush.msra.mxu0 0.0
    %2457 = vmatpush.msra.mxu0 0.0
    %2458 = vmatpush.msra.mxu0 0.0
    %2459 = vmatpush.msra.mxu0 0.0
    %2460 = vmatpush.msra.mxu0 0.0
    %2461 = vmatpush.msra.mxu0 0.0
    %2462 = vmatpush.msra.mxu0 0.0
    %2463 = vmatpush.msra.mxu0 0.0
    %2464 = vmatpush.msra.mxu0 0.0
    %2465 = vmatpush.msra.mxu0 0.0
    %2466 = vmatpush.msra.mxu0 0.0
    %2467 = vmatpush.msra.mxu0 %v1674
    %2468 = vmatpush.msra.mxu0 %v1673
    %2469 = vmatpush.msra.mxu0 %v1672
    %2470 = vmatpush.msra.mxu0 %v1671
    %2471 = vmatmul.f32.gmra.mxu0 %v2453
    %v2472 = vpop.f32.mrf.mxu0
    %v2473 = vadd.f32 0.0, %v2472
    %2474 = vdwg.mxu0
    %v2476 = vrot.slane %v2473, 4
    %v2478 = vadd.f32 %v1764, %v2476
    %v2479 = vxor.u32 %v2478, 2147483648
    %v2480 = vmul.f32 %v2479, 1.442695
    %v2481 = vpow.pop %v2480
    %v2482 = vadd.f32 %v2481, 1.0
    %v2483 = vrcp.pop %v2482
    %v2484 = vmul.f32 %v2482, %v2483
    %v2485 = vsub.f32 1.0, %v2484
    %v2486 = vmul.f32 %v2483, %v2485
    %v2487 = vadd.f32 %v2483, %v2486
    %vm2488 = vweird.f32 %v2482
    %vm2489 = vweird.f32 %v2483
    %vm2490 = vmor %vm2488, %vm2489
    %v2491 = vsel %vm2490, %v2483, %v2487
    %v2492 = vand.u32 2147483647, %v2482
    %vm2493 = vcmp.eq.f32.partialorder %v2492, 8.507059e+37
    %v2494 = vand.u32 %v2482, 2147483648
    %v2495 = vor.u32 1.1754944e-38, %v2494
    %v2496 = vsel %vm2493, %v2495, %v2491
    %v2497 = vmul.f32 1.0, %v2496
    %v2498 = vtanh.pop %v2478
    %v2500 = vrot.slane %v2442, 6
    %v2502 = vmul.f32 %v2497, %v2500
    %2504 = vrot.lane.b32.xlu0 %v2498, 64
    %v2505 = vpop.permute.xlu0 %2504
    %v2507 = vmul.f32 %v2497, %v2505
    %2509 = vrot.lane.b32.xlu0 %v2507, 32
    %v2510 = vpop.permute.xlu0 %2509
    %v2512 = vadd.f32 %v2502, %v2510
    %v2513 = vtanh.pop %v2512
    %2515 = vrot.lane.b32.xlu0 %v2513, 64
    %v2516 = vpop.permute.xlu0 %2515
    %v2518 = vmul.f32 %v2497, %v2516
    %v2520 = vrot.slane %v2518, 4
    %2521 = vrot.lane.b32.xlu0 %v2520, 32
    %v2522 = vpop.permute.xlu0 %2521
    %v2523 = vsel %vm1766, %v2522, 0
    %2525 = vmatpush.msra.mxu0 0.0
    %2526 = vmatpush.msra.mxu0 0.0
    %2527 = vmatpush.msra.mxu0 0.0
    %2528 = vmatpush.msra.mxu0 0.0
    %2529 = vmatpush.msra.mxu0 0.0
    %2530 = vmatpush.msra.mxu0 0.0
    %2531 = vmatpush.msra.mxu0 0.0
    %2532 = vmatpush.msra.mxu0 0.0
    %2533 = vmatpush.msra.mxu0 0.0
    %2534 = vmatpush.msra.mxu0 0.0
    %2535 = vmatpush.msra.mxu0 0.0
    %2536 = vmatpush.msra.mxu0 0.0
    %2537 = vmatpush.msra.mxu0 %v1674
    %2538 = vmatpush.msra.mxu0 %v1673
    %2539 = vmatpush.msra.mxu0 %v1672
    %2540 = vmatpush.msra.mxu0 %v1671
    %2541 = vmatmul.f32.gmra.mxu0 %v2523
    %v2542 = vpop.f32.mrf.mxu0
    %v2543 = vadd.f32 0.0, %v2542
    %2544 = vdwg.mxu0
    %v2546 = vrot.slane %v2543, 2
    %v2548 = vadd.f32 %v1764, %v2546
    %v2549 = vxor.u32 %v2548, 2147483648
    %v2550 = vmul.f32 %v2549, 1.442695
    %v2551 = vpow.pop %v2550
    %v2552 = vadd.f32 %v2551, 1.0
    %v2553 = vrcp.pop %v2552
    %v2554 = vmul.f32 %v2552, %v2553
    %v2555 = vsub.f32 1.0, %v2554
    %v2556 = vmul.f32 %v2553, %v2555
    %v2557 = vadd.f32 %v2553, %v2556
    %vm2558 = vweird.f32 %v2552
    %vm2559 = vweird.f32 %v2553
    %vm2560 = vmor %vm2558, %vm2559
    %v2561 = vsel %vm2560, %v2553, %v2557
    %v2562 = vand.u32 2147483647, %v2552
    %vm2563 = vcmp.eq.f32.partialorder %v2562, 8.507059e+37
    %v2564 = vand.u32 %v2552, 2147483648
    %v2565 = vor.u32 1.1754944e-38, %v2564
    %v2566 = vsel %vm2563, %v2565, %v2561
    %v2567 = vmul.f32 1.0, %v2566
    %v2568 = vtanh.pop %v2548
    %v2570 = vrot.slane %v2512, 6
    %v2572 = vmul.f32 %v2567, %v2570
    %2574 = vrot.lane.b32.xlu0 %v2568, 64
    %v2575 = vpop.permute.xlu0 %2574
    %v2577 = vmul.f32 %v2567, %v2575
    %2579 = vrot.lane.b32.xlu0 %v2577, 32
    %v2580 = vpop.permute.xlu0 %2579
    %v2582 = vadd.f32 %v2572, %v2580
    %v2583 = vtanh.pop %v2582
    %2585 = vrot.lane.b32.xlu0 %v2583, 64
    %v2586 = vpop.permute.xlu0 %2585
    %v2588 = vmul.f32 %v2567, %v2586
    %v2590 = vrot.slane %v2588, 6
    %2591 = vrot.lane.b32.xlu0 %v2590, 32
    %v2592 = vpop.permute.xlu0 %2591
    %v2593 = vsel %vm1766, %v2592, 0
    %2595 = vmatpush.msra.mxu0 0.0
    %2596 = vmatpush.msra.mxu0 0.0
    %2597 = vmatpush.msra.mxu0 0.0
    %2598 = vmatpush.msra.mxu0 0.0
    %2599 = vmatpush.msra.mxu0 0.0
    %2600 = vmatpush.msra.mxu0 0.0
    %2601 = vmatpush.msra.mxu0 0.0
    %2602 = vmatpush.msra.mxu0 0.0
    %2603 = vmatpush.msra.mxu0 0.0
    %2604 = vmatpush.msra.mxu0 0.0
    %2605 = vmatpush.msra.mxu0 0.0
    %2606 = vmatpush.msra.mxu0 0.0
    %2607 = vmatpush.msra.mxu0 %v1674
    %2608 = vmatpush.msra.mxu0 %v1673
    %2609 = vmatpush.msra.mxu0 %v1672
    %2610 = vmatpush.msra.mxu0 %v1671
    %2611 = vmatmul.f32.gmra.mxu0 %v2593
    %v2612 = vpop.f32.mrf.mxu0
    %v2613 = vadd.f32 0.0, %v2612
    %2614 = vdwg.mxu0
    %v2615 = vadd.f32 %v1765, %v2613
    %v2616 = vxor.u32 %v2615, 2147483648
    %v2617 = vmul.f32 %v2616, 1.442695
    %v2618 = vpow.pop %v2617
    %v2619 = vadd.f32 %v2618, 1.0
    %v2620 = vrcp.pop %v2619
    %v2621 = vmul.f32 %v2619, %v2620
    %v2622 = vsub.f32 1.0, %v2621
    %v2623 = vmul.f32 %v2620, %v2622
    %v2624 = vadd.f32 %v2620, %v2623
    %vm2625 = vweird.f32 %v2619
    %vm2626 = vweird.f32 %v2620
    %vm2627 = vmor %vm2625, %vm2626
    %v2628 = vsel %vm2627, %v2620, %v2624
    %v2629 = vand.u32 2147483647, %v2619
    %vm2630 = vcmp.eq.f32.partialorder %v2629, 8.507059e+37
    %v2631 = vand.u32 %v2619, 2147483648
    %v2632 = vor.u32 1.1754944e-38, %v2631
    %v2633 = vsel %vm2630, %v2632, %v2628
    %v2634 = vmul.f32 1.0, %v2633
    %v2635 = vtanh.pop %v2615
    %v2637 = vrot.slane %v2582, 6
    %v2639 = vmul.f32 %v2634, %v2637
    %2641 = vrot.lane.b32.xlu0 %v2635, 64
    %v2642 = vpop.permute.xlu0 %2641
    %v2644 = vmul.f32 %v2634, %v2642
    %2646 = vrot.lane.b32.xlu0 %v2644, 32
    %v2647 = vpop.permute.xlu0 %2646
    %v2649 = vadd.f32 %v2639, %v2647
    %v2650 = vtanh.pop %v2649
    %2652 = vrot.lane.b32.xlu0 %v2650, 64
    %v2653 = vpop.permute.xlu0 %2652
    %v2655 = vmul.f32 %v2634, %v2653
    %2657 = vrot.lane.b32.xlu0 %v2655, 32
    %v2658 = vpop.permute.xlu0 %2657
    %v2659 = vsel %vm1766, %v2658, 0
    %2661 = vmatpush.msra.mxu0 0.0
    %2662 = vmatpush.msra.mxu0 0.0
    %2663 = vmatpush.msra.mxu0 0.0
    %2664 = vmatpush.msra.mxu0 0.0
    %2665 = vmatpush.msra.mxu0 0.0
    %2666 = vmatpush.msra.mxu0 0.0
    %2667 = vmatpush.msra.mxu0 0.0
    %2668 = vmatpush.msra.mxu0 0.0
    %2669 = vmatpush.msra.mxu0 0.0
    %2670 = vmatpush.msra.mxu0 0.0
    %2671 = vmatpush.msra.mxu0 0.0
    %2672 = vmatpush.msra.mxu0 0.0
    %2673 = vmatpush.msra.mxu0 %v1674
    %2674 = vmatpush.msra.mxu0 %v1673
    %2675 = vmatpush.msra.mxu0 %v1672
    %2676 = vmatpush.msra.mxu0 %v1671
    %2677 = vmatmul.f32.gmra.mxu0 %v2659
    %v2678 = vpop.f32.mrf.mxu0
    %v2679 = vadd.f32 0.0, %v2678
    %2680 = vdwg.mxu0
    %v2682 = vrot.slane %v2679, 6
    %v2684 = vadd.f32 %v1765, %v2682
    %v2685 = vxor.u32 %v2684, 2147483648
    %v2686 = vmul.f32 %v2685, 1.442695
    %v2687 = vpow.pop %v2686
    %v2688 = vadd.f32 %v2687, 1.0
    %v2689 = vrcp.pop %v2688
    %v2690 = vmul.f32 %v2688, %v2689
    %v2691 = vsub.f32 1.0, %v2690
    %v2692 = vmul.f32 %v2689, %v2691
    %v2693 = vadd.f32 %v2689, %v2692
    %vm2694 = vweird.f32 %v2688
    %vm2695 = vweird.f32 %v2689
    %vm2696 = vmor %vm2694, %vm2695
    %v2697 = vsel %vm2696, %v2689, %v2693
    %v2698 = vand.u32 2147483647, %v2688
    %vm2699 = vcmp.eq.f32.partialorder %v2698, 8.507059e+37
    %v2700 = vand.u32 %v2688, 2147483648
    %v2701 = vor.u32 1.1754944e-38, %v2700
    %v2702 = vsel %vm2699, %v2701, %v2697
    %v2703 = vmul.f32 1.0, %v2702
    %v2704 = vtanh.pop %v2684
    %v2706 = vrot.slane %v2649, 6
    %v2708 = vmul.f32 %v2703, %v2706
    %2710 = vrot.lane.b32.xlu0 %v2704, 64
    %v2711 = vpop.permute.xlu0 %2710
    %v2713 = vmul.f32 %v2703, %v2711
    %2715 = vrot.lane.b32.xlu0 %v2713, 32
    %v2716 = vpop.permute.xlu0 %2715
    %v2718 = vadd.f32 %v2708, %v2716
    %v2719 = vtanh.pop %v2718
    %2721 = vrot.lane.b32.xlu0 %v2719, 64
    %v2722 = vpop.permute.xlu0 %2721
    %v2724 = vmul.f32 %v2703, %v2722
    %v2726 = vrot.slane %v2724, 2
    %2727 = vrot.lane.b32.xlu0 %v2726, 32
    %v2728 = vpop.permute.xlu0 %2727
    %v2729 = vsel %vm1766, %v2728, 0
    %2731 = vmatpush.msra.mxu0 0.0
    %2732 = vmatpush.msra.mxu0 0.0
    %2733 = vmatpush.msra.mxu0 0.0
    %2734 = vmatpush.msra.mxu0 0.0
    %2735 = vmatpush.msra.mxu0 0.0
    %2736 = vmatpush.msra.mxu0 0.0
    %2737 = vmatpush.msra.mxu0 0.0
    %2738 = vmatpush.msra.mxu0 0.0
    %2739 = vmatpush.msra.mxu0 0.0
    %2740 = vmatpush.msra.mxu0 0.0
    %2741 = vmatpush.msra.mxu0 0.0
    %2742 = vmatpush.msra.mxu0 0.0
    %2743 = vmatpush.msra.mxu0 %v1674
    %2744 = vmatpush.msra.mxu0 %v1673
    %2745 = vmatpush.msra.mxu0 %v1672
    %2746 = vmatpush.msra.mxu0 %v1671
    %2747 = vmatmul.f32.gmra.mxu0 %v2729
    %v2748 = vpop.f32.mrf.mxu0
    %v2749 = vadd.f32 0.0, %v2748
    %2750 = vdwg.mxu0
    %v2752 = vrot.slane %v2749, 4
    %v2754 = vadd.f32 %v1765, %v2752
    %v2755 = vxor.u32 %v2754, 2147483648
    %v2756 = vmul.f32 %v2755, 1.442695
    %v2757 = vpow.pop %v2756
    %v2758 = vadd.f32 %v2757, 1.0
    %v2759 = vrcp.pop %v2758
    %v2760 = vmul.f32 %v2758, %v2759
    %v2761 = vsub.f32 1.0, %v2760
    %v2762 = vmul.f32 %v2759, %v2761
    %v2763 = vadd.f32 %v2759, %v2762
    %vm2764 = vweird.f32 %v2758
    %vm2765 = vweird.f32 %v2759
    %vm2766 = vmor %vm2764, %vm2765
    %v2767 = vsel %vm2766, %v2759, %v2763
    %v2768 = vand.u32 2147483647, %v2758
    %vm2769 = vcmp.eq.f32.partialorder %v2768, 8.507059e+37
    %v2770 = vand.u32 %v2758, 2147483648
    %v2771 = vor.u32 1.1754944e-38, %v2770
    %v2772 = vsel %vm2769, %v2771, %v2767
    %v2773 = vmul.f32 1.0, %v2772
    %v2774 = vtanh.pop %v2754
    %v2776 = vrot.slane %v2718, 6
    %v2778 = vmul.f32 %v2773, %v2776
    %2780 = vrot.lane.b32.xlu0 %v2774, 64
    %v2781 = vpop.permute.xlu0 %2780
    %v2783 = vmul.f32 %v2773, %v2781
    %2785 = vrot.lane.b32.xlu0 %v2783, 32
    %v2786 = vpop.permute.xlu0 %2785
    %v2788 = vadd.f32 %v2778, %v2786
    %v2789 = vtanh.pop %v2788
    %2791 = vrot.lane.b32.xlu0 %v2789, 64
    %v2792 = vpop.permute.xlu0 %2791
    %v2794 = vmul.f32 %v2773, %v2792
    %v2796 = vrot.slane %v2794, 4
    %2797 = vrot.lane.b32.xlu0 %v2796, 32
    %v2798 = vpop.permute.xlu0 %2797
    %v2799 = vsel %vm1766, %v2798, 0
    %2801 = vmatpush.msra.mxu0 0.0
    %2802 = vmatpush.msra.mxu0 0.0
    %2803 = vmatpush.msra.mxu0 0.0
    %2804 = vmatpush.msra.mxu0 0.0
    %2805 = vmatpush.msra.mxu0 0.0
    %2806 = vmatpush.msra.mxu0 0.0
    %2807 = vmatpush.msra.mxu0 0.0
    %2808 = vmatpush.msra.mxu0 0.0
    %2809 = vmatpush.msra.mxu0 0.0
    %2810 = vmatpush.msra.mxu0 0.0
    %2811 = vmatpush.msra.mxu0 0.0
    %2812 = vmatpush.msra.mxu0 0.0
    %2813 = vmatpush.msra.mxu0 %v1674
    %2814 = vmatpush.msra.mxu0 %v1673
    %2815 = vmatpush.msra.mxu0 %v1672
    %2816 = vmatpush.msra.mxu0 %v1671
    %2817 = vmatmul.f32.gmra.mxu0 %v2799
    %v2818 = vpop.f32.mrf.mxu0
    %v2819 = vadd.f32 0.0, %v2818
    %2820 = vdwg.mxu0
    %v2822 = vrot.slane %v2819, 2
    %v2824 = vadd.f32 %v1765, %v2822
    %v2825 = vxor.u32 %v2824, 2147483648
    %v2826 = vmul.f32 %v2825, 1.442695
    %v2827 = vpow.pop %v2826
    %v2828 = vadd.f32 %v2827, 1.0
    %v2829 = vrcp.pop %v2828
    %v2830 = vmul.f32 %v2828, %v2829
    %v2831 = vsub.f32 1.0, %v2830
    %v2832 = vmul.f32 %v2829, %v2831
    %v2833 = vadd.f32 %v2829, %v2832
    %vm2834 = vweird.f32 %v2828
    %vm2835 = vweird.f32 %v2829
    %vm2836 = vmor %vm2834, %vm2835
    %v2837 = vsel %vm2836, %v2829, %v2833
    %v2838 = vand.u32 2147483647, %v2828
    %vm2839 = vcmp.eq.f32.partialorder %v2838, 8.507059e+37
    %v2840 = vand.u32 %v2828, 2147483648
    %v2841 = vor.u32 1.1754944e-38, %v2840
    %v2842 = vsel %vm2839, %v2841, %v2837
    %v2843 = vmul.f32 1.0, %v2842
    %v2844 = vtanh.pop %v2824
    %v2846 = vrot.slane %v2788, 6
    %v2848 = vmul.f32 %v2843, %v2846
    %2850 = vrot.lane.b32.xlu0 %v2844, 64
    %v2851 = vpop.permute.xlu0 %2850
    %v2853 = vmul.f32 %v2843, %v2851
    %2855 = vrot.lane.b32.xlu0 %v2853, 32
    %v2856 = vpop.permute.xlu0 %2855
    %v2858 = vadd.f32 %v2848, %v2856
    %v2859 = vtanh.pop %v2858
    %2861 = vrot.lane.b32.xlu0 %v2859, 64
    %v2862 = vpop.permute.xlu0 %2861
    %v2864 = vmul.f32 %v2843, %v2862
    %v2865 = vsel %vm1610, %v1827, %v1896
    %v2866 = vsel %vm1612, %v2865, %v1966
    %v2867 = vsel %vm1614, %v2866, %v2036
    %v2868 = vsel %vm1610, %v2103, %v2172
    %v2869 = vsel %vm1612, %v2868, %v2242
    %v2870 = vsel %vm1614, %v2869, %v2312
    %v2871 = vsel %vm1610, %v2379, %v2448
    %v2872 = vsel %vm1612, %v2871, %v2518
    %v2873 = vsel %vm1614, %v2872, %v2588
    %v2874 = vsel %vm1610, %v2655, %v2724
    %v2875 = vsel %vm1612, %v2874, %v2794
    %v2876 = vsel %vm1614, %v2875, %v2864
    %v2878 = vrot.slane %v2864, 6
    %v2880 = vrot.slane %v2794, 2
    %v2882 = vrot.slane %v2724, 6
    %v2884 = vrot.slane %v2655, 2
    %v2887 = vrot.slane %v2518, 2
    %v2889 = vrot.slane %v2448, 6
    %v2891 = vrot.slane %v2379, 2
    %v2894 = vrot.slane %v2242, 2
    %v2896 = vrot.slane %v2172, 6
    %v2898 = vrot.slane %v2103, 2
    %v2901 = vrot.slane %v1966, 2
    %v2903 = vrot.slane %v1896, 6
    %v2905 = vrot.slane %v1827, 2
    %v2907 = vsel %vm1610, %v2878, %v2880
    %v2908 = vsel %vm1612, %v2907, %v2882
    %v2909 = vsel %vm1614, %v2908, %v2884
    %v2910 = vsel %vm1610, %v2590, %v2887
    %v2911 = vsel %vm1612, %v2910, %v2889
    %v2912 = vsel %vm1614, %v2911, %v2891
    %v2913 = vsel %vm1610, %v2314, %v2894
    %v2914 = vsel %vm1612, %v2913, %v2896
    %v2915 = vsel %vm1614, %v2914, %v2898
    %v2916 = vsel %vm1610, %v2038, %v2901
    %v2917 = vsel %vm1612, %v2916, %v2903
    %v2918 = vsel %vm1614, %v2917, %v2905
    %v2919 = vld [vmem:[#allocation7] sm:$0xff]
    %v2920 = vld [vmem:[#allocation7 + $0x8] sm:$0xff]
    %v2921 = vld [vmem:[#allocation7 + $0x10] sm:$0xff]
    %v2922 = vld [vmem:[#allocation7 + $0x18] sm:$0xff]
    %v2923 = vld [vmem:[#allocation8] sm:$0xff]
    %v2924 = vld [vmem:[#allocation8 + $0x8] sm:$0xff]
    %v2925 = vld [vmem:[#allocation8 + $0x10] sm:$0xff]
    %v2926 = vld [vmem:[#allocation8 + $0x18] sm:$0xff]
    %v2927 = vld [vmem:[#allocation10] sm:$0xff]
    %v2928 = vld [vmem:[#allocation10 + $0x8] sm:$0xff]
    %v2929 = vld [vmem:[#allocation10 + $0x10] sm:$0xff]
    %v2930 = vld [vmem:[#allocation10 + $0x18] sm:$0xff]
    %v2931 = vld [vmem:[%s11] sm:$0x1]
    %2936 = vrot.lane.b32.xlu0 %v2909, 32
    %v2937 = vpop.permute.xlu0 %2936
    %2938 = vrot.lane.b32.xlu0 %v2912, 32
    %v2939 = vpop.permute.xlu0 %2938
    %2940 = vrot.lane.b32.xlu0 %v2915, 32
    %v2941 = vpop.permute.xlu0 %2940
    %2942 = vrot.lane.b32.xlu0 %v2918, 32
    %v2943 = vpop.permute.xlu0 %2942
    %v2944 = vsel %vm1766, %v2937, 0
    %v2946 = vsel %vm1766, %v2939, 0
    %v2948 = vsel %vm1766, %v2941, 0
    %v2950 = vsel %vm1766, %v2943, 0
    %2952 = vmatpush.msra.mxu0 0.0
    %2953 = vmatpush.msra.mxu0 0.0
    %2954 = vmatpush.msra.mxu0 0.0
    %2955 = vmatpush.msra.mxu0 0.0
    %2956 = vmatpush.msra.mxu0 0.0
    %2957 = vmatpush.msra.mxu0 0.0
    %2958 = vmatpush.msra.mxu0 0.0
    %2959 = vmatpush.msra.mxu0 0.0
    %2960 = vmatpush.msra.mxu0 0.0
    %2961 = vmatpush.msra.mxu0 0.0
    %2962 = vmatpush.msra.mxu0 0.0
    %2963 = vmatpush.msra.mxu0 0.0
    %2964 = vmatpush.msra.mxu0 %v2926
    %2965 = vmatpush.msra.mxu0 %v2925
    %2966 = vmatpush.msra.mxu0 %v2924
    %2967 = vmatpush.msra.mxu0 %v2923
    %2968 = vmatmul.f32.gmra.mxu0 %v2944
    %v2969 = vpop.f32.mrf.mxu0
    %v2970 = vadd.f32 0.0, %v2969
    %2971 = vmatmul.f32.gmra.mxu0 %v2946
    %v2972 = vpop.f32.mrf.mxu0
    %v2973 = vadd.f32 0.0, %v2972
    %2974 = vmatmul.f32.gmra.mxu0 %v2948
    %v2975 = vpop.f32.mrf.mxu0
    %v2976 = vadd.f32 0.0, %v2975
    %2977 = vmatmul.f32.gmra.mxu0 %v2950
    %v2978 = vpop.f32.mrf.mxu0
    %v2979 = vadd.f32 0.0, %v2978
    %2980 = vdwg.mxu0
    %2985 = vrot.lane.b32.xlu0 %v2867, 32
    %v2986 = vpop.permute.xlu0 %2985
    %2987 = vrot.lane.b32.xlu0 %v2870, 32
    %v2988 = vpop.permute.xlu0 %2987
    %2989 = vrot.lane.b32.xlu0 %v2873, 32
    %v2990 = vpop.permute.xlu0 %2989
    %2991 = vrot.lane.b32.xlu0 %v2876, 32
    %v2992 = vpop.permute.xlu0 %2991
    %v2993 = vsel %vm1766, %v2986, 0
    %v2995 = vsel %vm1766, %v2988, 0
    %v2997 = vsel %vm1766, %v2990, 0
    %v2999 = vsel %vm1766, %v2992, 0
    %3001 = vmatpush.msra.mxu0 0.0
    %3002 = vmatpush.msra.mxu0 0.0
    %3003 = vmatpush.msra.mxu0 0.0
    %3004 = vmatpush.msra.mxu0 0.0
    %3005 = vmatpush.msra.mxu0 0.0
    %3006 = vmatpush.msra.mxu0 0.0
    %3007 = vmatpush.msra.mxu0 0.0
    %3008 = vmatpush.msra.mxu0 0.0
    %3009 = vmatpush.msra.mxu0 0.0
    %3010 = vmatpush.msra.mxu0 0.0
    %3011 = vmatpush.msra.mxu0 0.0
    %3012 = vmatpush.msra.mxu0 0.0
    %3013 = vmatpush.msra.mxu0 %v2922
    %3014 = vmatpush.msra.mxu0 %v2921
    %3015 = vmatpush.msra.mxu0 %v2920
    %3016 = vmatpush.msra.mxu0 %v2919
    %3017 = vmatmul.f32.gmra.mxu0 %v2993
    %v3018 = vpop.f32.mrf.mxu0
    %v3019 = vadd.f32 %v2970, %v3018
    %3020 = vmatmul.f32.gmra.mxu0 %v2995
    %v3021 = vpop.f32.mrf.mxu0
    %v3022 = vadd.f32 %v2973, %v3021
    %3023 = vmatmul.f32.gmra.mxu0 %v2997
    %v3024 = vpop.f32.mrf.mxu0
    %v3025 = vadd.f32 %v2976, %v3024
    %3026 = vmatmul.f32.gmra.mxu0 %v2999
    %v3027 = vpop.f32.mrf.mxu0
    %v3028 = vadd.f32 %v2979, %v3027
    %3029 = vdwg.mxu0
    %v3031 = vperm.slane %v2931, 0
    %v3033 = vadd.f32 %v3019, %v3031
    %v3034 = vadd.f32 %v3022, %v3031
    %v3035 = vadd.f32 %v3025, %v3031
    %v3036 = vadd.f32 %v3028, %v3031
    %3037 = vmatpush.msra.mxu0 0.0
    %3038 = vmatpush.msra.mxu0 0.0
    %3039 = vmatpush.msra.mxu0 0.0
    %3040 = vmatpush.msra.mxu0 0.0
    %3041 = vmatpush.msra.mxu0 0.0
    %3042 = vmatpush.msra.mxu0 0.0
    %3043 = vmatpush.msra.mxu0 0.0
    %3044 = vmatpush.msra.mxu0 0.0
    %3045 = vmatpush.msra.mxu0 0.0
    %3046 = vmatpush.msra.mxu0 0.0
    %3047 = vmatpush.msra.mxu0 0.0
    %3048 = vmatpush.msra.mxu0 0.0
    %3049 = vmatpush.msra.mxu0 %v2930
    %3050 = vmatpush.msra.mxu0 %v2929
    %3051 = vmatpush.msra.mxu0 %v2928
    %3052 = vmatpush.msra.mxu0 %v2927
    %3053 = vmatmul.f32.gmra.mxu0 %v1768
    %v3054 = vpop.f32.mrf.mxu0
    %v3055 = vadd.f32 0.0, %v3054
    %3056 = vdwg.mxu0
    %v3057 = vadd.f32 %v3033, %v3055
    %v3058 = vxor.u32 %v3057, 2147483648
    %v3059 = vmul.f32 %v3058, 1.442695
    %v3060 = vpow.pop %v3059
    %v3061 = vadd.f32 %v3060, 1.0
    %v3062 = vrcp.pop %v3061
    %v3063 = vmul.f32 %v3061, %v3062
    %v3064 = vsub.f32 1.0, %v3063
    %v3065 = vmul.f32 %v3062, %v3064
    %v3066 = vadd.f32 %v3062, %v3065
    %vm3067 = vweird.f32 %v3061
    %vm3068 = vweird.f32 %v3062
    %vm3069 = vmor %vm3067, %vm3068
    %v3070 = vsel %vm3069, %v3062, %v3066
    %v3071 = vand.u32 2147483647, %v3061
    %vm3072 = vcmp.eq.f32.partialorder %v3071, 8.507059e+37
    %v3073 = vand.u32 %v3061, 2147483648
    %v3074 = vor.u32 1.1754944e-38, %v3073
    %v3075 = vsel %vm3072, %v3074, %v3070
    %v3076 = vmul.f32 1.0, %v3075
    %v3077 = vtanh.pop %v3057
    %v3078 = vmul.f32 %v3076, 0.0
    %3080 = vrot.lane.b32.xlu0 %v3077, 64
    %v3081 = vpop.permute.xlu0 %3080
    %v3083 = vmul.f32 %v3076, %v3081
    %3085 = vrot.lane.b32.xlu0 %v3083, 32
    %v3086 = vpop.permute.xlu0 %3085
    %v3088 = vadd.f32 %v3078, %v3086
    %v3089 = vtanh.pop %v3088
    %3091 = vrot.lane.b32.xlu0 %v3089, 64
    %v3092 = vpop.permute.xlu0 %3091
    %v3094 = vmul.f32 %v3076, %v3092
    %3096 = vrot.lane.b32.xlu0 %v3094, 32
    %v3097 = vpop.permute.xlu0 %3096
    %v3098 = vsel %vm1766, %v3097, 0
    %3100 = vmatpush.msra.mxu0 0.0
    %3101 = vmatpush.msra.mxu0 0.0
    %3102 = vmatpush.msra.mxu0 0.0
    %3103 = vmatpush.msra.mxu0 0.0
    %3104 = vmatpush.msra.mxu0 0.0
    %3105 = vmatpush.msra.mxu0 0.0
    %3106 = vmatpush.msra.mxu0 0.0
    %3107 = vmatpush.msra.mxu0 0.0
    %3108 = vmatpush.msra.mxu0 0.0
    %3109 = vmatpush.msra.mxu0 0.0
    %3110 = vmatpush.msra.mxu0 0.0
    %3111 = vmatpush.msra.mxu0 0.0
    %3112 = vmatpush.msra.mxu0 %v2930
    %3113 = vmatpush.msra.mxu0 %v2929
    %3114 = vmatpush.msra.mxu0 %v2928
    %3115 = vmatpush.msra.mxu0 %v2927
    %3116 = vmatmul.f32.gmra.mxu0 %v3098
    %v3117 = vpop.f32.mrf.mxu0
    %v3118 = vadd.f32 0.0, %v3117
    %3119 = vdwg.mxu0
    %v3121 = vrot.slane %v3118, 6
    %v3123 = vadd.f32 %v3033, %v3121
    %v3124 = vxor.u32 %v3123, 2147483648
    %v3125 = vmul.f32 %v3124, 1.442695
    %v3126 = vpow.pop %v3125
    %v3127 = vadd.f32 %v3126, 1.0
    %v3128 = vrcp.pop %v3127
    %v3129 = vmul.f32 %v3127, %v3128
    %v3130 = vsub.f32 1.0, %v3129
    %v3131 = vmul.f32 %v3128, %v3130
    %v3132 = vadd.f32 %v3128, %v3131
    %vm3133 = vweird.f32 %v3127
    %vm3134 = vweird.f32 %v3128
    %vm3135 = vmor %vm3133, %vm3134
    %v3136 = vsel %vm3135, %v3128, %v3132
    %v3137 = vand.u32 2147483647, %v3127
    %vm3138 = vcmp.eq.f32.partialorder %v3137, 8.507059e+37
    %v3139 = vand.u32 %v3127, 2147483648
    %v3140 = vor.u32 1.1754944e-38, %v3139
    %v3141 = vsel %vm3138, %v3140, %v3136
    %v3142 = vmul.f32 1.0, %v3141
    %v3143 = vtanh.pop %v3123
    %v3145 = vrot.slane %v3088, 6
    %v3147 = vmul.f32 %v3142, %v3145
    %3149 = vrot.lane.b32.xlu0 %v3143, 64
    %v3150 = vpop.permute.xlu0 %3149
    %v3152 = vmul.f32 %v3142, %v3150
    %3154 = vrot.lane.b32.xlu0 %v3152, 32
    %v3155 = vpop.permute.xlu0 %3154
    %v3157 = vadd.f32 %v3147, %v3155
    %v3158 = vtanh.pop %v3157
    %3160 = vrot.lane.b32.xlu0 %v3158, 64
    %v3161 = vpop.permute.xlu0 %3160
    %v3163 = vmul.f32 %v3142, %v3161
    %v3165 = vrot.slane %v3163, 2
    %3166 = vrot.lane.b32.xlu0 %v3165, 32
    %v3167 = vpop.permute.xlu0 %3166
    %v3168 = vsel %vm1766, %v3167, 0
    %3170 = vmatpush.msra.mxu0 0.0
    %3171 = vmatpush.msra.mxu0 0.0
    %3172 = vmatpush.msra.mxu0 0.0
    %3173 = vmatpush.msra.mxu0 0.0
    %3174 = vmatpush.msra.mxu0 0.0
    %3175 = vmatpush.msra.mxu0 0.0
    %3176 = vmatpush.msra.mxu0 0.0
    %3177 = vmatpush.msra.mxu0 0.0
    %3178 = vmatpush.msra.mxu0 0.0
    %3179 = vmatpush.msra.mxu0 0.0
    %3180 = vmatpush.msra.mxu0 0.0
    %3181 = vmatpush.msra.mxu0 0.0
    %3182 = vmatpush.msra.mxu0 %v2930
    %3183 = vmatpush.msra.mxu0 %v2929
    %3184 = vmatpush.msra.mxu0 %v2928
    %3185 = vmatpush.msra.mxu0 %v2927
    %3186 = vmatmul.f32.gmra.mxu0 %v3168
    %v3187 = vpop.f32.mrf.mxu0
    %v3188 = vadd.f32 0.0, %v3187
    %3189 = vdwg.mxu0
    %v3191 = vrot.slane %v3188, 4
    %v3193 = vadd.f32 %v3033, %v3191
    %v3194 = vxor.u32 %v3193, 2147483648
    %v3195 = vmul.f32 %v3194, 1.442695
    %v3196 = vpow.pop %v3195
    %v3197 = vadd.f32 %v3196, 1.0
    %v3198 = vrcp.pop %v3197
    %v3199 = vmul.f32 %v3197, %v3198
    %v3200 = vsub.f32 1.0, %v3199
    %v3201 = vmul.f32 %v3198, %v3200
    %v3202 = vadd.f32 %v3198, %v3201
    %vm3203 = vweird.f32 %v3197
    %vm3204 = vweird.f32 %v3198
    %vm3205 = vmor %vm3203, %vm3204
    %v3206 = vsel %vm3205, %v3198, %v3202
    %v3207 = vand.u32 2147483647, %v3197
    %vm3208 = vcmp.eq.f32.partialorder %v3207, 8.507059e+37
    %v3209 = vand.u32 %v3197, 2147483648
    %v3210 = vor.u32 1.1754944e-38, %v3209
    %v3211 = vsel %vm3208, %v3210, %v3206
    %v3212 = vmul.f32 1.0, %v3211
    %v3213 = vtanh.pop %v3193
    %v3215 = vrot.slane %v3157, 6
    %v3217 = vmul.f32 %v3212, %v3215
    %3219 = vrot.lane.b32.xlu0 %v3213, 64
    %v3220 = vpop.permute.xlu0 %3219
    %v3222 = vmul.f32 %v3212, %v3220
    %3224 = vrot.lane.b32.xlu0 %v3222, 32
    %v3225 = vpop.permute.xlu0 %3224
    %v3227 = vadd.f32 %v3217, %v3225
    %v3228 = vtanh.pop %v3227
    %3230 = vrot.lane.b32.xlu0 %v3228, 64
    %v3231 = vpop.permute.xlu0 %3230
    %v3233 = vmul.f32 %v3212, %v3231
    %v3235 = vrot.slane %v3233, 4
    %3236 = vrot.lane.b32.xlu0 %v3235, 32
    %v3237 = vpop.permute.xlu0 %3236
    %v3238 = vsel %vm1766, %v3237, 0
    %3240 = vmatpush.msra.mxu0 0.0
    %3241 = vmatpush.msra.mxu0 0.0
    %3242 = vmatpush.msra.mxu0 0.0
    %3243 = vmatpush.msra.mxu0 0.0
    %3244 = vmatpush.msra.mxu0 0.0
    %3245 = vmatpush.msra.mxu0 0.0
    %3246 = vmatpush.msra.mxu0 0.0
    %3247 = vmatpush.msra.mxu0 0.0
    %3248 = vmatpush.msra.mxu0 0.0
    %3249 = vmatpush.msra.mxu0 0.0
    %3250 = vmatpush.msra.mxu0 0.0
    %3251 = vmatpush.msra.mxu0 0.0
    %3252 = vmatpush.msra.mxu0 %v2930
    %3253 = vmatpush.msra.mxu0 %v2929
    %3254 = vmatpush.msra.mxu0 %v2928
    %3255 = vmatpush.msra.mxu0 %v2927
    %3256 = vmatmul.f32.gmra.mxu0 %v3238
    %v3257 = vpop.f32.mrf.mxu0
    %v3258 = vadd.f32 0.0, %v3257
    %3259 = vdwg.mxu0
    %v3261 = vrot.slane %v3258, 2
    %v3263 = vadd.f32 %v3033, %v3261
    %v3264 = vxor.u32 %v3263, 2147483648
    %v3265 = vmul.f32 %v3264, 1.442695
    %v3266 = vpow.pop %v3265
    %v3267 = vadd.f32 %v3266, 1.0
    %v3268 = vrcp.pop %v3267
    %v3269 = vmul.f32 %v3267, %v3268
    %v3270 = vsub.f32 1.0, %v3269
    %v3271 = vmul.f32 %v3268, %v3270
    %v3272 = vadd.f32 %v3268, %v3271
    %vm3273 = vweird.f32 %v3267
    %vm3274 = vweird.f32 %v3268
    %vm3275 = vmor %vm3273, %vm3274
    %v3276 = vsel %vm3275, %v3268, %v3272
    %v3277 = vand.u32 2147483647, %v3267
    %vm3278 = vcmp.eq.f32.partialorder %v3277, 8.507059e+37
    %v3279 = vand.u32 %v3267, 2147483648
    %v3280 = vor.u32 1.1754944e-38, %v3279
    %v3281 = vsel %vm3278, %v3280, %v3276
    %v3282 = vmul.f32 1.0, %v3281
    %v3283 = vtanh.pop %v3263
    %v3285 = vrot.slane %v3227, 6
    %v3287 = vmul.f32 %v3282, %v3285
    %3289 = vrot.lane.b32.xlu0 %v3283, 64
    %v3290 = vpop.permute.xlu0 %3289
    %v3292 = vmul.f32 %v3282, %v3290
    %3294 = vrot.lane.b32.xlu0 %v3292, 32
    %v3295 = vpop.permute.xlu0 %3294
    %v3297 = vadd.f32 %v3287, %v3295
    %v3298 = vtanh.pop %v3297
    %3300 = vrot.lane.b32.xlu0 %v3298, 64
    %v3301 = vpop.permute.xlu0 %3300
    %v3303 = vmul.f32 %v3282, %v3301
    %v3305 = vrot.slane %v3303, 6
    %3306 = vrot.lane.b32.xlu0 %v3305, 32
    %v3307 = vpop.permute.xlu0 %3306
    %v3308 = vsel %vm1766, %v3307, 0
    %3310 = vmatpush.msra.mxu0 0.0
    %3311 = vmatpush.msra.mxu0 0.0
    %3312 = vmatpush.msra.mxu0 0.0
    %3313 = vmatpush.msra.mxu0 0.0
    %3314 = vmatpush.msra.mxu0 0.0
    %3315 = vmatpush.msra.mxu0 0.0
    %3316 = vmatpush.msra.mxu0 0.0
    %3317 = vmatpush.msra.mxu0 0.0
    %3318 = vmatpush.msra.mxu0 0.0
    %3319 = vmatpush.msra.mxu0 0.0
    %3320 = vmatpush.msra.mxu0 0.0
    %3321 = vmatpush.msra.mxu0 0.0
    %3322 = vmatpush.msra.mxu0 %v2930
    %3323 = vmatpush.msra.mxu0 %v2929
    %3324 = vmatpush.msra.mxu0 %v2928
    %3325 = vmatpush.msra.mxu0 %v2927
    %3326 = vmatmul.f32.gmra.mxu0 %v3308
    %v3327 = vpop.f32.mrf.mxu0
    %v3328 = vadd.f32 0.0, %v3327
    %3329 = vdwg.mxu0
    %v3330 = vadd.f32 %v3034, %v3328
    %v3331 = vxor.u32 %v3330, 2147483648
    %v3332 = vmul.f32 %v3331, 1.442695
    %v3333 = vpow.pop %v3332
    %v3334 = vadd.f32 %v3333, 1.0
    %v3335 = vrcp.pop %v3334
    %v3336 = vmul.f32 %v3334, %v3335
    %v3337 = vsub.f32 1.0, %v3336
    %v3338 = vmul.f32 %v3335, %v3337
    %v3339 = vadd.f32 %v3335, %v3338
    %vm3340 = vweird.f32 %v3334
    %vm3341 = vweird.f32 %v3335
    %vm3342 = vmor %vm3340, %vm3341
    %v3343 = vsel %vm3342, %v3335, %v3339
    %v3344 = vand.u32 2147483647, %v3334
    %vm3345 = vcmp.eq.f32.partialorder %v3344, 8.507059e+37
    %v3346 = vand.u32 %v3334, 2147483648
    %v3347 = vor.u32 1.1754944e-38, %v3346
    %v3348 = vsel %vm3345, %v3347, %v3343
    %v3349 = vmul.f32 1.0, %v3348
    %v3350 = vtanh.pop %v3330
    %v3352 = vrot.slane %v3297, 6
    %v3354 = vmul.f32 %v3349, %v3352
    %3356 = vrot.lane.b32.xlu0 %v3350, 64
    %v3357 = vpop.permute.xlu0 %3356
    %v3359 = vmul.f32 %v3349, %v3357
    %3361 = vrot.lane.b32.xlu0 %v3359, 32
    %v3362 = vpop.permute.xlu0 %3361
    %v3364 = vadd.f32 %v3354, %v3362
    %v3365 = vtanh.pop %v3364
    %3367 = vrot.lane.b32.xlu0 %v3365, 64
    %v3368 = vpop.permute.xlu0 %3367
    %v3370 = vmul.f32 %v3349, %v3368
    %3372 = vrot.lane.b32.xlu0 %v3370, 32
    %v3373 = vpop.permute.xlu0 %3372
    %v3374 = vsel %vm1766, %v3373, 0
    %3376 = vmatpush.msra.mxu0 0.0
    %3377 = vmatpush.msra.mxu0 0.0
    %3378 = vmatpush.msra.mxu0 0.0
    %3379 = vmatpush.msra.mxu0 0.0
    %3380 = vmatpush.msra.mxu0 0.0
    %3381 = vmatpush.msra.mxu0 0.0
    %3382 = vmatpush.msra.mxu0 0.0
    %3383 = vmatpush.msra.mxu0 0.0
    %3384 = vmatpush.msra.mxu0 0.0
    %3385 = vmatpush.msra.mxu0 0.0
    %3386 = vmatpush.msra.mxu0 0.0
    %3387 = vmatpush.msra.mxu0 0.0
    %3388 = vmatpush.msra.mxu0 %v2930
    %3389 = vmatpush.msra.mxu0 %v2929
    %3390 = vmatpush.msra.mxu0 %v2928
    %3391 = vmatpush.msra.mxu0 %v2927
    %3392 = vmatmul.f32.gmra.mxu0 %v3374
    %v3393 = vpop.f32.mrf.mxu0
    %v3394 = vadd.f32 0.0, %v3393
    %3395 = vdwg.mxu0
    %v3397 = vrot.slane %v3394, 6
    %v3399 = vadd.f32 %v3034, %v3397
    %v3400 = vxor.u32 %v3399, 2147483648
    %v3401 = vmul.f32 %v3400, 1.442695
    %v3402 = vpow.pop %v3401
    %v3403 = vadd.f32 %v3402, 1.0
    %v3404 = vrcp.pop %v3403
    %v3405 = vmul.f32 %v3403, %v3404
    %v3406 = vsub.f32 1.0, %v3405
    %v3407 = vmul.f32 %v3404, %v3406
    %v3408 = vadd.f32 %v3404, %v3407
    %vm3409 = vweird.f32 %v3403
    %vm3410 = vweird.f32 %v3404
    %vm3411 = vmor %vm3409, %vm3410
    %v3412 = vsel %vm3411, %v3404, %v3408
    %v3413 = vand.u32 2147483647, %v3403
    %vm3414 = vcmp.eq.f32.partialorder %v3413, 8.507059e+37
    %v3415 = vand.u32 %v3403, 2147483648
    %v3416 = vor.u32 1.1754944e-38, %v3415
    %v3417 = vsel %vm3414, %v3416, %v3412
    %v3418 = vmul.f32 1.0, %v3417
    %v3419 = vtanh.pop %v3399
    %v3421 = vrot.slane %v3364, 6
    %v3423 = vmul.f32 %v3418, %v3421
    %3425 = vrot.lane.b32.xlu0 %v3419, 64
    %v3426 = vpop.permute.xlu0 %3425
    %v3428 = vmul.f32 %v3418, %v3426
    %3430 = vrot.lane.b32.xlu0 %v3428, 32
    %v3431 = vpop.permute.xlu0 %3430
    %v3433 = vadd.f32 %v3423, %v3431
    %v3434 = vtanh.pop %v3433
    %3436 = vrot.lane.b32.xlu0 %v3434, 64
    %v3437 = vpop.permute.xlu0 %3436
    %v3439 = vmul.f32 %v3418, %v3437
    %v3441 = vrot.slane %v3439, 2
    %3442 = vrot.lane.b32.xlu0 %v3441, 32
    %v3443 = vpop.permute.xlu0 %3442
    %v3444 = vsel %vm1766, %v3443, 0
    %3446 = vmatpush.msra.mxu0 0.0
    %3447 = vmatpush.msra.mxu0 0.0
    %3448 = vmatpush.msra.mxu0 0.0
    %3449 = vmatpush.msra.mxu0 0.0
    %3450 = vmatpush.msra.mxu0 0.0
    %3451 = vmatpush.msra.mxu0 0.0
    %3452 = vmatpush.msra.mxu0 0.0
    %3453 = vmatpush.msra.mxu0 0.0
    %3454 = vmatpush.msra.mxu0 0.0
    %3455 = vmatpush.msra.mxu0 0.0
    %3456 = vmatpush.msra.mxu0 0.0
    %3457 = vmatpush.msra.mxu0 0.0
    %3458 = vmatpush.msra.mxu0 %v2930
    %3459 = vmatpush.msra.mxu0 %v2929
    %3460 = vmatpush.msra.mxu0 %v2928
    %3461 = vmatpush.msra.mxu0 %v2927
    %3462 = vmatmul.f32.gmra.mxu0 %v3444
    %v3463 = vpop.f32.mrf.mxu0
    %v3464 = vadd.f32 0.0, %v3463
    %3465 = vdwg.mxu0
    %v3467 = vrot.slane %v3464, 4
    %v3469 = vadd.f32 %v3034, %v3467
    %v3470 = vxor.u32 %v3469, 2147483648
    %v3471 = vmul.f32 %v3470, 1.442695
    %v3472 = vpow.pop %v3471
    %v3473 = vadd.f32 %v3472, 1.0
    %v3474 = vrcp.pop %v3473
    %v3475 = vmul.f32 %v3473, %v3474
    %v3476 = vsub.f32 1.0, %v3475
    %v3477 = vmul.f32 %v3474, %v3476
    %v3478 = vadd.f32 %v3474, %v3477
    %vm3479 = vweird.f32 %v3473
    %vm3480 = vweird.f32 %v3474
    %vm3481 = vmor %vm3479, %vm3480
    %v3482 = vsel %vm3481, %v3474, %v3478
    %v3483 = vand.u32 2147483647, %v3473
    %vm3484 = vcmp.eq.f32.partialorder %v3483, 8.507059e+37
    %v3485 = vand.u32 %v3473, 2147483648
    %v3486 = vor.u32 1.1754944e-38, %v3485
    %v3487 = vsel %vm3484, %v3486, %v3482
    %v3488 = vmul.f32 1.0, %v3487
    %v3489 = vtanh.pop %v3469
    %v3491 = vrot.slane %v3433, 6
    %v3493 = vmul.f32 %v3488, %v3491
    %3495 = vrot.lane.b32.xlu0 %v3489, 64
    %v3496 = vpop.permute.xlu0 %3495
    %v3498 = vmul.f32 %v3488, %v3496
    %3500 = vrot.lane.b32.xlu0 %v3498, 32
    %v3501 = vpop.permute.xlu0 %3500
    %v3503 = vadd.f32 %v3493, %v3501
    %v3504 = vtanh.pop %v3503
    %3506 = vrot.lane.b32.xlu0 %v3504, 64
    %v3507 = vpop.permute.xlu0 %3506
    %v3509 = vmul.f32 %v3488, %v3507
    %v3511 = vrot.slane %v3509, 4
    %3512 = vrot.lane.b32.xlu0 %v3511, 32
    %v3513 = vpop.permute.xlu0 %3512
    %v3514 = vsel %vm1766, %v3513, 0
    %3516 = vmatpush.msra.mxu0 0.0
    %3517 = vmatpush.msra.mxu0 0.0
    %3518 = vmatpush.msra.mxu0 0.0
    %3519 = vmatpush.msra.mxu0 0.0
    %3520 = vmatpush.msra.mxu0 0.0
    %3521 = vmatpush.msra.mxu0 0.0
    %3522 = vmatpush.msra.mxu0 0.0
    %3523 = vmatpush.msra.mxu0 0.0
    %3524 = vmatpush.msra.mxu0 0.0
    %3525 = vmatpush.msra.mxu0 0.0
    %3526 = vmatpush.msra.mxu0 0.0
    %3527 = vmatpush.msra.mxu0 0.0
    %3528 = vmatpush.msra.mxu0 %v2930
    %3529 = vmatpush.msra.mxu0 %v2929
    %3530 = vmatpush.msra.mxu0 %v2928
    %3531 = vmatpush.msra.mxu0 %v2927
    %3532 = vmatmul.f32.gmra.mxu0 %v3514
    %v3533 = vpop.f32.mrf.mxu0
    %v3534 = vadd.f32 0.0, %v3533
    %3535 = vdwg.mxu0
    %v3537 = vrot.slane %v3534, 2
    %v3539 = vadd.f32 %v3034, %v3537
    %v3540 = vxor.u32 %v3539, 2147483648
    %v3541 = vmul.f32 %v3540, 1.442695
    %v3542 = vpow.pop %v3541
    %v3543 = vadd.f32 %v3542, 1.0
    %v3544 = vrcp.pop %v3543
    %v3545 = vmul.f32 %v3543, %v3544
    %v3546 = vsub.f32 1.0, %v3545
    %v3547 = vmul.f32 %v3544, %v3546
    %v3548 = vadd.f32 %v3544, %v3547
    %vm3549 = vweird.f32 %v3543
    %vm3550 = vweird.f32 %v3544
    %vm3551 = vmor %vm3549, %vm3550
    %v3552 = vsel %vm3551, %v3544, %v3548
    %v3553 = vand.u32 2147483647, %v3543
    %vm3554 = vcmp.eq.f32.partialorder %v3553, 8.507059e+37
    %v3555 = vand.u32 %v3543, 2147483648
    %v3556 = vor.u32 1.1754944e-38, %v3555
    %v3557 = vsel %vm3554, %v3556, %v3552
    %v3558 = vmul.f32 1.0, %v3557
    %v3559 = vtanh.pop %v3539
    %v3561 = vrot.slane %v3503, 6
    %v3563 = vmul.f32 %v3558, %v3561
    %3565 = vrot.lane.b32.xlu0 %v3559, 64
    %v3566 = vpop.permute.xlu0 %3565
    %v3568 = vmul.f32 %v3558, %v3566
    %3570 = vrot.lane.b32.xlu0 %v3568, 32
    %v3571 = vpop.permute.xlu0 %3570
    %v3573 = vadd.f32 %v3563, %v3571
    %v3574 = vtanh.pop %v3573
    %3576 = vrot.lane.b32.xlu0 %v3574, 64
    %v3577 = vpop.permute.xlu0 %3576
    %v3579 = vmul.f32 %v3558, %v3577
    %v3581 = vrot.slane %v3579, 6
    %3582 = vrot.lane.b32.xlu0 %v3581, 32
    %v3583 = vpop.permute.xlu0 %3582
    %v3584 = vsel %vm1766, %v3583, 0
    %3586 = vmatpush.msra.mxu0 0.0
    %3587 = vmatpush.msra.mxu0 0.0
    %3588 = vmatpush.msra.mxu0 0.0
    %3589 = vmatpush.msra.mxu0 0.0
    %3590 = vmatpush.msra.mxu0 0.0
    %3591 = vmatpush.msra.mxu0 0.0
    %3592 = vmatpush.msra.mxu0 0.0
    %3593 = vmatpush.msra.mxu0 0.0
    %3594 = vmatpush.msra.mxu0 0.0
    %3595 = vmatpush.msra.mxu0 0.0
    %3596 = vmatpush.msra.mxu0 0.0
    %3597 = vmatpush.msra.mxu0 0.0
    %3598 = vmatpush.msra.mxu0 %v2930
    %3599 = vmatpush.msra.mxu0 %v2929
    %3600 = vmatpush.msra.mxu0 %v2928
    %3601 = vmatpush.msra.mxu0 %v2927
    %3602 = vmatmul.f32.gmra.mxu0 %v3584
    %v3603 = vpop.f32.mrf.mxu0
    %v3604 = vadd.f32 0.0, %v3603
    %3605 = vdwg.mxu0
    %v3606 = vadd.f32 %v3035, %v3604
    %v3607 = vxor.u32 %v3606, 2147483648
    %v3608 = vmul.f32 %v3607, 1.442695
    %v3609 = vpow.pop %v3608
    %v3610 = vadd.f32 %v3609, 1.0
    %v3611 = vrcp.pop %v3610
    %v3612 = vmul.f32 %v3610, %v3611
    %v3613 = vsub.f32 1.0, %v3612
    %v3614 = vmul.f32 %v3611, %v3613
    %v3615 = vadd.f32 %v3611, %v3614
    %vm3616 = vweird.f32 %v3610
    %vm3617 = vweird.f32 %v3611
    %vm3618 = vmor %vm3616, %vm3617
    %v3619 = vsel %vm3618, %v3611, %v3615
    %v3620 = vand.u32 2147483647, %v3610
    %vm3621 = vcmp.eq.f32.partialorder %v3620, 8.507059e+37
    %v3622 = vand.u32 %v3610, 2147483648
    %v3623 = vor.u32 1.1754944e-38, %v3622
    %v3624 = vsel %vm3621, %v3623, %v3619
    %v3625 = vmul.f32 1.0, %v3624
    %v3626 = vtanh.pop %v3606
    %v3628 = vrot.slane %v3573, 6
    %v3630 = vmul.f32 %v3625, %v3628
    %3632 = vrot.lane.b32.xlu0 %v3626, 64
    %v3633 = vpop.permute.xlu0 %3632
    %v3635 = vmul.f32 %v3625, %v3633
    %3637 = vrot.lane.b32.xlu0 %v3635, 32
    %v3638 = vpop.permute.xlu0 %3637
    %v3640 = vadd.f32 %v3630, %v3638
    %v3641 = vtanh.pop %v3640
    %3643 = vrot.lane.b32.xlu0 %v3641, 64
    %v3644 = vpop.permute.xlu0 %3643
    %v3646 = vmul.f32 %v3625, %v3644
    %3648 = vrot.lane.b32.xlu0 %v3646, 32
    %v3649 = vpop.permute.xlu0 %3648
    %v3650 = vsel %vm1766, %v3649, 0
    %3652 = vmatpush.msra.mxu0 0.0
    %3653 = vmatpush.msra.mxu0 0.0
    %3654 = vmatpush.msra.mxu0 0.0
    %3655 = vmatpush.msra.mxu0 0.0
    %3656 = vmatpush.msra.mxu0 0.0
    %3657 = vmatpush.msra.mxu0 0.0
    %3658 = vmatpush.msra.mxu0 0.0
    %3659 = vmatpush.msra.mxu0 0.0
    %3660 = vmatpush.msra.mxu0 0.0
    %3661 = vmatpush.msra.mxu0 0.0
    %3662 = vmatpush.msra.mxu0 0.0
    %3663 = vmatpush.msra.mxu0 0.0
    %3664 = vmatpush.msra.mxu0 %v2930
    %3665 = vmatpush.msra.mxu0 %v2929
    %3666 = vmatpush.msra.mxu0 %v2928
    %3667 = vmatpush.msra.mxu0 %v2927
    %3668 = vmatmul.f32.gmra.mxu0 %v3650
    %v3669 = vpop.f32.mrf.mxu0
    %v3670 = vadd.f32 0.0, %v3669
    %3671 = vdwg.mxu0
    %v3673 = vrot.slane %v3670, 6
    %v3675 = vadd.f32 %v3035, %v3673
    %v3676 = vxor.u32 %v3675, 2147483648
    %v3677 = vmul.f32 %v3676, 1.442695
    %v3678 = vpow.pop %v3677
    %v3679 = vadd.f32 %v3678, 1.0
    %v3680 = vrcp.pop %v3679
    %v3681 = vmul.f32 %v3679, %v3680
    %v3682 = vsub.f32 1.0, %v3681
    %v3683 = vmul.f32 %v3680, %v3682
    %v3684 = vadd.f32 %v3680, %v3683
    %vm3685 = vweird.f32 %v3679
    %vm3686 = vweird.f32 %v3680
    %vm3687 = vmor %vm3685, %vm3686
    %v3688 = vsel %vm3687, %v3680, %v3684
    %v3689 = vand.u32 2147483647, %v3679
    %vm3690 = vcmp.eq.f32.partialorder %v3689, 8.507059e+37
    %v3691 = vand.u32 %v3679, 2147483648
    %v3692 = vor.u32 1.1754944e-38, %v3691
    %v3693 = vsel %vm3690, %v3692, %v3688
    %v3694 = vmul.f32 1.0, %v3693
    %v3695 = vtanh.pop %v3675
    %v3697 = vrot.slane %v3640, 6
    %v3699 = vmul.f32 %v3694, %v3697
    %3701 = vrot.lane.b32.xlu0 %v3695, 64
    %v3702 = vpop.permute.xlu0 %3701
    %v3704 = vmul.f32 %v3694, %v3702
    %3706 = vrot.lane.b32.xlu0 %v3704, 32
    %v3707 = vpop.permute.xlu0 %3706
    %v3709 = vadd.f32 %v3699, %v3707
    %v3710 = vtanh.pop %v3709
    %3712 = vrot.lane.b32.xlu0 %v3710, 64
    %v3713 = vpop.permute.xlu0 %3712
    %v3715 = vmul.f32 %v3694, %v3713
    %v3717 = vrot.slane %v3715, 2
    %3718 = vrot.lane.b32.xlu0 %v3717, 32
    %v3719 = vpop.permute.xlu0 %3718
    %v3720 = vsel %vm1766, %v3719, 0
    %3722 = vmatpush.msra.mxu0 0.0
    %3723 = vmatpush.msra.mxu0 0.0
    %3724 = vmatpush.msra.mxu0 0.0
    %3725 = vmatpush.msra.mxu0 0.0
    %3726 = vmatpush.msra.mxu0 0.0
    %3727 = vmatpush.msra.mxu0 0.0
    %3728 = vmatpush.msra.mxu0 0.0
    %3729 = vmatpush.msra.mxu0 0.0
    %3730 = vmatpush.msra.mxu0 0.0
    %3731 = vmatpush.msra.mxu0 0.0
    %3732 = vmatpush.msra.mxu0 0.0
    %3733 = vmatpush.msra.mxu0 0.0
    %3734 = vmatpush.msra.mxu0 %v2930
    %3735 = vmatpush.msra.mxu0 %v2929
    %3736 = vmatpush.msra.mxu0 %v2928
    %3737 = vmatpush.msra.mxu0 %v2927
    %3738 = vmatmul.f32.gmra.mxu0 %v3720
    %v3739 = vpop.f32.mrf.mxu0
    %v3740 = vadd.f32 0.0, %v3739
    %3741 = vdwg.mxu0
    %v3743 = vrot.slane %v3740, 4
    %v3745 = vadd.f32 %v3035, %v3743
    %v3746 = vxor.u32 %v3745, 2147483648
    %v3747 = vmul.f32 %v3746, 1.442695
    %v3748 = vpow.pop %v3747
    %v3749 = vadd.f32 %v3748, 1.0
    %v3750 = vrcp.pop %v3749
    %v3751 = vmul.f32 %v3749, %v3750
    %v3752 = vsub.f32 1.0, %v3751
    %v3753 = vmul.f32 %v3750, %v3752
    %v3754 = vadd.f32 %v3750, %v3753
    %vm3755 = vweird.f32 %v3749
    %vm3756 = vweird.f32 %v3750
    %vm3757 = vmor %vm3755, %vm3756
    %v3758 = vsel %vm3757, %v3750, %v3754
    %v3759 = vand.u32 2147483647, %v3749
    %vm3760 = vcmp.eq.f32.partialorder %v3759, 8.507059e+37
    %v3761 = vand.u32 %v3749, 2147483648
    %v3762 = vor.u32 1.1754944e-38, %v3761
    %v3763 = vsel %vm3760, %v3762, %v3758
    %v3764 = vmul.f32 1.0, %v3763
    %v3765 = vtanh.pop %v3745
    %v3767 = vrot.slane %v3709, 6
    %v3769 = vmul.f32 %v3764, %v3767
    %3771 = vrot.lane.b32.xlu0 %v3765, 64
    %v3772 = vpop.permute.xlu0 %3771
    %v3774 = vmul.f32 %v3764, %v3772
    %3776 = vrot.lane.b32.xlu0 %v3774, 32
    %v3777 = vpop.permute.xlu0 %3776
    %v3779 = vadd.f32 %v3769, %v3777
    %v3780 = vtanh.pop %v3779
    %3782 = vrot.lane.b32.xlu0 %v3780, 64
    %v3783 = vpop.permute.xlu0 %3782
    %v3785 = vmul.f32 %v3764, %v3783
    %v3787 = vrot.slane %v3785, 4
    %3788 = vrot.lane.b32.xlu0 %v3787, 32
    %v3789 = vpop.permute.xlu0 %3788
    %v3790 = vsel %vm1766, %v3789, 0
    %3792 = vmatpush.msra.mxu0 0.0
    %3793 = vmatpush.msra.mxu0 0.0
    %3794 = vmatpush.msra.mxu0 0.0
    %3795 = vmatpush.msra.mxu0 0.0
    %3796 = vmatpush.msra.mxu0 0.0
    %3797 = vmatpush.msra.mxu0 0.0
    %3798 = vmatpush.msra.mxu0 0.0
    %3799 = vmatpush.msra.mxu0 0.0
    %3800 = vmatpush.msra.mxu0 0.0
    %3801 = vmatpush.msra.mxu0 0.0
    %3802 = vmatpush.msra.mxu0 0.0
    %3803 = vmatpush.msra.mxu0 0.0
    %3804 = vmatpush.msra.mxu0 %v2930
    %3805 = vmatpush.msra.mxu0 %v2929
    %3806 = vmatpush.msra.mxu0 %v2928
    %3807 = vmatpush.msra.mxu0 %v2927
    %3808 = vmatmul.f32.gmra.mxu0 %v3790
    %v3809 = vpop.f32.mrf.mxu0
    %v3810 = vadd.f32 0.0, %v3809
    %3811 = vdwg.mxu0
    %v3813 = vrot.slane %v3810, 2
    %v3815 = vadd.f32 %v3035, %v3813
    %v3816 = vxor.u32 %v3815, 2147483648
    %v3817 = vmul.f32 %v3816, 1.442695
    %v3818 = vpow.pop %v3817
    %v3819 = vadd.f32 %v3818, 1.0
    %v3820 = vrcp.pop %v3819
    %v3821 = vmul.f32 %v3819, %v3820
    %v3822 = vsub.f32 1.0, %v3821
    %v3823 = vmul.f32 %v3820, %v3822
    %v3824 = vadd.f32 %v3820, %v3823
    %vm3825 = vweird.f32 %v3819
    %vm3826 = vweird.f32 %v3820
    %vm3827 = vmor %vm3825, %vm3826
    %v3828 = vsel %vm3827, %v3820, %v3824
    %v3829 = vand.u32 2147483647, %v3819
    %vm3830 = vcmp.eq.f32.partialorder %v3829, 8.507059e+37
    %v3831 = vand.u32 %v3819, 2147483648
    %v3832 = vor.u32 1.1754944e-38, %v3831
    %v3833 = vsel %vm3830, %v3832, %v3828
    %v3834 = vmul.f32 1.0, %v3833
    %v3835 = vtanh.pop %v3815
    %v3837 = vrot.slane %v3779, 6
    %v3839 = vmul.f32 %v3834, %v3837
    %3841 = vrot.lane.b32.xlu0 %v3835, 64
    %v3842 = vpop.permute.xlu0 %3841
    %v3844 = vmul.f32 %v3834, %v3842
    %3846 = vrot.lane.b32.xlu0 %v3844, 32
    %v3847 = vpop.permute.xlu0 %3846
    %v3849 = vadd.f32 %v3839, %v3847
    %v3850 = vtanh.pop %v3849
    %3852 = vrot.lane.b32.xlu0 %v3850, 64
    %v3853 = vpop.permute.xlu0 %3852
    %v3855 = vmul.f32 %v3834, %v3853
    %v3857 = vrot.slane %v3855, 6
    %3858 = vrot.lane.b32.xlu0 %v3857, 32
    %v3859 = vpop.permute.xlu0 %3858
    %v3860 = vsel %vm1766, %v3859, 0
    %3862 = vmatpush.msra.mxu0 0.0
    %3863 = vmatpush.msra.mxu0 0.0
    %3864 = vmatpush.msra.mxu0 0.0
    %3865 = vmatpush.msra.mxu0 0.0
    %3866 = vmatpush.msra.mxu0 0.0
    %3867 = vmatpush.msra.mxu0 0.0
    %3868 = vmatpush.msra.mxu0 0.0
    %3869 = vmatpush.msra.mxu0 0.0
    %3870 = vmatpush.msra.mxu0 0.0
    %3871 = vmatpush.msra.mxu0 0.0
    %3872 = vmatpush.msra.mxu0 0.0
    %3873 = vmatpush.msra.mxu0 0.0
    %3874 = vmatpush.msra.mxu0 %v2930
    %3875 = vmatpush.msra.mxu0 %v2929
    %3876 = vmatpush.msra.mxu0 %v2928
    %3877 = vmatpush.msra.mxu0 %v2927
    %3878 = vmatmul.f32.gmra.mxu0 %v3860
    %v3879 = vpop.f32.mrf.mxu0
    %v3880 = vadd.f32 0.0, %v3879
    %3881 = vdwg.mxu0
    %v3882 = vadd.f32 %v3036, %v3880
    %v3883 = vxor.u32 %v3882, 2147483648
    %v3884 = vmul.f32 %v3883, 1.442695
    %v3885 = vpow.pop %v3884
    %v3886 = vadd.f32 %v3885, 1.0
    %v3887 = vrcp.pop %v3886
    %v3888 = vmul.f32 %v3886, %v3887
    %v3889 = vsub.f32 1.0, %v3888
    %v3890 = vmul.f32 %v3887, %v3889
    %v3891 = vadd.f32 %v3887, %v3890
    %vm3892 = vweird.f32 %v3886
    %vm3893 = vweird.f32 %v3887
    %vm3894 = vmor %vm3892, %vm3893
    %v3895 = vsel %vm3894, %v3887, %v3891
    %v3896 = vand.u32 2147483647, %v3886
    %vm3897 = vcmp.eq.f32.partialorder %v3896, 8.507059e+37
    %v3898 = vand.u32 %v3886, 2147483648
    %v3899 = vor.u32 1.1754944e-38, %v3898
    %v3900 = vsel %vm3897, %v3899, %v3895
    %v3901 = vmul.f32 1.0, %v3900
    %v3902 = vtanh.pop %v3882
    %v3904 = vrot.slane %v3849, 6
    %v3906 = vmul.f32 %v3901, %v3904
    %3908 = vrot.lane.b32.xlu0 %v3902, 64
    %v3909 = vpop.permute.xlu0 %3908
    %v3911 = vmul.f32 %v3901, %v3909
    %3913 = vrot.lane.b32.xlu0 %v3911, 32
    %v3914 = vpop.permute.xlu0 %3913
    %v3916 = vadd.f32 %v3906, %v3914
    %v3917 = vtanh.pop %v3916
    %3919 = vrot.lane.b32.xlu0 %v3917, 64
    %v3920 = vpop.permute.xlu0 %3919
    %v3922 = vmul.f32 %v3901, %v3920
    %3924 = vrot.lane.b32.xlu0 %v3922, 32
    %v3925 = vpop.permute.xlu0 %3924
    %v3926 = vsel %vm1766, %v3925, 0
    %3928 = vmatpush.msra.mxu0 0.0
    %3929 = vmatpush.msra.mxu0 0.0
    %3930 = vmatpush.msra.mxu0 0.0
    %3931 = vmatpush.msra.mxu0 0.0
    %3932 = vmatpush.msra.mxu0 0.0
    %3933 = vmatpush.msra.mxu0 0.0
    %3934 = vmatpush.msra.mxu0 0.0
    %3935 = vmatpush.msra.mxu0 0.0
    %3936 = vmatpush.msra.mxu0 0.0
    %3937 = vmatpush.msra.mxu0 0.0
    %3938 = vmatpush.msra.mxu0 0.0
    %3939 = vmatpush.msra.mxu0 0.0
    %3940 = vmatpush.msra.mxu0 %v2930
    %3941 = vmatpush.msra.mxu0 %v2929
    %3942 = vmatpush.msra.mxu0 %v2928
    %3943 = vmatpush.msra.mxu0 %v2927
    %3944 = vmatmul.f32.gmra.mxu0 %v3926
    %v3945 = vpop.f32.mrf.mxu0
    %v3946 = vadd.f32 0.0, %v3945
    %3947 = vdwg.mxu0
    %v3949 = vrot.slane %v3946, 6
    %v3951 = vadd.f32 %v3036, %v3949
    %v3952 = vxor.u32 %v3951, 2147483648
    %v3953 = vmul.f32 %v3952, 1.442695
    %v3954 = vpow.pop %v3953
    %v3955 = vadd.f32 %v3954, 1.0
    %v3956 = vrcp.pop %v3955
    %v3957 = vmul.f32 %v3955, %v3956
    %v3958 = vsub.f32 1.0, %v3957
    %v3959 = vmul.f32 %v3956, %v3958
    %v3960 = vadd.f32 %v3956, %v3959
    %vm3961 = vweird.f32 %v3955
    %vm3962 = vweird.f32 %v3956
    %vm3963 = vmor %vm3961, %vm3962
    %v3964 = vsel %vm3963, %v3956, %v3960
    %v3965 = vand.u32 2147483647, %v3955
    %vm3966 = vcmp.eq.f32.partialorder %v3965, 8.507059e+37
    %v3967 = vand.u32 %v3955, 2147483648
    %v3968 = vor.u32 1.1754944e-38, %v3967
    %v3969 = vsel %vm3966, %v3968, %v3964
    %v3970 = vmul.f32 1.0, %v3969
    %v3971 = vtanh.pop %v3951
    %v3973 = vrot.slane %v3916, 6
    %v3975 = vmul.f32 %v3970, %v3973
    %3977 = vrot.lane.b32.xlu0 %v3971, 64
    %v3978 = vpop.permute.xlu0 %3977
    %v3980 = vmul.f32 %v3970, %v3978
    %3982 = vrot.lane.b32.xlu0 %v3980, 32
    %v3983 = vpop.permute.xlu0 %3982
    %v3985 = vadd.f32 %v3975, %v3983
    %v3986 = vtanh.pop %v3985
    %3988 = vrot.lane.b32.xlu0 %v3986, 64
    %v3989 = vpop.permute.xlu0 %3988
    %v3991 = vmul.f32 %v3970, %v3989
    %v3993 = vrot.slane %v3991, 2
    %3994 = vrot.lane.b32.xlu0 %v3993, 32
    %v3995 = vpop.permute.xlu0 %3994
    %v3996 = vsel %vm1766, %v3995, 0
    %3998 = vmatpush.msra.mxu0 0.0
    %3999 = vmatpush.msra.mxu0 0.0
    %4000 = vmatpush.msra.mxu0 0.0
    %4001 = vmatpush.msra.mxu0 0.0
    %4002 = vmatpush.msra.mxu0 0.0
    %4003 = vmatpush.msra.mxu0 0.0
    %4004 = vmatpush.msra.mxu0 0.0
    %4005 = vmatpush.msra.mxu0 0.0
    %4006 = vmatpush.msra.mxu0 0.0
    %4007 = vmatpush.msra.mxu0 0.0
    %4008 = vmatpush.msra.mxu0 0.0
    %4009 = vmatpush.msra.mxu0 0.0
    %4010 = vmatpush.msra.mxu0 %v2930
    %4011 = vmatpush.msra.mxu0 %v2929
    %4012 = vmatpush.msra.mxu0 %v2928
    %4013 = vmatpush.msra.mxu0 %v2927
    %4014 = vmatmul.f32.gmra.mxu0 %v3996
    %v4015 = vpop.f32.mrf.mxu0
    %v4016 = vadd.f32 0.0, %v4015
    %4017 = vdwg.mxu0
    %v4019 = vrot.slane %v4016, 4
    %v4021 = vadd.f32 %v3036, %v4019
    %v4022 = vxor.u32 %v4021, 2147483648
    %v4023 = vmul.f32 %v4022, 1.442695
    %v4024 = vpow.pop %v4023
    %v4025 = vadd.f32 %v4024, 1.0
    %v4026 = vrcp.pop %v4025
    %v4027 = vmul.f32 %v4025, %v4026
    %v4028 = vsub.f32 1.0, %v4027
    %v4029 = vmul.f32 %v4026, %v4028
    %v4030 = vadd.f32 %v4026, %v4029
    %vm4031 = vweird.f32 %v4025
    %vm4032 = vweird.f32 %v4026
    %vm4033 = vmor %vm4031, %vm4032
    %v4034 = vsel %vm4033, %v4026, %v4030
    %v4035 = vand.u32 2147483647, %v4025
    %vm4036 = vcmp.eq.f32.partialorder %v4035, 8.507059e+37
    %v4037 = vand.u32 %v4025, 2147483648
    %v4038 = vor.u32 1.1754944e-38, %v4037
    %v4039 = vsel %vm4036, %v4038, %v4034
    %v4040 = vmul.f32 1.0, %v4039
    %v4041 = vtanh.pop %v4021
    %v4043 = vrot.slane %v3985, 6
    %v4045 = vmul.f32 %v4040, %v4043
    %4047 = vrot.lane.b32.xlu0 %v4041, 64
    %v4048 = vpop.permute.xlu0 %4047
    %v4050 = vmul.f32 %v4040, %v4048
    %4052 = vrot.lane.b32.xlu0 %v4050, 32
    %v4053 = vpop.permute.xlu0 %4052
    %v4055 = vadd.f32 %v4045, %v4053
    %v4056 = vtanh.pop %v4055
    %4058 = vrot.lane.b32.xlu0 %v4056, 64
    %v4059 = vpop.permute.xlu0 %4058
    %v4061 = vmul.f32 %v4040, %v4059
    %v4063 = vrot.slane %v4061, 4
    %4064 = vrot.lane.b32.xlu0 %v4063, 32
    %v4065 = vpop.permute.xlu0 %4064
    %v4066 = vsel %vm1766, %v4065, 0
    %4068 = vmatpush.msra.mxu0 0.0
    %4069 = vmatpush.msra.mxu0 0.0
    %4070 = vmatpush.msra.mxu0 0.0
    %4071 = vmatpush.msra.mxu0 0.0
    %4072 = vmatpush.msra.mxu0 0.0
    %4073 = vmatpush.msra.mxu0 0.0
    %4074 = vmatpush.msra.mxu0 0.0
    %4075 = vmatpush.msra.mxu0 0.0
    %4076 = vmatpush.msra.mxu0 0.0
    %4077 = vmatpush.msra.mxu0 0.0
    %4078 = vmatpush.msra.mxu0 0.0
    %4079 = vmatpush.msra.mxu0 0.0
    %4080 = vmatpush.msra.mxu0 %v2930
    %4081 = vmatpush.msra.mxu0 %v2929
    %4082 = vmatpush.msra.mxu0 %v2928
    %4083 = vmatpush.msra.mxu0 %v2927
    %4084 = vmatmul.f32.gmra.mxu0 %v4066
    %v4085 = vpop.f32.mrf.mxu0
    %v4086 = vadd.f32 0.0, %v4085
    %4087 = vdwg.mxu0
    %v4089 = vrot.slane %v4086, 2
    %v4091 = vadd.f32 %v3036, %v4089
    %v4092 = vxor.u32 %v4091, 2147483648
    %v4093 = vmul.f32 %v4092, 1.442695
    %v4094 = vpow.pop %v4093
    %v4095 = vadd.f32 %v4094, 1.0
    %v4096 = vrcp.pop %v4095
    %v4097 = vmul.f32 %v4095, %v4096
    %v4098 = vsub.f32 1.0, %v4097
    %v4099 = vmul.f32 %v4096, %v4098
    %v4100 = vadd.f32 %v4096, %v4099
    %vm4101 = vweird.f32 %v4095
    %vm4102 = vweird.f32 %v4096
    %vm4103 = vmor %vm4101, %vm4102
    %v4104 = vsel %vm4103, %v4096, %v4100
    %v4105 = vand.u32 2147483647, %v4095
    %vm4106 = vcmp.eq.f32.partialorder %v4105, 8.507059e+37
    %v4107 = vand.u32 %v4095, 2147483648
    %v4108 = vor.u32 1.1754944e-38, %v4107
    %v4109 = vsel %vm4106, %v4108, %v4104
    %v4110 = vmul.f32 1.0, %v4109
    %v4111 = vtanh.pop %v4091
    %v4113 = vrot.slane %v4055, 6
    %v4115 = vmul.f32 %v4110, %v4113
    %4117 = vrot.lane.b32.xlu0 %v4111, 64
    %v4118 = vpop.permute.xlu0 %4117
    %v4120 = vmul.f32 %v4110, %v4118
    %4122 = vrot.lane.b32.xlu0 %v4120, 32
    %v4123 = vpop.permute.xlu0 %4122
    %v4125 = vadd.f32 %v4115, %v4123
    %v4126 = vtanh.pop %v4125
    %4128 = vrot.lane.b32.xlu0 %v4126, 64
    %v4129 = vpop.permute.xlu0 %4128
    %v4131 = vmul.f32 %v4110, %v4129
    %v4132 = vld [vmem:[%s12] sm:$0xff]
    %v4133 = vld [vmem:[%s12 + $0x8] sm:$0xff]
    %v4134 = vld [vmem:[%s12 + $0x10] sm:$0xff]
    %v4135 = vld [vmem:[%s12 + $0x18] sm:$0xff]
    %v4136 = vld [vmem:[#allocation11] sm:$0x1]
    %v4138 = vperm.slane %v4136, 0
    %v4141 = vrot.slane %v4131, 6
    %4142 = vrot.lane.b32.xlu0 %v4141, 32
    %v4143 = vpop.permute.xlu0 %4142
    %v4144 = vsel %vm1766, %v4143, 0
    %4146 = vmatpush.msra.mxu0 0.0
    %4147 = vmatpush.msra.mxu0 0.0
    %4148 = vmatpush.msra.mxu0 0.0
    %4149 = vmatpush.msra.mxu0 0.0
    %4150 = vmatpush.msra.mxu0 0.0
    %4151 = vmatpush.msra.mxu0 0.0
    %4152 = vmatpush.msra.mxu0 0.0
    %4153 = vmatpush.msra.mxu0 0.0
    %4154 = vmatpush.msra.mxu0 0.0
    %4155 = vmatpush.msra.mxu0 0.0
    %4156 = vmatpush.msra.mxu0 0.0
    %4157 = vmatpush.msra.mxu0 0.0
    %4158 = vmatpush.msra.mxu0 %v4135
    %4159 = vmatpush.msra.mxu0 %v4134
    %4160 = vmatpush.msra.mxu0 %v4133
    %4161 = vmatpush.msra.mxu0 %v4132
    %4162 = vmatmul.f32.gmra.mxu0 %v4144
    %v4163 = vpop.f32.mrf.mxu0
    %v4164 = vadd.f32 %v4138, %v4163
    %4165 = vdwg.mxu0
    %v4166 = vmax.f32 %v4164, 0.0
    %v4167 = vld [vmem:[%s14] sm:$0xff]
    %v4168 = vld [vmem:[%s14 + $0x8] sm:$0xff]
    %v4169 = vld [vmem:[%s15] sm:$0x1]
    %v4171 = vperm.slane %v4169, 0
    %vm4173 = vcmask 130048
    %v4175 = vsel %vm4173, %v4166, 0
    %4177 = vmatpush.msra.mxu0 0.0
    %4178 = vmatpush.msra.mxu0 0.0
    %4179 = vmatpush.msra.mxu0 0.0
    %4180 = vmatpush.msra.mxu0 0.0
    %4181 = vmatpush.msra.mxu0 0.0
    %4182 = vmatpush.msra.mxu0 0.0
    %4183 = vmatpush.msra.mxu0 0.0
    %4184 = vmatpush.msra.mxu0 0.0
    %4185 = vmatpush.msra.mxu0 0.0
    %4186 = vmatpush.msra.mxu0 0.0
    %4187 = vmatpush.msra.mxu0 0.0
    %4188 = vmatpush.msra.mxu0 0.0
    %4189 = vmatpush.msra.mxu0 0.0
    %4190 = vmatpush.msra.mxu0 0.0
    %4191 = vmatpush.msra.mxu0 %v4168
    %4192 = vmatpush.msra.mxu0 %v4167
    %4193 = vmatmul.f32.gmra.mxu0 %v4175
    %v4194 = vpop.f32.mrf.mxu0
    %v4195 = vadd.f32 %v4171, %v4194
    %4196 = vdwg.mxu0
    %vm4197 = vcmask 74752
    %4198 = vst.msk [vmem:[#allocation13] sm:$0x3] %vm4197, %v4195
    // Predicated region
    $region90: #{hybrid_cnn_bilstm_forward.1} parent=1 // pred_check
      _
    $region91: #{hybrid_cnn_bilstm_forward.1} parent=1 // pred_check_branch
      %4200 = sbr.rel (0) target = $region93
    $region92: #{hybrid_cnn_bilstm_forward.1} parent=1 // pred_region
      %4202 = vsyncadd [#allocation4], 0
      %s4204 = sshll.u32 [#allocation13], 4
      %s4205 = int_to_ptr.vmem [resolvable:$true] %s4204
      %s4206 = sshll.u32 %s16, 4
      %s4207 = int_to_ptr.hbm [resolvable:$true] %s4206
      %4209 = dma.vmem_to_hbm [thread:$0]  %s4205, 32, %s4207, [#allocation4]
    $region93: #{hybrid_cnn_bilstm_forward.1} parent=1 // pred_fallthru
      _
    // Predicated region
    $region94: #{hybrid_cnn_bilstm_forward.1} parent=1 // pred_check
      _
    $region95: #{hybrid_cnn_bilstm_forward.1} parent=1 // pred_check_branch
      %4211 = sbr.rel (0) target = $region97
    $region96: #{hybrid_cnn_bilstm_forward.1} parent=1 // pred_region
      %4213 = dma.done [#allocation4], 32
    $region97: #{hybrid_cnn_bilstm_forward.1} parent=1 // pred_fallthru
      _
    %4214 = vsyncpa [#allocation3], 1
    %4215 = vsyncpa [#allocation6], 1
    %4216 = vsyncpa [#allocation9], 1
    %4217 = vsyncpa [#allocation12], 1
    %4218 = vsyncpa [#allocation4], 1

</llo_original>
